<compile_context>
chip_gen: v6e
topology: v6e:2x2x1
jax: 0.10.0
libtpu: 0.0.40
codegen_flags: <defaults>
</compile_context>

<pallas_src>
import jax
import jax.numpy as jnp
from jax import lax
from jax.experimental import pallas as pl
from jax.experimental.pallas import tpu as pltpu


G = 128        # zero lane margin -> every slab store is 128-lane aligned
CIN_PAD = 8    # input channels zero-padded to one f32 sublane tile


def _pad128(v):
    return ((v + 127) // 128) * 128


def _level(h, w):
    hp, wp = h + 2, w + 2
    mp = hp * wp                      # real (zero-ring-padded) positions / image
    return hp, wp, mp, _pad128(mp)    # ..., lane-padded positions / image


# ------------------------------ fused kernel --------------------------------

def _make_kernel(h1, w1, c_in, f1, f2):
    _, wp1, mp1, M1 = _level(h1, w1)
    _, wp2, mp2, M2 = _level(h1 // 2, w1 // 2)

    def kernel(x_ref,
               w1a, b1a, w1b, b1b, w2a, b2a, w2b, b2b, wd1, bd1, wd2, bd2,
               sel_pool, sel_up, mask1, mask2,
               out_ref,
               col, a1, e1, u1, d1, p1, a2, e2):
        m1b = mask1[...] != 0.0          # (1, M1) level-1 interior mask
        m2b = mask2[...] != 0.0          # (1, M2) level-2 interior mask

        def conv(srcs, cins, w_ref, b_ref, wp, M, maskb, relu):
            # im2col: stack the 9 shifted views of every source into `col`,
            # then contract taps x channels in ONE MXU dot (K = 9*sum(cins)).
            row = 0
            for s_ref, ci in zip(srcs, cins):
                for k in range(9):
                    off = (k // 3 - 1) * wp + (k % 3 - 1)
                    col[row:row + ci, :M] = s_ref[:, pl.ds(G + off, M)]
                    row += ci
            acc = jnp.dot(w_ref[...], col[:row, :M],
                          preferred_element_type=jnp.float32)
            acc = acc + b_ref[...]                 # (Cout, 1) broadcasts over lanes
            if relu:
                acc = jnp.maximum(acc, 0.0)
            # Load-bearing select: zeroes the padded border ring (= the next
            # conv's 'same' zero padding) and the lane-padding tail, and makes
            # garbage read from never-written scratch margins harmless.
            return jnp.where(maskb, acc, 0.0)

        # ---------------- encoder level 1 ----------------
        a1[:, G:G + M1] = conv([x_ref], [CIN_PAD], w1a, b1a, wp1, M1, m1b, True)
        e1[:, G:G + M1] = conv([a1], [f1], w1b, b1b, wp1, M1, m1b, True)

        # ------- 2x2 max-pool (stride 2): max of 4 shifted views, then -------
        # ------- stride-2 compaction via a precomputed one-hot matmul  -------
        vmax = jnp.maximum(
            jnp.maximum(e1[:, pl.ds(G, M1)], e1[:, pl.ds(G + 1, M1)]),
            jnp.maximum(e1[:, pl.ds(G + wp1, M1)], e1[:, pl.ds(G + wp1 + 1, M1)]))
        vmax = jnp.where(m1b, vmax, 0.0)           # keep the matmul operand finite
        p1[:, G:G + M2] = jnp.dot(vmax, sel_pool[...],
                                  preferred_element_type=jnp.float32)

        # ---------------- encoder level 2 (bottleneck) ----------------
        a2[:, G:G + M2] = conv([p1], [f1], w2a, b2a, wp2, M2, m2b, True)
        e2[:, G:G + M2] = conv([a2], [f2], w2b, b2b, wp2, M2, m2b, True)

        # ---------------- nearest 2x upsample (one-hot matmul) ----------------
        u1[:, G:G + M1] = jnp.dot(e2[:, pl.ds(G, M2)], sel_up[...],
                                  preferred_element_type=jnp.float32)

        # ---- decoder: concat([u1, e1]) conv as a single folded dot (K=216) ----
        d1[:, G:G + M1] = conv([u1, e1], [f2, f1], wd1, bd1, wp1, M1, m1b, True)

        # ---------------- final conv + fused residual (+ x) ----------------
        v = conv([d1], [f1], wd2, bd2, wp1, M1, m1b, False)
        out_ref[...] = v + x_ref[:c_in, pl.ds(G, M1)]

    return kernel


# --------------------------- host-side plumbing ------------------------------

def _fold(w):
    """HWIO (3,3,Cin,Cout) -> (Cout, 9*Cin); rows tap-major, channel-minor."""
    kh, kw, ci, co = w.shape
    return jnp.transpose(w, (3, 0, 1, 2)).reshape(co, kh * kw * ci)


def _aux(h1, w1):
    """Interior masks and one-hot pool/upsample matrices (per image, constant)."""
    _, wp1, mp1, M1 = _level(h1, w1)
    h2, w2 = h1 // 2, w1 // 2
    _, wp2, mp2, M2 = _level(h2, w2)

    m = jnp.arange(M1)
    hh, ww = m // wp1, m % wp1
    int1 = (m < mp1) & (hh >= 1) & (hh <= h1) & (ww >= 1) & (ww <= w1)
    mask1 = int1.astype(jnp.float32).reshape(1, M1)

    q = jnp.arange(M2)
    h2p, w2p = q // wp2, q % wp2
    int2 = (q < mp2) & (h2p >= 1) & (h2p <= h2) & (w2p >= 1) & (w2p <= w2)
    mask2 = int2.astype(jnp.float32).reshape(1, M2)

    # maxpool compaction: level-1 index of the top-left element of each window
    pool_src = jnp.where(int2, (2 * h2p - 1) * wp1 + (2 * w2p - 1), -1)
    sel_pool = (jnp.arange(M1)[:, None] == pool_src[None, :]).astype(jnp.float32)

    # nearest-2x upsample: level-2 source index of each level-1 position
    up_src = jnp.where(int1, ((hh - 1) // 2 + 1) * wp2 + ((ww - 1) // 2 + 1), -1)
    sel_up = (jnp.arange(M2)[:, None] == up_src[None, :]).astype(jnp.float32)

    return sel_pool, sel_up, mask1, mask2


def learned_transform_unet(params, x_nchw):
    """Equivalent of LearnedTransform_unet.forward: (network(x) + x, [])."""
    n, c, h1, w1 = x_nchw.shape
    assert h1 % 2 == 0 and w1 % 2 == 0, "even spatial dims assumed (MaxPool2d(2))"
    assert c <= CIN_PAD
    f1 = params["enc1a"][0].shape[-1]
    f2 = params["enc2a"][0].shape[-1]

    hp1, wp1, mp1, M1 = _level(h1, w1)
    _, _, mp2, M2 = _level(h1 // 2, w1 // 2)
    L1 = M1 + 2 * G
    L2 = M2 + 2 * G

    x = x_nchw.astype(jnp.float32)
    # NCHW -> per-image channels-major lane layout with zero ring, zero lane
    # margin and zero lane-padding tail: every 3x3 tap is a contiguous static
    # lane slice and every slab store is 128-lane aligned.
    xp = jnp.pad(x, ((0, 0), (0, CIN_PAD - c), (1, 1), (1, 1)))
    x_lane = jnp.pad(xp.reshape(n, CIN_PAD, mp1),
                     ((0, 0), (0, 0), (G, L1 - G - mp1)))

    sel_pool, sel_up, mask1, mask2 = _aux(h1, w1)

    def bias(name):
        return params[name][1].reshape(-1, 1)

    w_in = jnp.pad(params["enc1a"][0], ((0, 0), (0, 0), (0, CIN_PAD - c), (0, 0)))
    wd = params["dec1a"][0]                       # (3,3, f2+f1, f1): concat([u1, e1])
    args = (
        x_lane,
        _fold(w_in), bias("enc1a"),
        _fold(params["enc1b"][0]), bias("enc1b"),
        _fold(params["enc2a"][0]), bias("enc2a"),
        _fold(params["enc2b"][0]), bias("enc2b"),
        jnp.concatenate([_fold(wd[:, :, :f2, :]), _fold(wd[:, :, f2:, :])], axis=1),
        bias("dec1a"),
        _fold(params["dec1b"][0]), bias("dec1b"),
        sel_pool, sel_up, mask1, mask2,
    )

    in_specs = [pl.BlockSpec((None, CIN_PAD, L1), lambda b: (b, 0, 0))]
    in_specs += [pl.BlockSpec(a.shape, lambda b: (0, 0)) for a in args[1:]]
    out_specs = pl.BlockSpec((None, c, M1), lambda b: (b, 0, 0))

    kmax = 9 * max(f1 + f2, CIN_PAD, f1, f2)
    scratch_shapes = [
        pltpu.VMEM((kmax, M1), jnp.float32),      # shared im2col staging buffer
        pltpu.VMEM((f1, L1), jnp.float32),        # a1  enc1a output
        pltpu.VMEM((f1, L1), jnp.float32),        # e1  skip connection
        pltpu.VMEM((f2, L1), jnp.float32),        # u1  upsampled bottleneck
        pltpu.VMEM((f1, L1), jnp.float32),        # d1  dec1a output
        pltpu.VMEM((f1, L2), jnp.float32),        # p1  pooled
        pltpu.VMEM((f2, L2), jnp.float32),        # a2  enc2a output
        pltpu.VMEM((f2, L2), jnp.float32),        # e2  bottleneck
    ]

    flops = 2 * n * (M1 * 9 * (CIN_PAD * f1 + f1 * f1 + (f1 + f2) * f1 + f1 * c)
                     + M2 * 9 * (f1 * f2 + f2 * f2)
                     + (f1 + f2) * M1 * M2)
    bytes_accessed = (sum(int(a.size) * a.dtype.itemsize for a in args)
                      + n * c * M1 * 4)

    out_pad = pl.pallas_call(
        _make_kernel(h1, w1, c, f1, f2),
        grid=(n,),
        in_specs=in_specs,
        out_specs=out_specs,
        out_shape=jax.ShapeDtypeStruct((n, c, M1), jnp.float32),
        scratch_shapes=scratch_shapes,
        compiler_params=pltpu.CompilerParams(
            dimension_semantics=("parallel",)),   # images across TCs on v7x
        cost_estimate=pl.CostEstimate(flops=flops, transcendentals=0,
                                      bytes_accessed=bytes_accessed),
    )(*args)

    out = out_pad[:, :, :mp1].reshape(n, c, hp1, wp1)[:, :, 1:h1 + 1, 1:w1 + 1]
    return out, []


# -------------------------- parameters & reference ---------------------------

def init_params(key, cin=4, f1=8, f2=16):
    def conv_init(k, kin, kout):
        w = jax.random.normal(k, (3, 3, kin, kout), jnp.float32) * 0.05
        b = jnp.zeros((kout,), jnp.float32)
        return (w, b)

    keys = jax.random.split(key, 6)
    return {
        "enc1a": conv_init(keys[0], cin, f1),
        "enc1b": conv_init(keys[1], f1, f1),
        "enc2a": conv_init(keys[2], f1, f2),
        "enc2b": conv_init(keys[3], f2, f2),
        "dec1a": conv_init(keys[4], f1 + f2, f1),
        "dec1b": conv_init(keys[5], f1, cin),
    }


def reference_forward(params, x_nchw):
    """Pure-JAX (lax.conv) reference of the same UNet, used for validation."""
    dn = ("NHWC", "HWIO", "NHWC")

    def conv(t, w, b, relu):
        y = lax.conv_general_dilated(t, w, (1, 1), "SAME",
                                     dimension_numbers=dn) + b
        return jnp.maximum(y, 0.0) if relu else y

    x = jnp.transpose(x_nchw, (0, 2, 3, 1)).astype(jnp.float32)
    e1 = conv(x, *params["enc1a"], True)
    e1 = conv(e1, *params["enc1b"], True)
    n, h, w, c1 = e1.shape
    p1 = e1.reshape(n, h // 2, 2, w // 2, 2, c1).max(axis=(2, 4))
    e2 = conv(p1, *params["enc2a"], True)
    e2 = conv(e2, *params["enc2b"], True)
    u1 = jnp.repeat(jnp.repeat(e2, 2, axis=1), 2, axis=2)
    d = jnp.concatenate([u1, e1], axis=-1)
    d = conv(d, *params["dec1a"], True)
    out = conv(d, *params["dec1b"], False) + x
    return jnp.transpose(out, (0, 3, 1, 2))


# ---------------------------------- main -------------------------------------

if __name__ == "__main__":
    key = jax.random.PRNGKey(0)
    k_param, k_x = jax.random.split(key)

    params = init_params(k_param, cin=4, f1=8, f2=16)
    x = jax.random.normal(k_x, (2, 4, 16, 16), jnp.float32)      # NCHW like PyTorch

    fwd = jax.jit(lambda xx: learned_transform_unet(params, xx)[0])
    out = fwd(x)
    jax.block_until_ready(out)

    assert out.shape == x.shape and out.dtype == jnp.float32

    ref = jax.jit(lambda xx: reference_forward(params, xx))(x)
    max_err = float(jnp.max(jnp.abs(out - ref)))
    assert jnp.allclose(out, ref, atol=2e-4, rtol=2e-4), max_err

    print("KERNEL_OK")
</pallas_src>

<mosaic_0001>
module attributes {stable_mosaic.version = 11 : i64} {
  func.func @kernel(%arg0: i32, %arg1: memref<1x8x640xf32, #tpu.memory_space<vmem>>, %arg2: memref<8x72xf32, #tpu.memory_space<vmem>>, %arg3: memref<8x1xf32, #tpu.memory_space<vmem>>, %arg4: memref<8x72xf32, #tpu.memory_space<vmem>>, %arg5: memref<8x1xf32, #tpu.memory_space<vmem>>, %arg6: memref<16x72xf32, #tpu.memory_space<vmem>>, %arg7: memref<16x1xf32, #tpu.memory_space<vmem>>, %arg8: memref<16x144xf32, #tpu.memory_space<vmem>>, %arg9: memref<16x1xf32, #tpu.memory_space<vmem>>, %arg10: memref<8x216xf32, #tpu.memory_space<vmem>>, %arg11: memref<8x1xf32, #tpu.memory_space<vmem>>, %arg12: memref<4x72xf32, #tpu.memory_space<vmem>>, %arg13: memref<4x1xf32, #tpu.memory_space<vmem>>, %arg14: memref<384x128xf32, #tpu.memory_space<vmem>>, %arg15: memref<128x384xf32, #tpu.memory_space<vmem>>, %arg16: memref<1x384xf32, #tpu.memory_space<vmem>>, %arg17: memref<1x128xf32, #tpu.memory_space<vmem>>, %arg18: memref<1x4x384xf32, #tpu.memory_space<vmem>>, %arg19: memref<216x384xf32, #tpu.memory_space<vmem>>, %arg20: memref<8x640xf32, #tpu.memory_space<vmem>>, %arg21: memref<8x640xf32, #tpu.memory_space<vmem>>, %arg22: memref<16x640xf32, #tpu.memory_space<vmem>>, %arg23: memref<8x640xf32, #tpu.memory_space<vmem>>, %arg24: memref<8x384xf32, #tpu.memory_space<vmem>>, %arg25: memref<16x384xf32, #tpu.memory_space<vmem>>, %arg26: memref<16x384xf32, #tpu.memory_space<vmem>>) attributes {dimension_semantics = [#tpu.dimension_semantics<parallel>], iteration_bounds = array<i64: 2>, scalar_prefetch = 0 : i64, scratch_operands = 8 : i64, tpu.core_type = #tpu.core_type<tc>, window_params = [{transform_indices = @transform_0, window_bounds = array<i64: 1, 8, 640>}, {pipeline_mode = #tpu.pipeline_mode<synchronous>, transform_indices = @transform_1, window_bounds = array<i64: 8, 72>}, {pipeline_mode = #tpu.pipeline_mode<synchronous>, transform_indices = @transform_2, window_bounds = array<i64: 8, 1>}, {pipeline_mode = #tpu.pipeline_mode<synchronous>, transform_indices = @transform_3, window_bounds = array<i64: 8, 72>}, {pipeline_mode = #tpu.pipeline_mode<synchronous>, transform_indices = @transform_4, window_bounds = array<i64: 8, 1>}, {pipeline_mode = #tpu.pipeline_mode<synchronous>, transform_indices = @transform_5, window_bounds = array<i64: 16, 72>}, {pipeline_mode = #tpu.pipeline_mode<synchronous>, transform_indices = @transform_6, window_bounds = array<i64: 16, 1>}, {pipeline_mode = #tpu.pipeline_mode<synchronous>, transform_indices = @transform_7, window_bounds = array<i64: 16, 144>}, {pipeline_mode = #tpu.pipeline_mode<synchronous>, transform_indices = @transform_8, window_bounds = array<i64: 16, 1>}, {pipeline_mode = #tpu.pipeline_mode<synchronous>, transform_indices = @transform_9, window_bounds = array<i64: 8, 216>}, {pipeline_mode = #tpu.pipeline_mode<synchronous>, transform_indices = @transform_10, window_bounds = array<i64: 8, 1>}, {pipeline_mode = #tpu.pipeline_mode<synchronous>, transform_indices = @transform_11, window_bounds = array<i64: 4, 72>}, {pipeline_mode = #tpu.pipeline_mode<synchronous>, transform_indices = @transform_12, window_bounds = array<i64: 4, 1>}, {pipeline_mode = #tpu.pipeline_mode<synchronous>, transform_indices = @transform_13, window_bounds = array<i64: 384, 128>}, {pipeline_mode = #tpu.pipeline_mode<synchronous>, transform_indices = @transform_14, window_bounds = array<i64: 128, 384>}, {pipeline_mode = #tpu.pipeline_mode<synchronous>, transform_indices = @transform_15, window_bounds = array<i64: 1, 384>}, {pipeline_mode = #tpu.pipeline_mode<synchronous>, transform_indices = @transform_16, window_bounds = array<i64: 1, 128>}, {transform_indices = @transform_17, window_bounds = array<i64: 1, 4, 384>}]} {
    %c0 = arith.constant 0 : index
    %c0_0 = arith.constant 0 : index
    %0 = vector.load %arg16[%c0, %c0_0] : memref<1x384xf32, #tpu.memory_space<vmem>>, vector<1x384xf32>
    %cst = arith.constant 0.000000e+00 : f32
    %1 = vector.broadcast %cst : f32 to vector<1x384xf32>
    %2 = arith.cmpf one, %0, %1 : vector<1x384xf32>
    %c0_1 = arith.constant 0 : index
    %c0_2 = arith.constant 0 : index
    %3 = vector.load %arg17[%c0_1, %c0_2] : memref<1x128xf32, #tpu.memory_space<vmem>>, vector<1x128xf32>
    %cst_3 = arith.constant 0.000000e+00 : f32
    %4 = vector.broadcast %cst_3 : f32 to vector<1x128xf32>
    %5 = arith.cmpf one, %3, %4 : vector<1x128xf32>
    %c0_4 = arith.constant 0 : index
    %c0_5 = arith.constant 0 : index
    %c109 = arith.constant 109 : index
    %6 = vector.load %arg1[%c0_4, %c0_5, %c109] : memref<1x8x640xf32, #tpu.memory_space<vmem>>, vector<1x8x384xf32>
    %7 = vector.shape_cast %6 : vector<1x8x384xf32> to vector<8x384xf32>
    %c0_6 = arith.constant 0 : index
    %c0_7 = arith.constant 0 : index
    %8 = vector.load %arg19[%c0_6, %c0_7] : memref<216x384xf32, #tpu.memory_space<vmem>>, vector<8x384xf32>
    tpu.vector_store %arg19[%c0_6, %c0_7], %7 {strides = array<i32>} : memref<216x384xf32, #tpu.memory_space<vmem>>, vector<8x384xf32>,
    %c0_8 = arith.constant 0 : index
    %c0_9 = arith.constant 0 : index
    %c110 = arith.constant 110 : index
    %9 = vector.load %arg1[%c0_8, %c0_9, %c110] : memref<1x8x640xf32, #tpu.memory_space<vmem>>, vector<1x8x384xf32>
    %10 = vector.shape_cast %9 : vector<1x8x384xf32> to vector<8x384xf32>
    %c8 = arith.constant 8 : index
    %c0_10 = arith.constant 0 : index
    %11 = vector.load %arg19[%c8, %c0_10] : memref<216x384xf32, #tpu.memory_space<vmem>>, vector<8x384xf32>
    tpu.vector_store %arg19[%c8, %c0_10], %10 {strides = array<i32>} : memref<216x384xf32, #tpu.memory_space<vmem>>, vector<8x384xf32>,
    %c0_11 = arith.constant 0 : index
    %c0_12 = arith.constant 0 : index
    %c111 = arith.constant 111 : index
    %12 = vector.load %arg1[%c0_11, %c0_12, %c111] : memref<1x8x640xf32, #tpu.memory_space<vmem>>, vector<1x8x384xf32>
    %13 = vector.shape_cast %12 : vector<1x8x384xf32> to vector<8x384xf32>
    %c16 = arith.constant 16 : index
    %c0_13 = arith.constant 0 : index
    %14 = vector.load %arg19[%c16, %c0_13] : memref<216x384xf32, #tpu.memory_space<vmem>>, vector<8x384xf32>
    tpu.vector_store %arg19[%c16, %c0_13], %13 {strides = array<i32>} : memref<216x384xf32, #tpu.memory_space<vmem>>, vector<8x384xf32>,
    %c0_14 = arith.constant 0 : index
    %c0_15 = arith.constant 0 : index
    %c127 = arith.constant 127 : index
    %15 = vector.load %arg1[%c0_14, %c0_15, %c127] : memref<1x8x640xf32, #tpu.memory_space<vmem>>, vector<1x8x384xf32>
    %16 = vector.shape_cast %15 : vector<1x8x384xf32> to vector<8x384xf32>
    %c24 = arith.constant 24 : index
    %c0_16 = arith.constant 0 : index
    %17 = vector.load %arg19[%c24, %c0_16] : memref<216x384xf32, #tpu.memory_space<vmem>>, vector<8x384xf32>
    tpu.vector_store %arg19[%c24, %c0_16], %16 {strides = array<i32>} : memref<216x384xf32, #tpu.memory_space<vmem>>, vector<8x384xf32>,
    %c0_17 = arith.constant 0 : index
    %c0_18 = arith.constant 0 : index
    %c128 = arith.constant 128 : index
    %18 = vector.load %arg1[%c0_17, %c0_18, %c128] : memref<1x8x640xf32, #tpu.memory_space<vmem>>, vector<1x8x384xf32>
    %19 = vector.shape_cast %18 : vector<1x8x384xf32> to vector<8x384xf32>
    %c32 = arith.constant 32 : index
    %c0_19 = arith.constant 0 : index
    %20 = vector.load %arg19[%c32, %c0_19] : memref<216x384xf32, #tpu.memory_space<vmem>>, vector<8x384xf32>
    tpu.vector_store %arg19[%c32, %c0_19], %19 {strides = array<i32>} : memref<216x384xf32, #tpu.memory_space<vmem>>, vector<8x384xf32>,
    %c0_20 = arith.constant 0 : index
    %c0_21 = arith.constant 0 : index
    %c129 = arith.constant 129 : index
    %21 = vector.load %arg1[%c0_20, %c0_21, %c129] : memref<1x8x640xf32, #tpu.memory_space<vmem>>, vector<1x8x384xf32>
    %22 = vector.shape_cast %21 : vector<1x8x384xf32> to vector<8x384xf32>
    %c40 = arith.constant 40 : index
    %c0_22 = arith.constant 0 : index
    %23 = vector.load %arg19[%c40, %c0_22] : memref<216x384xf32, #tpu.memory_space<vmem>>, vector<8x384xf32>
    tpu.vector_store %arg19[%c40, %c0_22], %22 {strides = array<i32>} : memref<216x384xf32, #tpu.memory_space<vmem>>, vector<8x384xf32>,
    %c0_23 = arith.constant 0 : index
    %c0_24 = arith.constant 0 : index
    %c145 = arith.constant 145 : index
    %24 = vector.load %arg1[%c0_23, %c0_24, %c145] : memref<1x8x640xf32, #tpu.memory_space<vmem>>, vector<1x8x384xf32>
    %25 = vector.shape_cast %24 : vector<1x8x384xf32> to vector<8x384xf32>
    %c48 = arith.constant 48 : index
    %c0_25 = arith.constant 0 : index
    %26 = vector.load %arg19[%c48, %c0_25] : memref<216x384xf32, #tpu.memory_space<vmem>>, vector<8x384xf32>
    tpu.vector_store %arg19[%c48, %c0_25], %25 {strides = array<i32>} : memref<216x384xf32, #tpu.memory_space<vmem>>, vector<8x384xf32>,
    %c0_26 = arith.constant 0 : index
    %c0_27 = arith.constant 0 : index
    %c146 = arith.constant 146 : index
    %27 = vector.load %arg1[%c0_26, %c0_27, %c146] : memref<1x8x640xf32, #tpu.memory_space<vmem>>, vector<1x8x384xf32>
    %28 = vector.shape_cast %27 : vector<1x8x384xf32> to vector<8x384xf32>
    %c56 = arith.constant 56 : index
    %c0_28 = arith.constant 0 : index
    %29 = vector.load %arg19[%c56, %c0_28] : memref<216x384xf32, #tpu.memory_space<vmem>>, vector<8x384xf32>
    tpu.vector_store %arg19[%c56, %c0_28], %28 {strides = array<i32>} : memref<216x384xf32, #tpu.memory_space<vmem>>, vector<8x384xf32>,
    %c0_29 = arith.constant 0 : index
    %c0_30 = arith.constant 0 : index
    %c147 = arith.constant 147 : index
    %30 = vector.load %arg1[%c0_29, %c0_30, %c147] : memref<1x8x640xf32, #tpu.memory_space<vmem>>, vector<1x8x384xf32>
    %31 = vector.shape_cast %30 : vector<1x8x384xf32> to vector<8x384xf32>
    %c64 = arith.constant 64 : index
    %c0_31 = arith.constant 0 : index
    %32 = vector.load %arg19[%c64, %c0_31] : memref<216x384xf32, #tpu.memory_space<vmem>>, vector<8x384xf32>
    tpu.vector_store %arg19[%c64, %c0_31], %31 {strides = array<i32>} : memref<216x384xf32, #tpu.memory_space<vmem>>, vector<8x384xf32>,
    %c0_32 = arith.constant 0 : index
    %c0_33 = arith.constant 0 : index
    %33 = vector.load %arg2[%c0_32, %c0_33] : memref<8x72xf32, #tpu.memory_space<vmem>>, vector<8x72xf32>
    %c0_34 = arith.constant 0 : index
    %c0_35 = arith.constant 0 : index
    %34 = vector.load %arg19[%c0_34, %c0_35] : memref<216x384xf32, #tpu.memory_space<vmem>>, vector<72x384xf32>
    %cst_36 = arith.constant dense<0.000000e+00> : vector<8x384xf32>
    %35 = tpu.matmul %33, %34, %cst_36 {dimension_numbers = #tpu.dot_dimension_numbers<[1], [0], [0], [1], [0, 0, 1, 1], [], []>} : vector<8x72xf32>, vector<72x384xf32>, vector<8x384xf32> -> vector<8x384xf32>
    %c0_37 = arith.constant 0 : index
    %c0_38 = arith.constant 0 : index
    %36 = vector.load %arg3[%c0_37, %c0_38] : memref<8x1xf32, #tpu.memory_space<vmem>>, vector<8x1xf32>
    %37 = vector.broadcast %36 : vector<8x1xf32> to vector<8x384xf32>
    %38 = arith.addf %35, %37 : vector<8x384xf32>
    %cst_39 = arith.constant 0.000000e+00 : f32
    %39 = vector.broadcast %cst_39 : f32 to vector<8x384xf32>
    %40 = arith.maximumf %38, %39 : vector<8x384xf32>
    %cst_40 = arith.constant 0.000000e+00 : f32
    %41 = vector.shape_cast %2 : vector<1x384xi1> to vector<1x384xi1>
    %42 = vector.broadcast %41 : vector<1x384xi1> to vector<8x384xi1>
    %43 = vector.broadcast %cst_40 : f32 to vector<8x384xf32>
    %44 = arith.select %42, %40, %43 : vector<8x384xi1>, vector<8x384xf32>
    %c0_41 = arith.constant 0 : index
    %c128_42 = arith.constant 128 : index
    %45 = vector.load %arg20[%c0_41, %c128_42] : memref<8x640xf32, #tpu.memory_space<vmem>>, vector<8x384xf32>
    tpu.vector_store %arg20[%c0_41, %c128_42], %44 {strides = array<i32>} : memref<8x640xf32, #tpu.memory_space<vmem>>, vector<8x384xf32>,
    %c0_43 = arith.constant 0 : index
    %c109_44 = arith.constant 109 : index
    %46 = vector.load %arg20[%c0_43, %c109_44] : memref<8x640xf32, #tpu.memory_space<vmem>>, vector<8x384xf32>
    %c0_45 = arith.constant 0 : index
    %c0_46 = arith.constant 0 : index
    %47 = vector.load %arg19[%c0_45, %c0_46] : memref<216x384xf32, #tpu.memory_space<vmem>>, vector<8x384xf32>
    tpu.vector_store %arg19[%c0_45, %c0_46], %46 {strides = array<i32>} : memref<216x384xf32, #tpu.memory_space<vmem>>, vector<8x384xf32>,
    %c0_47 = arith.constant 0 : index
    %c110_48 = arith.constant 110 : index
    %48 = vector.load %arg20[%c0_47, %c110_48] : memref<8x640xf32, #tpu.memory_space<vmem>>, vector<8x384xf32>
    %c8_49 = arith.constant 8 : index
    %c0_50 = arith.constant 0 : index
    %49 = vector.load %arg19[%c8_49, %c0_50] : memref<216x384xf32, #tpu.memory_space<vmem>>, vector<8x384xf32>
    tpu.vector_store %arg19[%c8_49, %c0_50], %48 {strides = array<i32>} : memref<216x384xf32, #tpu.memory_space<vmem>>, vector<8x384xf32>,
    %c0_51 = arith.constant 0 : index
    %c111_52 = arith.constant 111 : index
    %50 = vector.load %arg20[%c0_51, %c111_52] : memref<8x640xf32, #tpu.memory_space<vmem>>, vector<8x384xf32>
    %c16_53 = arith.constant 16 : index
    %c0_54 = arith.constant 0 : index
    %51 = vector.load %arg19[%c16_53, %c0_54] : memref<216x384xf32, #tpu.memory_space<vmem>>, vector<8x384xf32>
    tpu.vector_store %arg19[%c16_53, %c0_54], %50 {strides = array<i32>} : memref<216x384xf32, #tpu.memory_space<vmem>>, vector<8x384xf32>,
    %c0_55 = arith.constant 0 : index
    %c127_56 = arith.constant 127 : index
    %52 = vector.load %arg20[%c0_55, %c127_56] : memref<8x640xf32, #tpu.memory_space<vmem>>, vector<8x384xf32>
    %c24_57 = arith.constant 24 : index
    %c0_58 = arith.constant 0 : index
    %53 = vector.load %arg19[%c24_57, %c0_58] : memref<216x384xf32, #tpu.memory_space<vmem>>, vector<8x384xf32>
    tpu.vector_store %arg19[%c24_57, %c0_58], %52 {strides = array<i32>} : memref<216x384xf32, #tpu.memory_space<vmem>>, vector<8x384xf32>,
    %c0_59 = arith.constant 0 : index
    %c128_60 = arith.constant 128 : index
    %54 = vector.load %arg20[%c0_59, %c128_60] : memref<8x640xf32, #tpu.memory_space<vmem>>, vector<8x384xf32>
    %c32_61 = arith.constant 32 : index
    %c0_62 = arith.constant 0 : index
    %55 = vector.load %arg19[%c32_61, %c0_62] : memref<216x384xf32, #tpu.memory_space<vmem>>, vector<8x384xf32>
    tpu.vector_store %arg19[%c32_61, %c0_62], %54 {strides = array<i32>} : memref<216x384xf32, #tpu.memory_space<vmem>>, vector<8x384xf32>,
    %c0_63 = arith.constant 0 : index
    %c129_64 = arith.constant 129 : index
    %56 = vector.load %arg20[%c0_63, %c129_64] : memref<8x640xf32, #tpu.memory_space<vmem>>, vector<8x384xf32>
    %c40_65 = arith.constant 40 : index
    %c0_66 = arith.constant 0 : index
    %57 = vector.load %arg19[%c40_65, %c0_66] : memref<216x384xf32, #tpu.memory_space<vmem>>, vector<8x384xf32>
    tpu.vector_store %arg19[%c40_65, %c0_66], %56 {strides = array<i32>} : memref<216x384xf32, #tpu.memory_space<vmem>>, vector<8x384xf32>,
    %c0_67 = arith.constant 0 : index
    %c145_68 = arith.constant 145 : index
    %58 = vector.load %arg20[%c0_67, %c145_68] : memref<8x640xf32, #tpu.memory_space<vmem>>, vector<8x384xf32>
    %c48_69 = arith.constant 48 : index
    %c0_70 = arith.constant 0 : index
    %59 = vector.load %arg19[%c48_69, %c0_70] : memref<216x384xf32, #tpu.memory_space<vmem>>, vector<8x384xf32>
    tpu.vector_store %arg19[%c48_69, %c0_70], %58 {strides = array<i32>} : memref<216x384xf32, #tpu.memory_space<vmem>>, vector<8x384xf32>,
    %c0_71 = arith.constant 0 : index
    %c146_72 = arith.constant 146 : index
    %60 = vector.load %arg20[%c0_71, %c146_72] : memref<8x640xf32, #tpu.memory_space<vmem>>, vector<8x384xf32>
    %c56_73 = arith.constant 56 : index
    %c0_74 = arith.constant 0 : index
    %61 = vector.load %arg19[%c56_73, %c0_74] : memref<216x384xf32, #tpu.memory_space<vmem>>, vector<8x384xf32>
    tpu.vector_store %arg19[%c56_73, %c0_74], %60 {strides = array<i32>} : memref<216x384xf32, #tpu.memory_space<vmem>>, vector<8x384xf32>,
    %c0_75 = arith.constant 0 : index
    %c147_76 = arith.constant 147 : index
    %62 = vector.load %arg20[%c0_75, %c147_76] : memref<8x640xf32, #tpu.memory_space<vmem>>, vector<8x384xf32>
    %c64_77 = arith.constant 64 : index
    %c0_78 = arith.constant 0 : index
    %63 = vector.load %arg19[%c64_77, %c0_78] : memref<216x384xf32, #tpu.memory_space<vmem>>, vector<8x384xf32>
    tpu.vector_store %arg19[%c64_77, %c0_78], %62 {strides = array<i32>} : memref<216x384xf32, #tpu.memory_space<vmem>>, vector<8x384xf32>,
    %c0_79 = arith.constant 0 : index
    %c0_80 = arith.constant 0 : index
    %64 = vector.load %arg4[%c0_79, %c0_80] : memref<8x72xf32, #tpu.memory_space<vmem>>, vector<8x72xf32>
    %c0_81 = arith.constant 0 : index
    %c0_82 = arith.constant 0 : index
    %65 = vector.load %arg19[%c0_81, %c0_82] : memref<216x384xf32, #tpu.memory_space<vmem>>, vector<72x384xf32>
    %cst_83 = arith.constant dense<0.000000e+00> : vector<8x384xf32>
    %66 = tpu.matmul %64, %65, %cst_83 {dimension_numbers = #tpu.dot_dimension_numbers<[1], [0], [0], [1], [0, 0, 1, 1], [], []>} : vector<8x72xf32>, vector<72x384xf32>, vector<8x384xf32> -> vector<8x384xf32>
    %c0_84 = arith.constant 0 : index
    %c0_85 = arith.constant 0 : index
    %67 = vector.load %arg5[%c0_84, %c0_85] : memref<8x1xf32, #tpu.memory_space<vmem>>, vector<8x1xf32>
    %68 = vector.broadcast %67 : vector<8x1xf32> to vector<8x384xf32>
    %69 = arith.addf %66, %68 : vector<8x384xf32>
    %cst_86 = arith.constant 0.000000e+00 : f32
    %70 = vector.broadcast %cst_86 : f32 to vector<8x384xf32>
    %71 = arith.maximumf %69, %70 : vector<8x384xf32>
    %cst_87 = arith.constant 0.000000e+00 : f32
    %72 = vector.shape_cast %2 : vector<1x384xi1> to vector<1x384xi1>
    %73 = vector.broadcast %72 : vector<1x384xi1> to vector<8x384xi1>
    %74 = vector.broadcast %cst_87 : f32 to vector<8x384xf32>
    %75 = arith.select %73, %71, %74 : vector<8x384xi1>, vector<8x384xf32>
    %c0_88 = arith.constant 0 : index
    %c128_89 = arith.constant 128 : index
    %76 = vector.load %arg21[%c0_88, %c128_89] : memref<8x640xf32, #tpu.memory_space<vmem>>, vector<8x384xf32>
    tpu.vector_store %arg21[%c0_88, %c128_89], %75 {strides = array<i32>} : memref<8x640xf32, #tpu.memory_space<vmem>>, vector<8x384xf32>,
    %c0_90 = arith.constant 0 : index
    %c128_91 = arith.constant 128 : index
    %77 = vector.load %arg21[%c0_90, %c128_91] : memref<8x640xf32, #tpu.memory_space<vmem>>, vector<8x384xf32>
    %c0_92 = arith.constant 0 : index
    %c129_93 = arith.constant 129 : index
    %78 = vector.load %arg21[%c0_92, %c129_93] : memref<8x640xf32, #tpu.memory_space<vmem>>, vector<8x384xf32>
    %79 = arith.maximumf %77, %78 : vector<8x384xf32>
    %c0_94 = arith.constant 0 : index
    %c146_95 = arith.constant 146 : index
    %80 = vector.load %arg21[%c0_94, %c146_95] : memref<8x640xf32, #tpu.memory_space<vmem>>, vector<8x384xf32>
    %c0_96 = arith.constant 0 : index
    %c147_97 = arith.constant 147 : index
    %81 = vector.load %arg21[%c0_96, %c147_97] : memref<8x640xf32, #tpu.memory_space<vmem>>, vector<8x384xf32>
    %82 = arith.maximumf %80, %81 : vector<8x384xf32>
    %83 = arith.maximumf %79, %82 : vector<8x384xf32>
    %cst_98 = arith.constant 0.000000e+00 : f32
    %84 = vector.shape_cast %2 : vector<1x384xi1> to vector<1x384xi1>
    %85 = vector.broadcast %84 : vector<1x384xi1> to vector<8x384xi1>
    %86 = vector.broadcast %cst_98 : f32 to vector<8x384xf32>
    %87 = arith.select %85, %83, %86 : vector<8x384xi1>, vector<8x384xf32>
    %c0_99 = arith.constant 0 : index
    %c0_100 = arith.constant 0 : index
    %88 = vector.load %arg14[%c0_99, %c0_100] : memref<384x128xf32, #tpu.memory_space<vmem>>, vector<384x128xf32>
    %cst_101 = arith.constant dense<0.000000e+00> : vector<8x128xf32>
    %89 = tpu.matmul %87, %88, %cst_101 {dimension_numbers = #tpu.dot_dimension_numbers<[1], [0], [0], [1], [0, 0, 1, 1], [], []>} : vector<8x384xf32>, vector<384x128xf32>, vector<8x128xf32> -> vector<8x128xf32>
    %c0_102 = arith.constant 0 : index
    %c128_103 = arith.constant 128 : index
    %90 = vector.load %arg24[%c0_102, %c128_103] : memref<8x384xf32, #tpu.memory_space<vmem>>, vector<8x128xf32>
    tpu.vector_store %arg24[%c0_102, %c128_103], %89 {strides = array<i32>} : memref<8x384xf32, #tpu.memory_space<vmem>>, vector<8x128xf32>,
    %c0_104 = arith.constant 0 : index
    %c117 = arith.constant 117 : index
    %91 = vector.load %arg24[%c0_104, %c117] : memref<8x384xf32, #tpu.memory_space<vmem>>, vector<8x128xf32>
    %c0_105 = arith.constant 0 : index
    %c0_106 = arith.constant 0 : index
    %92 = vector.load %arg19[%c0_105, %c0_106] : memref<216x384xf32, #tpu.memory_space<vmem>>, vector<8x128xf32>
    tpu.vector_store %arg19[%c0_105, %c0_106], %91 {strides = array<i32>} : memref<216x384xf32, #tpu.memory_space<vmem>>, vector<8x128xf32>,
    %c0_107 = arith.constant 0 : index
    %c118 = arith.constant 118 : index
    %93 = vector.load %arg24[%c0_107, %c118] : memref<8x384xf32, #tpu.memory_space<vmem>>, vector<8x128xf32>
    %c8_108 = arith.constant 8 : index
    %c0_109 = arith.constant 0 : index
    %94 = vector.load %arg19[%c8_108, %c0_109] : memref<216x384xf32, #tpu.memory_space<vmem>>, vector<8x128xf32>
    tpu.vector_store %arg19[%c8_108, %c0_109], %93 {strides = array<i32>} : memref<216x384xf32, #tpu.memory_space<vmem>>, vector<8x128xf32>,
    %c0_110 = arith.constant 0 : index
    %c119 = arith.constant 119 : index
    %95 = vector.load %arg24[%c0_110, %c119] : memref<8x384xf32, #tpu.memory_space<vmem>>, vector<8x128xf32>
    %c16_111 = arith.constant 16 : index
    %c0_112 = arith.constant 0 : index
    %96 = vector.load %arg19[%c16_111, %c0_112] : memref<216x384xf32, #tpu.memory_space<vmem>>, vector<8x128xf32>
    tpu.vector_store %arg19[%c16_111, %c0_112], %95 {strides = array<i32>} : memref<216x384xf32, #tpu.memory_space<vmem>>, vector<8x128xf32>,
    %c0_113 = arith.constant 0 : index
    %c127_114 = arith.constant 127 : index
    %97 = vector.load %arg24[%c0_113, %c127_114] : memref<8x384xf32, #tpu.memory_space<vmem>>, vector<8x128xf32>
    %c24_115 = arith.constant 24 : index
    %c0_116 = arith.constant 0 : index
    %98 = vector.load %arg19[%c24_115, %c0_116] : memref<216x384xf32, #tpu.memory_space<vmem>>, vector<8x128xf32>
    tpu.vector_store %arg19[%c24_115, %c0_116], %97 {strides = array<i32>} : memref<216x384xf32, #tpu.memory_space<vmem>>, vector<8x128xf32>,
    %c0_117 = arith.constant 0 : index
    %c128_118 = arith.constant 128 : index
    %99 = vector.load %arg24[%c0_117, %c128_118] : memref<8x384xf32, #tpu.memory_space<vmem>>, vector<8x128xf32>
    %c32_119 = arith.constant 32 : index
    %c0_120 = arith.constant 0 : index
    %100 = vector.load %arg19[%c32_119, %c0_120] : memref<216x384xf32, #tpu.memory_space<vmem>>, vector<8x128xf32>
    tpu.vector_store %arg19[%c32_119, %c0_120], %99 {strides = array<i32>} : memref<216x384xf32, #tpu.memory_space<vmem>>, vector<8x128xf32>,
    %c0_121 = arith.constant 0 : index
    %c129_122 = arith.constant 129 : index
    %101 = vector.load %arg24[%c0_121, %c129_122] : memref<8x384xf32, #tpu.memory_space<vmem>>, vector<8x128xf32>
    %c40_123 = arith.constant 40 : index
    %c0_124 = arith.constant 0 : index
    %102 = vector.load %arg19[%c40_123, %c0_124] : memref<216x384xf32, #tpu.memory_space<vmem>>, vector<8x128xf32>
    tpu.vector_store %arg19[%c40_123, %c0_124], %101 {strides = array<i32>} : memref<216x384xf32, #tpu.memory_space<vmem>>, vector<8x128xf32>,
    %c0_125 = arith.constant 0 : index
    %c137 = arith.constant 137 : index
    %103 = vector.load %arg24[%c0_125, %c137] : memref<8x384xf32, #tpu.memory_space<vmem>>, vector<8x128xf32>
    %c48_126 = arith.constant 48 : index
    %c0_127 = arith.constant 0 : index
    %104 = vector.load %arg19[%c48_126, %c0_127] : memref<216x384xf32, #tpu.memory_space<vmem>>, vector<8x128xf32>
    tpu.vector_store %arg19[%c48_126, %c0_127], %103 {strides = array<i32>} : memref<216x384xf32, #tpu.memory_space<vmem>>, vector<8x128xf32>,
    %c0_128 = arith.constant 0 : index
    %c138 = arith.constant 138 : index
    %105 = vector.load %arg24[%c0_128, %c138] : memref<8x384xf32, #tpu.memory_space<vmem>>, vector<8x128xf32>
    %c56_129 = arith.constant 56 : index
    %c0_130 = arith.constant 0 : index
    %106 = vector.load %arg19[%c56_129, %c0_130] : memref<216x384xf32, #tpu.memory_space<vmem>>, vector<8x128xf32>
    tpu.vector_store %arg19[%c56_129, %c0_130], %105 {strides = array<i32>} : memref<216x384xf32, #tpu.memory_space<vmem>>, vector<8x128xf32>,
    %c0_131 = arith.constant 0 : index
    %c139 = arith.constant 139 : index
    %107 = vector.load %arg24[%c0_131, %c139] : memref<8x384xf32, #tpu.memory_space<vmem>>, vector<8x128xf32>
    %c64_132 = arith.constant 64 : index
    %c0_133 = arith.constant 0 : index
    %108 = vector.load %arg19[%c64_132, %c0_133] : memref<216x384xf32, #tpu.memory_space<vmem>>, vector<8x128xf32>
    tpu.vector_store %arg19[%c64_132, %c0_133], %107 {strides = array<i32>} : memref<216x384xf32, #tpu.memory_space<vmem>>, vector<8x128xf32>,
    %c0_134 = arith.constant 0 : index
    %c0_135 = arith.constant 0 : index
    %109 = vector.load %arg6[%c0_134, %c0_135] : memref<16x72xf32, #tpu.memory_space<vmem>>, vector<16x72xf32>
    %c0_136 = arith.constant 0 : index
    %c0_137 = arith.constant 0 : index
    %110 = vector.load %arg19[%c0_136, %c0_137] : memref<216x384xf32, #tpu.memory_space<vmem>>, vector<72x128xf32>
    %cst_138 = arith.constant dense<0.000000e+00> : vector<16x128xf32>
    %111 = tpu.matmul %109, %110, %cst_138 {dimension_numbers = #tpu.dot_dimension_numbers<[1], [0], [0], [1], [0, 0, 1, 1], [], []>} : vector<16x72xf32>, vector<72x128xf32>, vector<16x128xf32> -> vector<16x128xf32>
    %c0_139 = arith.constant 0 : index
    %c0_140 = arith.constant 0 : index
    %112 = vector.load %arg7[%c0_139, %c0_140] : memref<16x1xf32, #tpu.memory_space<vmem>>, vector<16x1xf32>
    %113 = vector.broadcast %112 : vector<16x1xf32> to vector<16x128xf32>
    %114 = arith.addf %111, %113 : vector<16x128xf32>
    %cst_141 = arith.constant 0.000000e+00 : f32
    %115 = vector.broadcast %cst_141 : f32 to vector<16x128xf32>
    %116 = arith.maximumf %114, %115 : vector<16x128xf32>
    %cst_142 = arith.constant 0.000000e+00 : f32
    %117 = vector.shape_cast %5 : vector<1x128xi1> to vector<1x128xi1>
    %118 = vector.broadcast %117 : vector<1x128xi1> to vector<16x128xi1>
    %119 = vector.broadcast %cst_142 : f32 to vector<16x128xf32>
    %120 = arith.select %118, %116, %119 : vector<16x128xi1>, vector<16x128xf32>
    %c0_143 = arith.constant 0 : index
    %c128_144 = arith.constant 128 : index
    %121 = vector.load %arg25[%c0_143, %c128_144] : memref<16x384xf32, #tpu.memory_space<vmem>>, vector<16x128xf32>
    tpu.vector_store %arg25[%c0_143, %c128_144], %120 {strides = array<i32>} : memref<16x384xf32, #tpu.memory_space<vmem>>, vector<16x128xf32>,
    %c0_145 = arith.constant 0 : index
    %c117_146 = arith.constant 117 : index
    %122 = vector.load %arg25[%c0_145, %c117_146] : memref<16x384xf32, #tpu.memory_space<vmem>>, vector<16x128xf32>
    %c0_147 = arith.constant 0 : index
    %c0_148 = arith.constant 0 : index
    %123 = vector.load %arg19[%c0_147, %c0_148] : memref<216x384xf32, #tpu.memory_space<vmem>>, vector<16x128xf32>
    tpu.vector_store %arg19[%c0_147, %c0_148], %122 {strides = array<i32>} : memref<216x384xf32, #tpu.memory_space<vmem>>, vector<16x128xf32>,
    %c0_149 = arith.constant 0 : index
    %c118_150 = arith.constant 118 : index
    %124 = vector.load %arg25[%c0_149, %c118_150] : memref<16x384xf32, #tpu.memory_space<vmem>>, vector<16x128xf32>
    %c16_151 = arith.constant 16 : index
    %c0_152 = arith.constant 0 : index
    %125 = vector.load %arg19[%c16_151, %c0_152] : memref<216x384xf32, #tpu.memory_space<vmem>>, vector<16x128xf32>
    tpu.vector_store %arg19[%c16_151, %c0_152], %124 {strides = array<i32>} : memref<216x384xf32, #tpu.memory_space<vmem>>, vector<16x128xf32>,
    %c0_153 = arith.constant 0 : index
    %c119_154 = arith.constant 119 : index
    %126 = vector.load %arg25[%c0_153, %c119_154] : memref<16x384xf32, #tpu.memory_space<vmem>>, vector<16x128xf32>
    %c32_155 = arith.constant 32 : index
    %c0_156 = arith.constant 0 : index
    %127 = vector.load %arg19[%c32_155, %c0_156] : memref<216x384xf32, #tpu.memory_space<vmem>>, vector<16x128xf32>
    tpu.vector_store %arg19[%c32_155, %c0_156], %126 {strides = array<i32>} : memref<216x384xf32, #tpu.memory_space<vmem>>, vector<16x128xf32>,
    %c0_157 = arith.constant 0 : index
    %c127_158 = arith.constant 127 : index
    %128 = vector.load %arg25[%c0_157, %c127_158] : memref<16x384xf32, #tpu.memory_space<vmem>>, vector<16x128xf32>
    %c48_159 = arith.constant 48 : index
    %c0_160 = arith.constant 0 : index
    %129 = vector.load %arg19[%c48_159, %c0_160] : memref<216x384xf32, #tpu.memory_space<vmem>>, vector<16x128xf32>
    tpu.vector_store %arg19[%c48_159, %c0_160], %128 {strides = array<i32>} : memref<216x384xf32, #tpu.memory_space<vmem>>, vector<16x128xf32>,
    %c0_161 = arith.constant 0 : index
    %c128_162 = arith.constant 128 : index
    %130 = vector.load %arg25[%c0_161, %c128_162] : memref<16x384xf32, #tpu.memory_space<vmem>>, vector<16x128xf32>
    %c64_163 = arith.constant 64 : index
    %c0_164 = arith.constant 0 : index
    %131 = vector.load %arg19[%c64_163, %c0_164] : memref<216x384xf32, #tpu.memory_space<vmem>>, vector<16x128xf32>
    tpu.vector_store %arg19[%c64_163, %c0_164], %130 {strides = array<i32>} : memref<216x384xf32, #tpu.memory_space<vmem>>, vector<16x128xf32>,
    %c0_165 = arith.constant 0 : index
    %c129_166 = arith.constant 129 : index
    %132 = vector.load %arg25[%c0_165, %c129_166] : memref<16x384xf32, #tpu.memory_space<vmem>>, vector<16x128xf32>
    %c80 = arith.constant 80 : index
    %c0_167 = arith.constant 0 : index
    %133 = vector.load %arg19[%c80, %c0_167] : memref<216x384xf32, #tpu.memory_space<vmem>>, vector<16x128xf32>
    tpu.vector_store %arg19[%c80, %c0_167], %132 {strides = array<i32>} : memref<216x384xf32, #tpu.memory_space<vmem>>, vector<16x128xf32>,
    %c0_168 = arith.constant 0 : index
    %c137_169 = arith.constant 137 : index
    %134 = vector.load %arg25[%c0_168, %c137_169] : memref<16x384xf32, #tpu.memory_space<vmem>>, vector<16x128xf32>
    %c96 = arith.constant 96 : index
    %c0_170 = arith.constant 0 : index
    %135 = vector.load %arg19[%c96, %c0_170] : memref<216x384xf32, #tpu.memory_space<vmem>>, vector<16x128xf32>
    tpu.vector_store %arg19[%c96, %c0_170], %134 {strides = array<i32>} : memref<216x384xf32, #tpu.memory_space<vmem>>, vector<16x128xf32>,
    %c0_171 = arith.constant 0 : index
    %c138_172 = arith.constant 138 : index
    %136 = vector.load %arg25[%c0_171, %c138_172] : memref<16x384xf32, #tpu.memory_space<vmem>>, vector<16x128xf32>
    %c112 = arith.constant 112 : index
    %c0_173 = arith.constant 0 : index
    %137 = vector.load %arg19[%c112, %c0_173] : memref<216x384xf32, #tpu.memory_space<vmem>>, vector<16x128xf32>
    tpu.vector_store %arg19[%c112, %c0_173], %136 {strides = array<i32>} : memref<216x384xf32, #tpu.memory_space<vmem>>, vector<16x128xf32>,
    %c0_174 = arith.constant 0 : index
    %c139_175 = arith.constant 139 : index
    %138 = vector.load %arg25[%c0_174, %c139_175] : memref<16x384xf32, #tpu.memory_space<vmem>>, vector<16x128xf32>
    %c128_176 = arith.constant 128 : index
    %c0_177 = arith.constant 0 : index
    %139 = vector.load %arg19[%c128_176, %c0_177] : memref<216x384xf32, #tpu.memory_space<vmem>>, vector<16x128xf32>
    tpu.vector_store %arg19[%c128_176, %c0_177], %138 {strides = array<i32>} : memref<216x384xf32, #tpu.memory_space<vmem>>, vector<16x128xf32>,
    %c0_178 = arith.constant 0 : index
    %c0_179 = arith.constant 0 : index
    %140 = vector.load %arg8[%c0_178, %c0_179] : memref<16x144xf32, #tpu.memory_space<vmem>>, vector<16x144xf32>
    %c0_180 = arith.constant 0 : index
    %c0_181 = arith.constant 0 : index
    %141 = vector.load %arg19[%c0_180, %c0_181] : memref<216x384xf32, #tpu.memory_space<vmem>>, vector<144x128xf32>
    %cst_182 = arith.constant dense<0.000000e+00> : vector<16x128xf32>
    %142 = tpu.matmul %140, %141, %cst_182 {dimension_numbers = #tpu.dot_dimension_numbers<[1], [0], [0], [1], [0, 0, 1, 1], [], []>} : vector<16x144xf32>, vector<144x128xf32>, vector<16x128xf32> -> vector<16x128xf32>
    %c0_183 = arith.constant 0 : index
    %c0_184 = arith.constant 0 : index
    %143 = vector.load %arg9[%c0_183, %c0_184] : memref<16x1xf32, #tpu.memory_space<vmem>>, vector<16x1xf32>
    %144 = vector.broadcast %143 : vector<16x1xf32> to vector<16x128xf32>
    %145 = arith.addf %142, %144 : vector<16x128xf32>
    %cst_185 = arith.constant 0.000000e+00 : f32
    %146 = vector.broadcast %cst_185 : f32 to vector<16x128xf32>
    %147 = arith.maximumf %145, %146 : vector<16x128xf32>
    %cst_186 = arith.constant 0.000000e+00 : f32
    %148 = vector.shape_cast %5 : vector<1x128xi1> to vector<1x128xi1>
    %149 = vector.broadcast %148 : vector<1x128xi1> to vector<16x128xi1>
    %150 = vector.broadcast %cst_186 : f32 to vector<16x128xf32>
    %151 = arith.select %149, %147, %150 : vector<16x128xi1>, vector<16x128xf32>
    %c0_187 = arith.constant 0 : index
    %c128_188 = arith.constant 128 : index
    %152 = vector.load %arg26[%c0_187, %c128_188] : memref<16x384xf32, #tpu.memory_space<vmem>>, vector<16x128xf32>
    tpu.vector_store %arg26[%c0_187, %c128_188], %151 {strides = array<i32>} : memref<16x384xf32, #tpu.memory_space<vmem>>, vector<16x128xf32>,
    %c0_189 = arith.constant 0 : index
    %c128_190 = arith.constant 128 : index
    %153 = vector.load %arg26[%c0_189, %c128_190] : memref<16x384xf32, #tpu.memory_space<vmem>>, vector<16x128xf32>
    %c0_191 = arith.constant 0 : index
    %c0_192 = arith.constant 0 : index
    %154 = vector.load %arg15[%c0_191, %c0_192] : memref<128x384xf32, #tpu.memory_space<vmem>>, vector<128x384xf32>
    %cst_193 = arith.constant dense<0.000000e+00> : vector<16x384xf32>
    %155 = tpu.matmul %153, %154, %cst_193 {dimension_numbers = #tpu.dot_dimension_numbers<[1], [0], [0], [1], [0, 0, 1, 1], [], []>} : vector<16x128xf32>, vector<128x384xf32>, vector<16x384xf32> -> vector<16x384xf32>
    %c0_194 = arith.constant 0 : index
    %c128_195 = arith.constant 128 : index
    %156 = vector.load %arg22[%c0_194, %c128_195] : memref<16x640xf32, #tpu.memory_space<vmem>>, vector<16x384xf32>
    tpu.vector_store %arg22[%c0_194, %c128_195], %155 {strides = array<i32>} : memref<16x640xf32, #tpu.memory_space<vmem>>, vector<16x384xf32>,
    %c0_196 = arith.constant 0 : index
    %c109_197 = arith.constant 109 : index
    %157 = vector.load %arg22[%c0_196, %c109_197] : memref<16x640xf32, #tpu.memory_space<vmem>>, vector<16x384xf32>
    %c0_198 = arith.constant 0 : index
    %c0_199 = arith.constant 0 : index
    %158 = vector.load %arg19[%c0_198, %c0_199] : memref<216x384xf32, #tpu.memory_space<vmem>>, vector<16x384xf32>
    tpu.vector_store %arg19[%c0_198, %c0_199], %157 {strides = array<i32>} : memref<216x384xf32, #tpu.memory_space<vmem>>, vector<16x384xf32>,
    %c0_200 = arith.constant 0 : index
    %c110_201 = arith.constant 110 : index
    %159 = vector.load %arg22[%c0_200, %c110_201] : memref<16x640xf32, #tpu.memory_space<vmem>>, vector<16x384xf32>
    %c16_202 = arith.constant 16 : index
    %c0_203 = arith.constant 0 : index
    %160 = vector.load %arg19[%c16_202, %c0_203] : memref<216x384xf32, #tpu.memory_space<vmem>>, vector<16x384xf32>
    tpu.vector_store %arg19[%c16_202, %c0_203], %159 {strides = array<i32>} : memref<216x384xf32, #tpu.memory_space<vmem>>, vector<16x384xf32>,
    %c0_204 = arith.constant 0 : index
    %c111_205 = arith.constant 111 : index
    %161 = vector.load %arg22[%c0_204, %c111_205] : memref<16x640xf32, #tpu.memory_space<vmem>>, vector<16x384xf32>
    %c32_206 = arith.constant 32 : index
    %c0_207 = arith.constant 0 : index
    %162 = vector.load %arg19[%c32_206, %c0_207] : memref<216x384xf32, #tpu.memory_space<vmem>>, vector<16x384xf32>
    tpu.vector_store %arg19[%c32_206, %c0_207], %161 {strides = array<i32>} : memref<216x384xf32, #tpu.memory_space<vmem>>, vector<16x384xf32>,
    %c0_208 = arith.constant 0 : index
    %c127_209 = arith.constant 127 : index
    %163 = vector.load %arg22[%c0_208, %c127_209] : memref<16x640xf32, #tpu.memory_space<vmem>>, vector<16x384xf32>
    %c48_210 = arith.constant 48 : index
    %c0_211 = arith.constant 0 : index
    %164 = vector.load %arg19[%c48_210, %c0_211] : memref<216x384xf32, #tpu.memory_space<vmem>>, vector<16x384xf32>
    tpu.vector_store %arg19[%c48_210, %c0_211], %163 {strides = array<i32>} : memref<216x384xf32, #tpu.memory_space<vmem>>, vector<16x384xf32>,
    %c0_212 = arith.constant 0 : index
    %c128_213 = arith.constant 128 : index
    %165 = vector.load %arg22[%c0_212, %c128_213] : memref<16x640xf32, #tpu.memory_space<vmem>>, vector<16x384xf32>
    %c64_214 = arith.constant 64 : index
    %c0_215 = arith.constant 0 : index
    %166 = vector.load %arg19[%c64_214, %c0_215] : memref<216x384xf32, #tpu.memory_space<vmem>>, vector<16x384xf32>
    tpu.vector_store %arg19[%c64_214, %c0_215], %165 {strides = array<i32>} : memref<216x384xf32, #tpu.memory_space<vmem>>, vector<16x384xf32>,
    %c0_216 = arith.constant 0 : index
    %c129_217 = arith.constant 129 : index
    %167 = vector.load %arg22[%c0_216, %c129_217] : memref<16x640xf32, #tpu.memory_space<vmem>>, vector<16x384xf32>
    %c80_218 = arith.constant 80 : index
    %c0_219 = arith.constant 0 : index
    %168 = vector.load %arg19[%c80_218, %c0_219] : memref<216x384xf32, #tpu.memory_space<vmem>>, vector<16x384xf32>
    tpu.vector_store %arg19[%c80_218, %c0_219], %167 {strides = array<i32>} : memref<216x384xf32, #tpu.memory_space<vmem>>, vector<16x384xf32>,
    %c0_220 = arith.constant 0 : index
    %c145_221 = arith.constant 145 : index
    %169 = vector.load %arg22[%c0_220, %c145_221] : memref<16x640xf32, #tpu.memory_space<vmem>>, vector<16x384xf32>
    %c96_222 = arith.constant 96 : index
    %c0_223 = arith.constant 0 : index
    %170 = vector.load %arg19[%c96_222, %c0_223] : memref<216x384xf32, #tpu.memory_space<vmem>>, vector<16x384xf32>
    tpu.vector_store %arg19[%c96_222, %c0_223], %169 {strides = array<i32>} : memref<216x384xf32, #tpu.memory_space<vmem>>, vector<16x384xf32>,
    %c0_224 = arith.constant 0 : index
    %c146_225 = arith.constant 146 : index
    %171 = vector.load %arg22[%c0_224, %c146_225] : memref<16x640xf32, #tpu.memory_space<vmem>>, vector<16x384xf32>
    %c112_226 = arith.constant 112 : index
    %c0_227 = arith.constant 0 : index
    %172 = vector.load %arg19[%c112_226, %c0_227] : memref<216x384xf32, #tpu.memory_space<vmem>>, vector<16x384xf32>
    tpu.vector_store %arg19[%c112_226, %c0_227], %171 {strides = array<i32>} : memref<216x384xf32, #tpu.memory_space<vmem>>, vector<16x384xf32>,
    %c0_228 = arith.constant 0 : index
    %c147_229 = arith.constant 147 : index
    %173 = vector.load %arg22[%c0_228, %c147_229] : memref<16x640xf32, #tpu.memory_space<vmem>>, vector<16x384xf32>
    %c128_230 = arith.constant 128 : index
    %c0_231 = arith.constant 0 : index
    %174 = vector.load %arg19[%c128_230, %c0_231] : memref<216x384xf32, #tpu.memory_space<vmem>>, vector<16x384xf32>
    tpu.vector_store %arg19[%c128_230, %c0_231], %173 {strides = array<i32>} : memref<216x384xf32, #tpu.memory_space<vmem>>, vector<16x384xf32>,
    %c0_232 = arith.constant 0 : index
    %c109_233 = arith.constant 109 : index
    %175 = vector.load %arg21[%c0_232, %c109_233] : memref<8x640xf32, #tpu.memory_space<vmem>>, vector<8x384xf32>
    %c144 = arith.constant 144 : index
    %c0_234 = arith.constant 0 : index
    %176 = vector.load %arg19[%c144, %c0_234] : memref<216x384xf32, #tpu.memory_space<vmem>>, vector<8x384xf32>
    tpu.vector_store %arg19[%c144, %c0_234], %175 {strides = array<i32>} : memref<216x384xf32, #tpu.memory_space<vmem>>, vector<8x384xf32>,
    %c0_235 = arith.constant 0 : index
    %c110_236 = arith.constant 110 : index
    %177 = vector.load %arg21[%c0_235, %c110_236] : memref<8x640xf32, #tpu.memory_space<vmem>>, vector<8x384xf32>
    %c152 = arith.constant 152 : index
    %c0_237 = arith.constant 0 : index
    %178 = vector.load %arg19[%c152, %c0_237] : memref<216x384xf32, #tpu.memory_space<vmem>>, vector<8x384xf32>
    tpu.vector_store %arg19[%c152, %c0_237], %177 {strides = array<i32>} : memref<216x384xf32, #tpu.memory_space<vmem>>, vector<8x384xf32>,
    %c0_238 = arith.constant 0 : index
    %c111_239 = arith.constant 111 : index
    %179 = vector.load %arg21[%c0_238, %c111_239] : memref<8x640xf32, #tpu.memory_space<vmem>>, vector<8x384xf32>
    %c160 = arith.constant 160 : index
    %c0_240 = arith.constant 0 : index
    %180 = vector.load %arg19[%c160, %c0_240] : memref<216x384xf32, #tpu.memory_space<vmem>>, vector<8x384xf32>
    tpu.vector_store %arg19[%c160, %c0_240], %179 {strides = array<i32>} : memref<216x384xf32, #tpu.memory_space<vmem>>, vector<8x384xf32>,
    %c0_241 = arith.constant 0 : index
    %c127_242 = arith.constant 127 : index
    %181 = vector.load %arg21[%c0_241, %c127_242] : memref<8x640xf32, #tpu.memory_space<vmem>>, vector<8x384xf32>
    %c168 = arith.constant 168 : index
    %c0_243 = arith.constant 0 : index
    %182 = vector.load %arg19[%c168, %c0_243] : memref<216x384xf32, #tpu.memory_space<vmem>>, vector<8x384xf32>
    tpu.vector_store %arg19[%c168, %c0_243], %181 {strides = array<i32>} : memref<216x384xf32, #tpu.memory_space<vmem>>, vector<8x384xf32>,
    %c0_244 = arith.constant 0 : index
    %c128_245 = arith.constant 128 : index
    %183 = vector.load %arg21[%c0_244, %c128_245] : memref<8x640xf32, #tpu.memory_space<vmem>>, vector<8x384xf32>
    %c176 = arith.constant 176 : index
    %c0_246 = arith.constant 0 : index
    %184 = vector.load %arg19[%c176, %c0_246] : memref<216x384xf32, #tpu.memory_space<vmem>>, vector<8x384xf32>
    tpu.vector_store %arg19[%c176, %c0_246], %183 {strides = array<i32>} : memref<216x384xf32, #tpu.memory_space<vmem>>, vector<8x384xf32>,
    %c0_247 = arith.constant 0 : index
    %c129_248 = arith.constant 129 : index
    %185 = vector.load %arg21[%c0_247, %c129_248] : memref<8x640xf32, #tpu.memory_space<vmem>>, vector<8x384xf32>
    %c184 = arith.constant 184 : index
    %c0_249 = arith.constant 0 : index
    %186 = vector.load %arg19[%c184, %c0_249] : memref<216x384xf32, #tpu.memory_space<vmem>>, vector<8x384xf32>
    tpu.vector_store %arg19[%c184, %c0_249], %185 {strides = array<i32>} : memref<216x384xf32, #tpu.memory_space<vmem>>, vector<8x384xf32>,
    %c0_250 = arith.constant 0 : index
    %c145_251 = arith.constant 145 : index
    %187 = vector.load %arg21[%c0_250, %c145_251] : memref<8x640xf32, #tpu.memory_space<vmem>>, vector<8x384xf32>
    %c192 = arith.constant 192 : index
    %c0_252 = arith.constant 0 : index
    %188 = vector.load %arg19[%c192, %c0_252] : memref<216x384xf32, #tpu.memory_space<vmem>>, vector<8x384xf32>
    tpu.vector_store %arg19[%c192, %c0_252], %187 {strides = array<i32>} : memref<216x384xf32, #tpu.memory_space<vmem>>, vector<8x384xf32>,
    %c0_253 = arith.constant 0 : index
    %c146_254 = arith.constant 146 : index
    %189 = vector.load %arg21[%c0_253, %c146_254] : memref<8x640xf32, #tpu.memory_space<vmem>>, vector<8x384xf32>
    %c200 = arith.constant 200 : index
    %c0_255 = arith.constant 0 : index
    %190 = vector.load %arg19[%c200, %c0_255] : memref<216x384xf32, #tpu.memory_space<vmem>>, vector<8x384xf32>
    tpu.vector_store %arg19[%c200, %c0_255], %189 {strides = array<i32>} : memref<216x384xf32, #tpu.memory_space<vmem>>, vector<8x384xf32>,
    %c0_256 = arith.constant 0 : index
    %c147_257 = arith.constant 147 : index
    %191 = vector.load %arg21[%c0_256, %c147_257] : memref<8x640xf32, #tpu.memory_space<vmem>>, vector<8x384xf32>
    %c208 = arith.constant 208 : index
    %c0_258 = arith.constant 0 : index
    %192 = vector.load %arg19[%c208, %c0_258] : memref<216x384xf32, #tpu.memory_space<vmem>>, vector<8x384xf32>
    tpu.vector_store %arg19[%c208, %c0_258], %191 {strides = array<i32>} : memref<216x384xf32, #tpu.memory_space<vmem>>, vector<8x384xf32>,
    %c0_259 = arith.constant 0 : index
    %c0_260 = arith.constant 0 : index
    %193 = vector.load %arg10[%c0_259, %c0_260] : memref<8x216xf32, #tpu.memory_space<vmem>>, vector<8x216xf32>
    %c0_261 = arith.constant 0 : index
    %c0_262 = arith.constant 0 : index
    %194 = vector.load %arg19[%c0_261, %c0_262] : memref<216x384xf32, #tpu.memory_space<vmem>>, vector<216x384xf32>
    %cst_263 = arith.constant dense<0.000000e+00> : vector<8x384xf32>
    %195 = tpu.matmul %193, %194, %cst_263 {dimension_numbers = #tpu.dot_dimension_numbers<[1], [0], [0], [1], [0, 0, 1, 1], [], []>} : vector<8x216xf32>, vector<216x384xf32>, vector<8x384xf32> -> vector<8x384xf32>
    %c0_264 = arith.constant 0 : index
    %c0_265 = arith.constant 0 : index
    %196 = vector.load %arg11[%c0_264, %c0_265] : memref<8x1xf32, #tpu.memory_space<vmem>>, vector<8x1xf32>
    %197 = vector.broadcast %196 : vector<8x1xf32> to vector<8x384xf32>
    %198 = arith.addf %195, %197 : vector<8x384xf32>
    %cst_266 = arith.constant 0.000000e+00 : f32
    %199 = vector.broadcast %cst_266 : f32 to vector<8x384xf32>
    %200 = arith.maximumf %198, %199 : vector<8x384xf32>
    %cst_267 = arith.constant 0.000000e+00 : f32
    %201 = vector.shape_cast %2 : vector<1x384xi1> to vector<1x384xi1>
    %202 = vector.broadcast %201 : vector<1x384xi1> to vector<8x384xi1>
    %203 = vector.broadcast %cst_267 : f32 to vector<8x384xf32>
    %204 = arith.select %202, %200, %203 : vector<8x384xi1>, vector<8x384xf32>
    %c0_268 = arith.constant 0 : index
    %c128_269 = arith.constant 128 : index
    %205 = vector.load %arg23[%c0_268, %c128_269] : memref<8x640xf32, #tpu.memory_space<vmem>>, vector<8x384xf32>
    tpu.vector_store %arg23[%c0_268, %c128_269], %204 {strides = array<i32>} : memref<8x640xf32, #tpu.memory_space<vmem>>, vector<8x384xf32>,
    %c0_270 = arith.constant 0 : index
    %c109_271 = arith.constant 109 : index
    %206 = vector.load %arg23[%c0_270, %c109_271] : memref<8x640xf32, #tpu.memory_space<vmem>>, vector<8x384xf32>
    %c0_272 = arith.constant 0 : index
    %c0_273 = arith.constant 0 : index
    %207 = vector.load %arg19[%c0_272, %c0_273] : memref<216x384xf32, #tpu.memory_space<vmem>>, vector<8x384xf32>
    tpu.vector_store %arg19[%c0_272, %c0_273], %206 {strides = array<i32>} : memref<216x384xf32, #tpu.memory_space<vmem>>, vector<8x384xf32>,
    %c0_274 = arith.constant 0 : index
    %c110_275 = arith.constant 110 : index
    %208 = vector.load %arg23[%c0_274, %c110_275] : memref<8x640xf32, #tpu.memory_space<vmem>>, vector<8x384xf32>
    %c8_276 = arith.constant 8 : index
    %c0_277 = arith.constant 0 : index
    %209 = vector.load %arg19[%c8_276, %c0_277] : memref<216x384xf32, #tpu.memory_space<vmem>>, vector<8x384xf32>
    tpu.vector_store %arg19[%c8_276, %c0_277], %208 {strides = array<i32>} : memref<216x384xf32, #tpu.memory_space<vmem>>, vector<8x384xf32>,
    %c0_278 = arith.constant 0 : index
    %c111_279 = arith.constant 111 : index
    %210 = vector.load %arg23[%c0_278, %c111_279] : memref<8x640xf32, #tpu.memory_space<vmem>>, vector<8x384xf32>
    %c16_280 = arith.constant 16 : index
    %c0_281 = arith.constant 0 : index
    %211 = vector.load %arg19[%c16_280, %c0_281] : memref<216x384xf32, #tpu.memory_space<vmem>>, vector<8x384xf32>
    tpu.vector_store %arg19[%c16_280, %c0_281], %210 {strides = array<i32>} : memref<216x384xf32, #tpu.memory_space<vmem>>, vector<8x384xf32>,
    %c0_282 = arith.constant 0 : index
    %c127_283 = arith.constant 127 : index
    %212 = vector.load %arg23[%c0_282, %c127_283] : memref<8x640xf32, #tpu.memory_space<vmem>>, vector<8x384xf32>
    %c24_284 = arith.constant 24 : index
    %c0_285 = arith.constant 0 : index
    %213 = vector.load %arg19[%c24_284, %c0_285] : memref<216x384xf32, #tpu.memory_space<vmem>>, vector<8x384xf32>
    tpu.vector_store %arg19[%c24_284, %c0_285], %212 {strides = array<i32>} : memref<216x384xf32, #tpu.memory_space<vmem>>, vector<8x384xf32>,
    %c0_286 = arith.constant 0 : index
    %c128_287 = arith.constant 128 : index
    %214 = vector.load %arg23[%c0_286, %c128_287] : memref<8x640xf32, #tpu.memory_space<vmem>>, vector<8x384xf32>
    %c32_288 = arith.constant 32 : index
    %c0_289 = arith.constant 0 : index
    %215 = vector.load %arg19[%c32_288, %c0_289] : memref<216x384xf32, #tpu.memory_space<vmem>>, vector<8x384xf32>
    tpu.vector_store %arg19[%c32_288, %c0_289], %214 {strides = array<i32>} : memref<216x384xf32, #tpu.memory_space<vmem>>, vector<8x384xf32>,
    %c0_290 = arith.constant 0 : index
    %c129_291 = arith.constant 129 : index
    %216 = vector.load %arg23[%c0_290, %c129_291] : memref<8x640xf32, #tpu.memory_space<vmem>>, vector<8x384xf32>
    %c40_292 = arith.constant 40 : index
    %c0_293 = arith.constant 0 : index
    %217 = vector.load %arg19[%c40_292, %c0_293] : memref<216x384xf32, #tpu.memory_space<vmem>>, vector<8x384xf32>
    tpu.vector_store %arg19[%c40_292, %c0_293], %216 {strides = array<i32>} : memref<216x384xf32, #tpu.memory_space<vmem>>, vector<8x384xf32>,
    %c0_294 = arith.constant 0 : index
    %c145_295 = arith.constant 145 : index
    %218 = vector.load %arg23[%c0_294, %c145_295] : memref<8x640xf32, #tpu.memory_space<vmem>>, vector<8x384xf32>
    %c48_296 = arith.constant 48 : index
    %c0_297 = arith.constant 0 : index
    %219 = vector.load %arg19[%c48_296, %c0_297] : memref<216x384xf32, #tpu.memory_space<vmem>>, vector<8x384xf32>
    tpu.vector_store %arg19[%c48_296, %c0_297], %218 {strides = array<i32>} : memref<216x384xf32, #tpu.memory_space<vmem>>, vector<8x384xf32>,
    %c0_298 = arith.constant 0 : index
    %c146_299 = arith.constant 146 : index
    %220 = vector.load %arg23[%c0_298, %c146_299] : memref<8x640xf32, #tpu.memory_space<vmem>>, vector<8x384xf32>
    %c56_300 = arith.constant 56 : index
    %c0_301 = arith.constant 0 : index
    %221 = vector.load %arg19[%c56_300, %c0_301] : memref<216x384xf32, #tpu.memory_space<vmem>>, vector<8x384xf32>
    tpu.vector_store %arg19[%c56_300, %c0_301], %220 {strides = array<i32>} : memref<216x384xf32, #tpu.memory_space<vmem>>, vector<8x384xf32>,
    %c0_302 = arith.constant 0 : index
    %c147_303 = arith.constant 147 : index
    %222 = vector.load %arg23[%c0_302, %c147_303] : memref<8x640xf32, #tpu.memory_space<vmem>>, vector<8x384xf32>
    %c64_304 = arith.constant 64 : index
    %c0_305 = arith.constant 0 : index
    %223 = vector.load %arg19[%c64_304, %c0_305] : memref<216x384xf32, #tpu.memory_space<vmem>>, vector<8x384xf32>
    tpu.vector_store %arg19[%c64_304, %c0_305], %222 {strides = array<i32>} : memref<216x384xf32, #tpu.memory_space<vmem>>, vector<8x384xf32>,
    %c0_306 = arith.constant 0 : index
    %c0_307 = arith.constant 0 : index
    %224 = vector.load %arg12[%c0_306, %c0_307] : memref<4x72xf32, #tpu.memory_space<vmem>>, vector<4x72xf32>
    %c0_308 = arith.constant 0 : index
    %c0_309 = arith.constant 0 : index
    %225 = vector.load %arg19[%c0_308, %c0_309] : memref<216x384xf32, #tpu.memory_space<vmem>>, vector<72x384xf32>
    %cst_310 = arith.constant dense<0.000000e+00> : vector<4x384xf32>
    %226 = tpu.matmul %224, %225, %cst_310 {dimension_numbers = #tpu.dot_dimension_numbers<[1], [0], [0], [1], [0, 0, 1, 1], [], []>} : vector<4x72xf32>, vector<72x384xf32>, vector<4x384xf32> -> vector<4x384xf32>
    %c0_311 = arith.constant 0 : index
    %c0_312 = arith.constant 0 : index
    %227 = vector.load %arg13[%c0_311, %c0_312] : memref<4x1xf32, #tpu.memory_space<vmem>>, vector<4x1xf32>
    %228 = vector.broadcast %227 : vector<4x1xf32> to vector<4x384xf32>
    %229 = arith.addf %226, %228 : vector<4x384xf32>
    %cst_313 = arith.constant 0.000000e+00 : f32
    %230 = vector.shape_cast %2 : vector<1x384xi1> to vector<1x384xi1>
    %231 = vector.broadcast %230 : vector<1x384xi1> to vector<4x384xi1>
    %232 = vector.broadcast %cst_313 : f32 to vector<4x384xf32>
    %233 = arith.select %231, %229, %232 : vector<4x384xi1>, vector<4x384xf32>
    %c0_314 = arith.constant 0 : index
    %c0_315 = arith.constant 0 : index
    %c128_316 = arith.constant 128 : index
    %234 = vector.load %arg1[%c0_314, %c0_315, %c128_316] : memref<1x8x640xf32, #tpu.memory_space<vmem>>, vector<1x4x384xf32>
    %235 = vector.shape_cast %234 : vector<1x4x384xf32> to vector<4x384xf32>
    %236 = arith.addf %233, %235 : vector<4x384xf32>
    %c0_317 = arith.constant 0 : index
    %c0_318 = arith.constant 0 : index
    %c0_319 = arith.constant 0 : index
    %237 = vector.load %arg18[%c0_317, %c0_318, %c0_319] : memref<1x4x384xf32, #tpu.memory_space<vmem>>, vector<1x4x384xf32>
    %238 = vector.shape_cast %237 : vector<1x4x384xf32> to vector<4x384xf32>
    %239 = vector.shape_cast %236 : vector<4x384xf32> to vector<1x4x384xf32>
    tpu.vector_store %arg18[%c0_317, %c0_318, %c0_319], %239 {strides = array<i32>} : memref<1x4x384xf32, #tpu.memory_space<vmem>>, vector<1x4x384xf32>,
    return
  }
  func.func @transform_0(%arg0: i32) -> (i32, i32, i32) {
    %c0_i32 = arith.constant 0 : i32
    %c0_i32_0 = arith.constant 0 : i32
    %c0_i32_1 = arith.constant 0 : i32
    return %arg0, %c0_i32, %c0_i32_0 : i32, i32, i32
  }
  func.func @transform_1(%arg0: i32) -> (i32, i32) {
    %c0_i32 = arith.constant 0 : i32
    %c0_i32_0 = arith.constant 0 : i32
    %c0_i32_1 = arith.constant 0 : i32
    return %c0_i32, %c0_i32_0 : i32, i32
  }
  func.func @transform_2(%arg0: i32) -> (i32, i32) {
    %c0_i32 = arith.constant 0 : i32
    %c0_i32_0 = arith.constant 0 : i32
    %c0_i32_1 = arith.constant 0 : i32
    return %c0_i32, %c0_i32_0 : i32, i32
  }
  func.func @transform_3(%arg0: i32) -> (i32, i32) {
    %c0_i32 = arith.constant 0 : i32
    %c0_i32_0 = arith.constant 0 : i32
    %c0_i32_1 = arith.constant 0 : i32
    return %c0_i32, %c0_i32_0 : i32, i32
  }
  func.func @transform_4(%arg0: i32) -> (i32, i32) {
    %c0_i32 = arith.constant 0 : i32
    %c0_i32_0 = arith.constant 0 : i32
    %c0_i32_1 = arith.constant 0 : i32
    return %c0_i32, %c0_i32_0 : i32, i32
  }
  func.func @transform_5(%arg0: i32) -> (i32, i32) {
    %c0_i32 = arith.constant 0 : i32
    %c0_i32_0 = arith.constant 0 : i32
    %c0_i32_1 = arith.constant 0 : i32
    return %c0_i32, %c0_i32_0 : i32, i32
  }
  func.func @transform_6(%arg0: i32) -> (i32, i32) {
    %c0_i32 = arith.constant 0 : i32
    %c0_i32_0 = arith.constant 0 : i32
    %c0_i32_1 = arith.constant 0 : i32
    return %c0_i32, %c0_i32_0 : i32, i32
  }
  func.func @transform_7(%arg0: i32) -> (i32, i32) {
    %c0_i32 = arith.constant 0 : i32
    %c0_i32_0 = arith.constant 0 : i32
    %c0_i32_1 = arith.constant 0 : i32
    return %c0_i32, %c0_i32_0 : i32, i32
  }
  func.func @transform_8(%arg0: i32) -> (i32, i32) {
    %c0_i32 = arith.constant 0 : i32
    %c0_i32_0 = arith.constant 0 : i32
    %c0_i32_1 = arith.constant 0 : i32
    return %c0_i32, %c0_i32_0 : i32, i32
  }
  func.func @transform_9(%arg0: i32) -> (i32, i32) {
    %c0_i32 = arith.constant 0 : i32
    %c0_i32_0 = arith.constant 0 : i32
    %c0_i32_1 = arith.constant 0 : i32
    return %c0_i32, %c0_i32_0 : i32, i32
  }
  func.func @transform_10(%arg0: i32) -> (i32, i32) {
    %c0_i32 = arith.constant 0 : i32
    %c0_i32_0 = arith.constant 0 : i32
    %c0_i32_1 = arith.constant 0 : i32
    return %c0_i32, %c0_i32_0 : i32, i32
  }
  func.func @transform_11(%arg0: i32) -> (i32, i32) {
    %c0_i32 = arith.constant 0 : i32
    %c0_i32_0 = arith.constant 0 : i32
    %c0_i32_1 = arith.constant 0 : i32
    return %c0_i32, %c0_i32_0 : i32, i32
  }
  func.func @transform_12(%arg0: i32) -> (i32, i32) {
    %c0_i32 = arith.constant 0 : i32
    %c0_i32_0 = arith.constant 0 : i32
    %c0_i32_1 = arith.constant 0 : i32
    return %c0_i32, %c0_i32_0 : i32, i32
  }
  func.func @transform_13(%arg0: i32) -> (i32, i32) {
    %c0_i32 = arith.constant 0 : i32
    %c0_i32_0 = arith.constant 0 : i32
    %c0_i32_1 = arith.constant 0 : i32
    return %c0_i32, %c0_i32_0 : i32, i32
  }
  func.func @transform_14(%arg0: i32) -> (i32, i32) {
    %c0_i32 = arith.constant 0 : i32
    %c0_i32_0 = arith.constant 0 : i32
    %c0_i32_1 = arith.constant 0 : i32
    return %c0_i32, %c0_i32_0 : i32, i32
  }
  func.func @transform_15(%arg0: i32) -> (i32, i32) {
    %c0_i32 = arith.constant 0 : i32
    %c0_i32_0 = arith.constant 0 : i32
    %c0_i32_1 = arith.constant 0 : i32
    return %c0_i32, %c0_i32_0 : i32, i32
  }
  func.func @transform_16(%arg0: i32) -> (i32, i32) {
    %c0_i32 = arith.constant 0 : i32
    %c0_i32_0 = arith.constant 0 : i32
    %c0_i32_1 = arith.constant 0 : i32
    return %c0_i32, %c0_i32_0 : i32, i32
  }
  func.func @transform_17(%arg0: i32) -> (i32, i32, i32) {
    %c0_i32 = arith.constant 0 : i32
    %c0_i32_0 = arith.constant 0 : i32
    %c0_i32_1 = arith.constant 0 : i32
    return %arg0, %c0_i32, %c0_i32_0 : i32, i32, i32
  }
}

</mosaic_0001>

<llo_original>
// kernel: _lambda_.1
$region0: #{_lambda_.1}
  #allocation0 [shape = 'u32[]', space=smem, size = 0x4, offset = 0x4, fixed_abs, tag = 'smem constant byte address 0x4 - core index']
  #allocation1 [shape = 'u32[144,128]{1,0:T(1,128)}', space=vmem, size = 0x12000, scoped, tag = 'internal scratch']
  #allocation2 [shape = 'f32[216,384]{1,0:T(8,128)}', space=vmem, size = 0x51000, scoped, tag = 'scratch operand']
  #allocation3 [shape = 'f32[8,640]{1,0:T(8,128)}', space=vmem, size = 0x5000, scoped, tag = 'scratch operand']
  #allocation4 [shape = 'f32[8,640]{1,0:T(8,128)}', space=vmem, size = 0x5000, scoped, tag = 'scratch operand']
  #allocation5 [shape = 'f32[16,640]{1,0:T(8,128)}', space=vmem, size = 0xa000, scoped, tag = 'scratch operand']
  #allocation6 [shape = 'f32[8,640]{1,0:T(8,128)}', space=vmem, size = 0x5000, scoped, tag = 'scratch operand']
  #allocation7 [shape = 'f32[8,384]{1,0:T(8,128)}', space=vmem, size = 0x3000, scoped, tag = 'scratch operand']
  #allocation8 [shape = 'f32[16,384]{1,0:T(8,128)}', space=vmem, size = 0x6000, scoped, tag = 'scratch operand']
  #allocation9 [shape = 'f32[16,384]{1,0:T(8,128)}', space=vmem, size = 0x6000, scoped, tag = 'scratch operand']
  %s0 = inlined_call_operand.vmem [shape: f32[2,8,640], index: 0, kind: input, shape index: {}]
  %s1 = inlined_call_operand.vmem [shape: f32[8,72], index: 1, kind: input, shape index: {}]
  %s2 = inlined_call_operand.vmem [shape: f32[8,1], index: 2, kind: input, shape index: {}, may-alias: {2,4,10}]
  %s3 = inlined_call_operand.vmem [shape: f32[8,72], index: 3, kind: input, shape index: {}]
  %s4 = inlined_call_operand.vmem [shape: f32[8,1], index: 4, kind: input, shape index: {}, may-alias: {2,4,10}]
  %s5 = inlined_call_operand.vmem [shape: f32[16,72], index: 5, kind: input, shape index: {}]
  %s6 = inlined_call_operand.vmem [shape: f32[16,1], index: 6, kind: input, shape index: {}, may-alias: {6,8}]
  %s7 = inlined_call_operand.vmem [shape: f32[16,144], index: 7, kind: input, shape index: {}]
  %s8 = inlined_call_operand.vmem [shape: f32[16,1], index: 8, kind: input, shape index: {}, may-alias: {6,8}]
  %s9 = inlined_call_operand.vmem [shape: f32[8,216], index: 9, kind: input, shape index: {}]
  %s10 = inlined_call_operand.vmem [shape: f32[8,1], index: 10, kind: input, shape index: {}, may-alias: {2,4,10}]
  %s11 = inlined_call_operand.vmem [shape: f32[4,72], index: 11, kind: input, shape index: {}]
  %s12 = inlined_call_operand.vmem [shape: f32[4,1], index: 12, kind: input, shape index: {}]
  %s13 = inlined_call_operand.vmem [shape: f32[384,128], index: 13, kind: input, shape index: {}]
  %s14 = inlined_call_operand.vmem [shape: f32[128,384], index: 14, kind: input, shape index: {}]
  %s15 = inlined_call_operand.vmem [shape: f32[1,384], index: 15, kind: input, shape index: {}]
  %s16 = inlined_call_operand.vmem [shape: f32[1,128], index: 16, kind: input, shape index: {}]
  %s17 = inlined_call_operand.vmem [shape: f32[2,4,384], index: 17, kind: output, shape index: {}]
  %s18 = sld [smem:[#allocation0]]
  $region101: #{_lambda_.1} parent=0
    _
  %s20 = ssub.s32 1, %s18
  %s21 = scalar_select 0, %s20, %s18
  loop: start=0, step=1, limit=4
  $region2: #{_lambda_.1} parent=0 // loop_pre_header
    _
  $region3: #{_lambda_.1} parent=0 // loop_header
    %s23 = sphi 0, %s27
    %p24 = scmp.ge.s32.totalorder %s23, 4
    %s33 = sphi 0, %s35
    %s36 = sphi 0, %s33
    %s37 = sphi 0, %s36
    %s53 = sphi 0, %s37
    %s57 = sphi 0, %s57
    %s59 = sphi 0, %s57
    %s60 = sphi 0, %s59
    %s74 = sphi 0, %s60
    %s78 = sphi 0, %s78
    %s80 = sphi 0, %s78
    %s81 = sphi 0, %s80
    %s95 = sphi 0, %s81
    %s99 = sphi 0, %s99
    %s101 = sphi 0, %s99
    %s102 = sphi 0, %s101
    %s116 = sphi 0, %s102
    %s120 = sphi 0, %s120
    %s122 = sphi 0, %s120
    %s123 = sphi 0, %s122
    %s137 = sphi 0, %s123
    %s141 = sphi 0, %s141
    %s143 = sphi 0, %s141
    %s144 = sphi 0, %s143
    %s158 = sphi 0, %s144
    %s162 = sphi 0, %s162
    %s164 = sphi 0, %s162
    %s165 = sphi 0, %s164
    %s179 = sphi 0, %s165
    %s183 = sphi 0, %s183
    %s185 = sphi 0, %s183
    %s186 = sphi 0, %s185
    %s200 = sphi 0, %s186
    %s204 = sphi 0, %s204
    %s206 = sphi 0, %s204
    %s207 = sphi 0, %s206
    %s221 = sphi 0, %s207
    %s225 = sphi 0, %s225
    %s227 = sphi 0, %s225
    %s228 = sphi 0, %s227
    %s242 = sphi 0, %s228
    %s246 = sphi 0, %s246
    %s248 = sphi 0, %s246
    %s249 = sphi 0, %s248
    %s263 = sphi 0, %s249
    %s267 = sphi 0, %s267
    %s269 = sphi 0, %s267
    %s270 = sphi 0, %s269
    %s284 = sphi 0, %s270
    %s288 = sphi 0, %s288
    %s290 = sphi 0, %s288
    %s291 = sphi 0, %s290
    %s305 = sphi 0, %s291
    %s309 = sphi 0, %s309
    %s311 = sphi 0, %s309
    %s312 = sphi 0, %s311
    %s326 = sphi 0, %s312
    %s330 = sphi 0, %s330
    %s332 = sphi 0, %s330
    %s333 = sphi 0, %s332
    %s347 = sphi 0, %s333
    %s351 = sphi 0, %s351
    %s353 = sphi 0, %s351
    %s354 = sphi 0, %s353
    %s368 = sphi 0, %s354
    %s372 = sphi 0, %s372
    %s374 = sphi 0, %s372
    %s375 = sphi 0, %s374
    %s389 = sphi 0, %s375
    %s395 = sphi 0, %s397
    %s398 = sphi 0, %s395
    %s399 = sphi 0, %s398
    %s415 = sphi 0, %s399
  $region4: #{_lambda_.1} parent=0 // loop_header_branch
    %26 = sbr.rel (%p24) target = $region8
  $region5: #{_lambda_.1} parent=0 // loop_body
    %s28 = ssub.s32 %s23, 1
    %s29 = ssub.s32 %s23, 2
    %s30 = sadd.s32 %s23, 1
    %s31 = ssub.s32 %s23, %s30
    %p32 = scmp.eq.s32.totalorder %s31, 0
    %s34 = sadd.s32 %s33, 1
    %s35 = scalar_select %p32, %s33, %s34
    %p38 = pneg %p32
    %p39 = scmp.eq.s32.totalorder %s23, 1
    %p40 = por %p38, %p39
    %p41 = scmp.ne.s32.totalorder %s33, %s36
    %p42 = scmp.eq.s32.totalorder %s23, 0
    %p43 = por %p41, %p42
    %p44 = scmp.ne.s32.totalorder %s33, %s36
    %p45 = scmp.eq.s32.totalorder %s28, 1
    %p46 = por %p44, %p45
    %p47 = scmp.ne.s32.totalorder %s36, %s37
    %p48 = scmp.eq.s32.totalorder %s28, 0
    %p49 = por %p47, %p48
    %p50 = scmp.ne.s32.totalorder %s36, %s37
    %p51 = scmp.eq.s32.totalorder %s29, 1
    %p52 = por %p50, %p51
    %p54 = scmp.ne.s32.totalorder %s37, %s53
    %p55 = scmp.eq.s32.totalorder %s29, 0
    %p56 = por %p54, %p55
    %s58 = sadd.s32 %s57, 1
    %p61 = scmp.eq.s32.totalorder %s23, 1
    %p62 = scmp.ne.s32.totalorder %s57, %s59
    %p63 = scmp.eq.s32.totalorder %s23, 0
    %p64 = por %p62, %p63
    %p65 = scmp.ne.s32.totalorder %s57, %s59
    %p66 = scmp.eq.s32.totalorder %s28, 1
    %p67 = por %p65, %p66
    %p68 = scmp.ne.s32.totalorder %s59, %s60
    %p69 = scmp.eq.s32.totalorder %s28, 0
    %p70 = por %p68, %p69
    %p71 = scmp.ne.s32.totalorder %s59, %s60
    %p72 = scmp.eq.s32.totalorder %s29, 1
    %p73 = por %p71, %p72
    %p75 = scmp.ne.s32.totalorder %s60, %s74
    %p76 = scmp.eq.s32.totalorder %s29, 0
    %p77 = por %p75, %p76
    %s79 = sadd.s32 %s78, 1
    %p82 = scmp.eq.s32.totalorder %s23, 1
    %p83 = scmp.ne.s32.totalorder %s78, %s80
    %p84 = scmp.eq.s32.totalorder %s23, 0
    %p85 = por %p83, %p84
    %p86 = scmp.ne.s32.totalorder %s78, %s80
    %p87 = scmp.eq.s32.totalorder %s28, 1
    %p88 = por %p86, %p87
    %p89 = scmp.ne.s32.totalorder %s80, %s81
    %p90 = scmp.eq.s32.totalorder %s28, 0
    %p91 = por %p89, %p90
    %p92 = scmp.ne.s32.totalorder %s80, %s81
    %p93 = scmp.eq.s32.totalorder %s29, 1
    %p94 = por %p92, %p93
    %p96 = scmp.ne.s32.totalorder %s81, %s95
    %p97 = scmp.eq.s32.totalorder %s29, 0
    %p98 = por %p96, %p97
    %s100 = sadd.s32 %s99, 1
    %p103 = scmp.eq.s32.totalorder %s23, 1
    %p104 = scmp.ne.s32.totalorder %s99, %s101
    %p105 = scmp.eq.s32.totalorder %s23, 0
    %p106 = por %p104, %p105
    %p107 = scmp.ne.s32.totalorder %s99, %s101
    %p108 = scmp.eq.s32.totalorder %s28, 1
    %p109 = por %p107, %p108
    %p110 = scmp.ne.s32.totalorder %s101, %s102
    %p111 = scmp.eq.s32.totalorder %s28, 0
    %p112 = por %p110, %p111
    %p113 = scmp.ne.s32.totalorder %s101, %s102
    %p114 = scmp.eq.s32.totalorder %s29, 1
    %p115 = por %p113, %p114
    %p117 = scmp.ne.s32.totalorder %s102, %s116
    %p118 = scmp.eq.s32.totalorder %s29, 0
    %p119 = por %p117, %p118
    %s121 = sadd.s32 %s120, 1
    %p124 = scmp.eq.s32.totalorder %s23, 1
    %p125 = scmp.ne.s32.totalorder %s120, %s122
    %p126 = scmp.eq.s32.totalorder %s23, 0
    %p127 = por %p125, %p126
    %p128 = scmp.ne.s32.totalorder %s120, %s122
    %p129 = scmp.eq.s32.totalorder %s28, 1
    %p130 = por %p128, %p129
    %p131 = scmp.ne.s32.totalorder %s122, %s123
    %p132 = scmp.eq.s32.totalorder %s28, 0
    %p133 = por %p131, %p132
    %p134 = scmp.ne.s32.totalorder %s122, %s123
    %p135 = scmp.eq.s32.totalorder %s29, 1
    %p136 = por %p134, %p135
    %p138 = scmp.ne.s32.totalorder %s123, %s137
    %p139 = scmp.eq.s32.totalorder %s29, 0
    %p140 = por %p138, %p139
    %s142 = sadd.s32 %s141, 1
    %p145 = scmp.eq.s32.totalorder %s23, 1
    %p146 = scmp.ne.s32.totalorder %s141, %s143
    %p147 = scmp.eq.s32.totalorder %s23, 0
    %p148 = por %p146, %p147
    %p149 = scmp.ne.s32.totalorder %s141, %s143
    %p150 = scmp.eq.s32.totalorder %s28, 1
    %p151 = por %p149, %p150
    %p152 = scmp.ne.s32.totalorder %s143, %s144
    %p153 = scmp.eq.s32.totalorder %s28, 0
    %p154 = por %p152, %p153
    %p155 = scmp.ne.s32.totalorder %s143, %s144
    %p156 = scmp.eq.s32.totalorder %s29, 1
    %p157 = por %p155, %p156
    %p159 = scmp.ne.s32.totalorder %s144, %s158
    %p160 = scmp.eq.s32.totalorder %s29, 0
    %p161 = por %p159, %p160
    %s163 = sadd.s32 %s162, 1
    %p166 = scmp.eq.s32.totalorder %s23, 1
    %p167 = scmp.ne.s32.totalorder %s162, %s164
    %p168 = scmp.eq.s32.totalorder %s23, 0
    %p169 = por %p167, %p168
    %p170 = scmp.ne.s32.totalorder %s162, %s164
    %p171 = scmp.eq.s32.totalorder %s28, 1
    %p172 = por %p170, %p171
    %p173 = scmp.ne.s32.totalorder %s164, %s165
    %p174 = scmp.eq.s32.totalorder %s28, 0
    %p175 = por %p173, %p174
    %p176 = scmp.ne.s32.totalorder %s164, %s165
    %p177 = scmp.eq.s32.totalorder %s29, 1
    %p178 = por %p176, %p177
    %p180 = scmp.ne.s32.totalorder %s165, %s179
    %p181 = scmp.eq.s32.totalorder %s29, 0
    %p182 = por %p180, %p181
    %s184 = sadd.s32 %s183, 1
    %p187 = scmp.eq.s32.totalorder %s23, 1
    %p188 = scmp.ne.s32.totalorder %s183, %s185
    %p189 = scmp.eq.s32.totalorder %s23, 0
    %p190 = por %p188, %p189
    %p191 = scmp.ne.s32.totalorder %s183, %s185
    %p192 = scmp.eq.s32.totalorder %s28, 1
    %p193 = por %p191, %p192
    %p194 = scmp.ne.s32.totalorder %s185, %s186
    %p195 = scmp.eq.s32.totalorder %s28, 0
    %p196 = por %p194, %p195
    %p197 = scmp.ne.s32.totalorder %s185, %s186
    %p198 = scmp.eq.s32.totalorder %s29, 1
    %p199 = por %p197, %p198
    %p201 = scmp.ne.s32.totalorder %s186, %s200
    %p202 = scmp.eq.s32.totalorder %s29, 0
    %p203 = por %p201, %p202
    %s205 = sadd.s32 %s204, 1
    %p208 = scmp.eq.s32.totalorder %s23, 1
    %p209 = scmp.ne.s32.totalorder %s204, %s206
    %p210 = scmp.eq.s32.totalorder %s23, 0
    %p211 = por %p209, %p210
    %p212 = scmp.ne.s32.totalorder %s204, %s206
    %p213 = scmp.eq.s32.totalorder %s28, 1
    %p214 = por %p212, %p213
    %p215 = scmp.ne.s32.totalorder %s206, %s207
    %p216 = scmp.eq.s32.totalorder %s28, 0
    %p217 = por %p215, %p216
    %p218 = scmp.ne.s32.totalorder %s206, %s207
    %p219 = scmp.eq.s32.totalorder %s29, 1
    %p220 = por %p218, %p219
    %p222 = scmp.ne.s32.totalorder %s207, %s221
    %p223 = scmp.eq.s32.totalorder %s29, 0
    %p224 = por %p222, %p223
    %s226 = sadd.s32 %s225, 1
    %p229 = scmp.eq.s32.totalorder %s23, 1
    %p230 = scmp.ne.s32.totalorder %s225, %s227
    %p231 = scmp.eq.s32.totalorder %s23, 0
    %p232 = por %p230, %p231
    %p233 = scmp.ne.s32.totalorder %s225, %s227
    %p234 = scmp.eq.s32.totalorder %s28, 1
    %p235 = por %p233, %p234
    %p236 = scmp.ne.s32.totalorder %s227, %s228
    %p237 = scmp.eq.s32.totalorder %s28, 0
    %p238 = por %p236, %p237
    %p239 = scmp.ne.s32.totalorder %s227, %s228
    %p240 = scmp.eq.s32.totalorder %s29, 1
    %p241 = por %p239, %p240
    %p243 = scmp.ne.s32.totalorder %s228, %s242
    %p244 = scmp.eq.s32.totalorder %s29, 0
    %p245 = por %p243, %p244
    %s247 = sadd.s32 %s246, 1
    %p250 = scmp.eq.s32.totalorder %s23, 1
    %p251 = scmp.ne.s32.totalorder %s246, %s248
    %p252 = scmp.eq.s32.totalorder %s23, 0
    %p253 = por %p251, %p252
    %p254 = scmp.ne.s32.totalorder %s246, %s248
    %p255 = scmp.eq.s32.totalorder %s28, 1
    %p256 = por %p254, %p255
    %p257 = scmp.ne.s32.totalorder %s248, %s249
    %p258 = scmp.eq.s32.totalorder %s28, 0
    %p259 = por %p257, %p258
    %p260 = scmp.ne.s32.totalorder %s248, %s249
    %p261 = scmp.eq.s32.totalorder %s29, 1
    %p262 = por %p260, %p261
    %p264 = scmp.ne.s32.totalorder %s249, %s263
    %p265 = scmp.eq.s32.totalorder %s29, 0
    %p266 = por %p264, %p265
    %s268 = sadd.s32 %s267, 1
    %p271 = scmp.eq.s32.totalorder %s23, 1
    %p272 = scmp.ne.s32.totalorder %s267, %s269
    %p273 = scmp.eq.s32.totalorder %s23, 0
    %p274 = por %p272, %p273
    %p275 = scmp.ne.s32.totalorder %s267, %s269
    %p276 = scmp.eq.s32.totalorder %s28, 1
    %p277 = por %p275, %p276
    %p278 = scmp.ne.s32.totalorder %s269, %s270
    %p279 = scmp.eq.s32.totalorder %s28, 0
    %p280 = por %p278, %p279
    %p281 = scmp.ne.s32.totalorder %s269, %s270
    %p282 = scmp.eq.s32.totalorder %s29, 1
    %p283 = por %p281, %p282
    %p285 = scmp.ne.s32.totalorder %s270, %s284
    %p286 = scmp.eq.s32.totalorder %s29, 0
    %p287 = por %p285, %p286
    %s289 = sadd.s32 %s288, 1
    %p292 = scmp.eq.s32.totalorder %s23, 1
    %p293 = scmp.ne.s32.totalorder %s288, %s290
    %p294 = scmp.eq.s32.totalorder %s23, 0
    %p295 = por %p293, %p294
    %p296 = scmp.ne.s32.totalorder %s288, %s290
    %p297 = scmp.eq.s32.totalorder %s28, 1
    %p298 = por %p296, %p297
    %p299 = scmp.ne.s32.totalorder %s290, %s291
    %p300 = scmp.eq.s32.totalorder %s28, 0
    %p301 = por %p299, %p300
    %p302 = scmp.ne.s32.totalorder %s290, %s291
    %p303 = scmp.eq.s32.totalorder %s29, 1
    %p304 = por %p302, %p303
    %p306 = scmp.ne.s32.totalorder %s291, %s305
    %p307 = scmp.eq.s32.totalorder %s29, 0
    %p308 = por %p306, %p307
    %s310 = sadd.s32 %s309, 1
    %p313 = scmp.eq.s32.totalorder %s23, 1
    %p314 = scmp.ne.s32.totalorder %s309, %s311
    %p315 = scmp.eq.s32.totalorder %s23, 0
    %p316 = por %p314, %p315
    %p317 = scmp.ne.s32.totalorder %s309, %s311
    %p318 = scmp.eq.s32.totalorder %s28, 1
    %p319 = por %p317, %p318
    %p320 = scmp.ne.s32.totalorder %s311, %s312
    %p321 = scmp.eq.s32.totalorder %s28, 0
    %p322 = por %p320, %p321
    %p323 = scmp.ne.s32.totalorder %s311, %s312
    %p324 = scmp.eq.s32.totalorder %s29, 1
    %p325 = por %p323, %p324
    %p327 = scmp.ne.s32.totalorder %s312, %s326
    %p328 = scmp.eq.s32.totalorder %s29, 0
    %p329 = por %p327, %p328
    %s331 = sadd.s32 %s330, 1
    %p334 = scmp.eq.s32.totalorder %s23, 1
    %p335 = scmp.ne.s32.totalorder %s330, %s332
    %p336 = scmp.eq.s32.totalorder %s23, 0
    %p337 = por %p335, %p336
    %p338 = scmp.ne.s32.totalorder %s330, %s332
    %p339 = scmp.eq.s32.totalorder %s28, 1
    %p340 = por %p338, %p339
    %p341 = scmp.ne.s32.totalorder %s332, %s333
    %p342 = scmp.eq.s32.totalorder %s28, 0
    %p343 = por %p341, %p342
    %p344 = scmp.ne.s32.totalorder %s332, %s333
    %p345 = scmp.eq.s32.totalorder %s29, 1
    %p346 = por %p344, %p345
    %p348 = scmp.ne.s32.totalorder %s333, %s347
    %p349 = scmp.eq.s32.totalorder %s29, 0
    %p350 = por %p348, %p349
    %s352 = sadd.s32 %s351, 1
    %p355 = scmp.eq.s32.totalorder %s23, 1
    %p356 = scmp.ne.s32.totalorder %s351, %s353
    %p357 = scmp.eq.s32.totalorder %s23, 0
    %p358 = por %p356, %p357
    %p359 = scmp.ne.s32.totalorder %s351, %s353
    %p360 = scmp.eq.s32.totalorder %s28, 1
    %p361 = por %p359, %p360
    %p362 = scmp.ne.s32.totalorder %s353, %s354
    %p363 = scmp.eq.s32.totalorder %s28, 0
    %p364 = por %p362, %p363
    %p365 = scmp.ne.s32.totalorder %s353, %s354
    %p366 = scmp.eq.s32.totalorder %s29, 1
    %p367 = por %p365, %p366
    %p369 = scmp.ne.s32.totalorder %s354, %s368
    %p370 = scmp.eq.s32.totalorder %s29, 0
    %p371 = por %p369, %p370
    %s373 = sadd.s32 %s372, 1
    %p376 = scmp.eq.s32.totalorder %s23, 1
    %p377 = scmp.ne.s32.totalorder %s372, %s374
    %p378 = scmp.eq.s32.totalorder %s23, 0
    %p379 = por %p377, %p378
    %p380 = scmp.ne.s32.totalorder %s372, %s374
    %p381 = scmp.eq.s32.totalorder %s28, 1
    %p382 = por %p380, %p381
    %p383 = scmp.ne.s32.totalorder %s374, %s375
    %p384 = scmp.eq.s32.totalorder %s28, 0
    %p385 = por %p383, %p384
    %p386 = scmp.ne.s32.totalorder %s374, %s375
    %p387 = scmp.eq.s32.totalorder %s29, 1
    %p388 = por %p386, %p387
    %p390 = scmp.ne.s32.totalorder %s375, %s389
    %p391 = scmp.eq.s32.totalorder %s29, 0
    %p392 = por %p390, %p391
    %s393 = ssub.s32 %s23, %s30
    %p394 = scmp.eq.s32.totalorder %s393, 0
    %s396 = sadd.s32 %s395, 1
    %s397 = scalar_select %p394, %s395, %s396
    %p400 = pneg %p394
    %p401 = scmp.eq.s32.totalorder %s23, 1
    %p402 = por %p400, %p401
    %p403 = scmp.ne.s32.totalorder %s395, %s398
    %p404 = scmp.eq.s32.totalorder %s23, 0
    %p405 = por %p403, %p404
    %p406 = scmp.ne.s32.totalorder %s395, %s398
    %p407 = scmp.eq.s32.totalorder %s28, 1
    %p408 = por %p406, %p407
    %p409 = scmp.ne.s32.totalorder %s398, %s399
    %p410 = scmp.eq.s32.totalorder %s28, 0
    %p411 = por %p409, %p410
    %p412 = scmp.ne.s32.totalorder %s398, %s399
    %p413 = scmp.eq.s32.totalorder %s29, 1
    %p414 = por %p412, %p413
    %p416 = scmp.ne.s32.totalorder %s399, %s415
    %p417 = scmp.eq.s32.totalorder %s29, 0
    %p418 = por %p416, %p417
    %p419 = scmp.le.s32.totalorder 1, %s23
    %p420 = scmp.lt.s32.totalorder %s23, 3
    %p421 = pnand %p419, %p420
    %p422 = pneg %p421
    // Predicated region
    $region9: #{_lambda_.1} parent=5 // pred_check
      _
    $region10: #{_lambda_.1} parent=5 // pred_check_branch
      %424 = sbr.rel (%p421) target = $region12
    $region11: #{_lambda_.1} parent=5 // pred_region
      %s425 = ssub.s32 %s23, 1
      // Predicated region
      $region13: #{_lambda_.1} parent=11 // pred_check
        %p426 = pneg %p70
      $region14: #{_lambda_.1} parent=11 // pred_check_branch
        %428 = sbr.rel (%p426) target = $region16
      $region15: #{_lambda_.1} parent=11 // pred_region
        _
      $region16: #{_lambda_.1} parent=11 // pred_fallthru
        _
      // Predicated region
      $region17: #{_lambda_.1} parent=11 // pred_check
        %p429 = pneg %p91
      $region18: #{_lambda_.1} parent=11 // pred_check_branch
        %431 = sbr.rel (%p429) target = $region20
      $region19: #{_lambda_.1} parent=11 // pred_region
        _
      $region20: #{_lambda_.1} parent=11 // pred_fallthru
        _
      // Predicated region
      $region21: #{_lambda_.1} parent=11 // pred_check
        %p432 = pneg %p112
      $region22: #{_lambda_.1} parent=11 // pred_check_branch
        %434 = sbr.rel (%p432) target = $region24
      $region23: #{_lambda_.1} parent=11 // pred_region
        _
      $region24: #{_lambda_.1} parent=11 // pred_fallthru
        _
      // Predicated region
      $region25: #{_lambda_.1} parent=11 // pred_check
        %p435 = pneg %p133
      $region26: #{_lambda_.1} parent=11 // pred_check_branch
        %437 = sbr.rel (%p435) target = $region28
      $region27: #{_lambda_.1} parent=11 // pred_region
        _
      $region28: #{_lambda_.1} parent=11 // pred_fallthru
        _
      // Predicated region
      $region29: #{_lambda_.1} parent=11 // pred_check
        %p438 = pneg %p154
      $region30: #{_lambda_.1} parent=11 // pred_check_branch
        %440 = sbr.rel (%p438) target = $region32
      $region31: #{_lambda_.1} parent=11 // pred_region
        _
      $region32: #{_lambda_.1} parent=11 // pred_fallthru
        _
      // Predicated region
      $region33: #{_lambda_.1} parent=11 // pred_check
        %p441 = pneg %p175
      $region34: #{_lambda_.1} parent=11 // pred_check_branch
        %443 = sbr.rel (%p441) target = $region36
      $region35: #{_lambda_.1} parent=11 // pred_region
        _
      $region36: #{_lambda_.1} parent=11 // pred_fallthru
        _
      // Predicated region
      $region37: #{_lambda_.1} parent=11 // pred_check
        %p444 = pneg %p196
      $region38: #{_lambda_.1} parent=11 // pred_check_branch
        %446 = sbr.rel (%p444) target = $region40
      $region39: #{_lambda_.1} parent=11 // pred_region
        _
      $region40: #{_lambda_.1} parent=11 // pred_fallthru
        _
      // Predicated region
      $region41: #{_lambda_.1} parent=11 // pred_check
        %p447 = pneg %p217
      $region42: #{_lambda_.1} parent=11 // pred_check_branch
        %449 = sbr.rel (%p447) target = $region44
      $region43: #{_lambda_.1} parent=11 // pred_region
        _
      $region44: #{_lambda_.1} parent=11 // pred_fallthru
        _
      // Predicated region
      $region45: #{_lambda_.1} parent=11 // pred_check
        %p450 = pneg %p238
      $region46: #{_lambda_.1} parent=11 // pred_check_branch
        %452 = sbr.rel (%p450) target = $region48
      $region47: #{_lambda_.1} parent=11 // pred_region
        _
      $region48: #{_lambda_.1} parent=11 // pred_fallthru
        _
      // Predicated region
      $region49: #{_lambda_.1} parent=11 // pred_check
        %p453 = pneg %p259
      $region50: #{_lambda_.1} parent=11 // pred_check_branch
        %455 = sbr.rel (%p453) target = $region52
      $region51: #{_lambda_.1} parent=11 // pred_region
        _
      $region52: #{_lambda_.1} parent=11 // pred_fallthru
        _
      // Predicated region
      $region53: #{_lambda_.1} parent=11 // pred_check
        %p456 = pneg %p280
      $region54: #{_lambda_.1} parent=11 // pred_check_branch
        %458 = sbr.rel (%p456) target = $region56
      $region55: #{_lambda_.1} parent=11 // pred_region
        _
      $region56: #{_lambda_.1} parent=11 // pred_fallthru
        _
      // Predicated region
      $region57: #{_lambda_.1} parent=11 // pred_check
        %p459 = pneg %p301
      $region58: #{_lambda_.1} parent=11 // pred_check_branch
        %461 = sbr.rel (%p459) target = $region60
      $region59: #{_lambda_.1} parent=11 // pred_region
        _
      $region60: #{_lambda_.1} parent=11 // pred_fallthru
        _
      // Predicated region
      $region61: #{_lambda_.1} parent=11 // pred_check
        %p462 = pneg %p322
      $region62: #{_lambda_.1} parent=11 // pred_check_branch
        %464 = sbr.rel (%p462) target = $region64
      $region63: #{_lambda_.1} parent=11 // pred_region
        _
      $region64: #{_lambda_.1} parent=11 // pred_fallthru
        _
      // Predicated region
      $region65: #{_lambda_.1} parent=11 // pred_check
        %p465 = pneg %p343
      $region66: #{_lambda_.1} parent=11 // pred_check_branch
        %467 = sbr.rel (%p465) target = $region68
      $region67: #{_lambda_.1} parent=11 // pred_region
        _
      $region68: #{_lambda_.1} parent=11 // pred_fallthru
        _
      // Predicated region
      $region69: #{_lambda_.1} parent=11 // pred_check
        %p468 = pneg %p364
      $region70: #{_lambda_.1} parent=11 // pred_check_branch
        %470 = sbr.rel (%p468) target = $region72
      $region71: #{_lambda_.1} parent=11 // pred_region
        _
      $region72: #{_lambda_.1} parent=11 // pred_fallthru
        _
      // Predicated region
      $region73: #{_lambda_.1} parent=11 // pred_check
        %p471 = pneg %p385
      $region74: #{_lambda_.1} parent=11 // pred_check_branch
        %473 = sbr.rel (%p471) target = $region76
      $region75: #{_lambda_.1} parent=11 // pred_region
        _
      $region76: #{_lambda_.1} parent=11 // pred_fallthru
        _
    $region12: #{_lambda_.1} parent=5 // pred_fallthru
      _
    %p474 = scmp.lt.s32.totalorder %s23, 2
    // Predicated region
    $region77: #{_lambda_.1} parent=5 // pred_check
      %p475 = pneg %p474
    $region78: #{_lambda_.1} parent=5 // pred_check_branch
      %477 = sbr.rel (%p475) target = $region80
    $region79: #{_lambda_.1} parent=5 // pred_region
      // Predicated region
      $region81: #{_lambda_.1} parent=79 // pred_check
        %p478 = pneg %p43
      $region82: #{_lambda_.1} parent=79 // pred_check_branch
        %480 = sbr.rel (%p478) target = $region84
      $region83: #{_lambda_.1} parent=79 // pred_region
        %p481 = scmp.lt.s32.totalorder %s23, 1
        %s482 = scalar_select %p481, %s23, 1
        %s483 = smul.addr %s482, 5
        %s484 = smul.addr %s483, 8
        %s485 = scalar_lea.vmem %s0, %s484
      $region84: #{_lambda_.1} parent=79 // pred_fallthru
        _
    $region80: #{_lambda_.1} parent=5 // pred_fallthru
      _
    %p486 = scmp.le.s32.totalorder 1, %s23
    %p487 = scmp.lt.s32.totalorder %s23, 3
    %p488 = pnand %p486, %p487
    %p489 = pneg %p488
    // Predicated region
    $region85: #{_lambda_.1} parent=5 // pred_check
      _
    $region86: #{_lambda_.1} parent=5 // pred_check_branch
      %491 = sbr.rel (%p488) target = $region88
    $region87: #{_lambda_.1} parent=5 // pred_region
      %s492 = ssub.s32 %s23, 1
      %p493 = scmp.lt.s32.totalorder %s28, 1
      %s494 = scalar_select %p493, %s28, 1
      %s495 = smul.addr %s494, 5
      %s496 = smul.addr %s495, 8
      %s497 = scalar_lea.vmem %s0, %s496
      %p498 = pneg %p49
      %p499 = pneg %p46
      %p500 = pneg %p70
      %p501 = pneg %p67
      %p502 = pneg %p91
      %p503 = pneg %p88
      %p504 = pneg %p112
      %p505 = pneg %p109
      %p506 = pneg %p133
      %p507 = pneg %p130
      %p508 = pneg %p154
      %p509 = pneg %p151
      %p510 = pneg %p175
      %p511 = pneg %p172
      %p512 = pneg %p196
      %p513 = pneg %p193
      %p514 = pneg %p217
      %p515 = pneg %p214
      %p516 = pneg %p238
      %p517 = pneg %p235
      %p518 = pneg %p259
      %p519 = pneg %p256
      %p520 = pneg %p280
      %p521 = pneg %p277
      %p522 = pneg %p301
      %p523 = pneg %p298
      %p524 = pneg %p322
      %p525 = pneg %p319
      %p526 = pneg %p343
      %p527 = pneg %p340
      %p528 = pneg %p364
      %p529 = pneg %p361
      %p530 = pneg %p385
      %p531 = pneg %p382
      %p532 = pneg %p411
      %p533 = pneg %p408
      %p534 = scmp.lt.s32.totalorder %s28, 1
      %s535 = scalar_select %p534, %s28, 1
      %s536 = smul.addr %s535, 3
      %s537 = smul.addr %s536, 4
      %s538 = scalar_lea.vmem %s17, %s537
      %p539 = scmp.lt.s32.totalorder %s28, 1
      %s540 = scalar_select %p539, %s28, 1
      %s541 = smul.addr %s540, 5
      %s542 = smul.addr %s541, 8
      %s543 = scalar_lea.vmem %s0, %s542
      %p544 = scmp.lt.s32.totalorder %s28, 1
      %s545 = scalar_select %p544, %s28, 1
      %s546 = smul.addr %s545, 3
      %s547 = smul.addr %s546, 4
      %s548 = scalar_lea.vmem %s17, %s547
      %v549 = vld [vmem:[%s15] sm:$0x7]
      %vm550 = vcmp.ne.f32.partialorder %v549, 0.0
      %v551 = vld [vmem:[%s16] sm:$0x1]
      %vm552 = vcmp.ne.f32.partialorder %v551, 0.0
      %v553 = vld [vmem:[%s543] sm:$0xff]
      %v554 = vld [vmem:[%s543 + $0x8] sm:$0xff]
      %v555 = vld [vmem:[%s543 + $0x10] sm:$0xff]
      %v556 = vld [vmem:[%s543 + $0x18] sm:$0xff]
      %561 = vrot.lane.b32.xlu0 %v553, 19
      %v562 = vpop.permute.xlu0 %561
      %563 = vrot.lane.b32.xlu0 %v554, 19
      %v564 = vpop.permute.xlu0 %563
      %565 = vrot.lane.b32.xlu0 %v555, 19
      %v566 = vpop.permute.xlu0 %565
      %567 = vrot.lane.b32.xlu0 %v556, 19
      %v568 = vpop.permute.xlu0 %567
      %vm569 = vcmask 154624
      %v570 = vsel %vm569, %v562, %v564
      %v571 = vsel %vm569, %v564, %v566
      %v572 = vsel %vm569, %v566, %v568
      %576 = vst [vmem:[#allocation2] sm:$0xff] %v570
      %577 = vst [vmem:[#allocation2 + $0x8] sm:$0xff] %v571
      %578 = vst [vmem:[#allocation2 + $0x10] sm:$0xff] %v572
      %v579 = vld [vmem:[%s543] sm:$0xff]
      %v580 = vld [vmem:[%s543 + $0x8] sm:$0xff]
      %v581 = vld [vmem:[%s543 + $0x10] sm:$0xff]
      %v582 = vld [vmem:[%s543 + $0x18] sm:$0xff]
      %587 = vrot.lane.b32.xlu0 %v579, 18
      %v588 = vpop.permute.xlu0 %587
      %589 = vrot.lane.b32.xlu0 %v580, 18
      %v590 = vpop.permute.xlu0 %589
      %591 = vrot.lane.b32.xlu0 %v581, 18
      %v592 = vpop.permute.xlu0 %591
      %593 = vrot.lane.b32.xlu0 %v582, 18
      %v594 = vpop.permute.xlu0 %593
      %vm595 = vcmask 146432
      %v596 = vsel %vm595, %v588, %v590
      %v597 = vsel %vm595, %v590, %v592
      %v598 = vsel %vm595, %v592, %v594
      %602 = vst [vmem:[#allocation2 + $0x18] sm:$0xff] %v596
      %603 = vst [vmem:[#allocation2 + $0x20] sm:$0xff] %v597
      %604 = vst [vmem:[#allocation2 + $0x28] sm:$0xff] %v598
      %v605 = vld [vmem:[%s543] sm:$0xff]
      %v606 = vld [vmem:[%s543 + $0x8] sm:$0xff]
      %v607 = vld [vmem:[%s543 + $0x10] sm:$0xff]
      %v608 = vld [vmem:[%s543 + $0x18] sm:$0xff]
      %613 = vrot.lane.b32.xlu0 %v605, 17
      %v614 = vpop.permute.xlu0 %613
      %615 = vrot.lane.b32.xlu0 %v606, 17
      %v616 = vpop.permute.xlu0 %615
      %617 = vrot.lane.b32.xlu0 %v607, 17
      %v618 = vpop.permute.xlu0 %617
      %619 = vrot.lane.b32.xlu0 %v608, 17
      %v620 = vpop.permute.xlu0 %619
      %vm621 = vcmask 138240
      %v622 = vsel %vm621, %v614, %v616
      %v623 = vsel %vm621, %v616, %v618
      %v624 = vsel %vm621, %v618, %v620
      %628 = vst [vmem:[#allocation2 + $0x30] sm:$0xff] %v622
      %629 = vst [vmem:[#allocation2 + $0x38] sm:$0xff] %v623
      %630 = vst [vmem:[#allocation2 + $0x40] sm:$0xff] %v624
      %v631 = vld [vmem:[%s543] sm:$0xff]
      %v632 = vld [vmem:[%s543 + $0x8] sm:$0xff]
      %v633 = vld [vmem:[%s543 + $0x10] sm:$0xff]
      %v634 = vld [vmem:[%s543 + $0x18] sm:$0xff]
      %639 = vrot.lane.b32.xlu0 %v631, 1
      %v640 = vpop.permute.xlu0 %639
      %641 = vrot.lane.b32.xlu0 %v632, 1
      %v642 = vpop.permute.xlu0 %641
      %643 = vrot.lane.b32.xlu0 %v633, 1
      %v644 = vpop.permute.xlu0 %643
      %645 = vrot.lane.b32.xlu0 %v634, 1
      %v646 = vpop.permute.xlu0 %645
      %vm647 = vcmask 7168
      %v648 = vsel %vm647, %v640, %v642
      %v649 = vsel %vm647, %v642, %v644
      %v650 = vsel %vm647, %v644, %v646
      %654 = vst [vmem:[#allocation2 + $0x48] sm:$0xff] %v648
      %655 = vst [vmem:[#allocation2 + $0x50] sm:$0xff] %v649
      %656 = vst [vmem:[#allocation2 + $0x58] sm:$0xff] %v650
      %v657 = vld [vmem:[%s543 + $0x8] sm:$0xff]
      %v658 = vld [vmem:[%s543 + $0x10] sm:$0xff]
      %v659 = vld [vmem:[%s543 + $0x18] sm:$0xff]
      %660 = vst [vmem:[#allocation2 + $0x60] sm:$0xff] %v657
      %661 = vst [vmem:[#allocation2 + $0x68] sm:$0xff] %v658
      %662 = vst [vmem:[#allocation2 + $0x70] sm:$0xff] %v659
      %v663 = vld [vmem:[%s543 + $0x8] sm:$0xff]
      %v664 = vld [vmem:[%s543 + $0x10] sm:$0xff]
      %v665 = vld [vmem:[%s543 + $0x18] sm:$0xff]
      %v666 = vld [vmem:[%s543 + $0x20] sm:$0xff]
      %671 = vrot.lane.b32.xlu0 %v663, 127
      %v672 = vpop.permute.xlu0 %671
      %673 = vrot.lane.b32.xlu0 %v664, 127
      %v674 = vpop.permute.xlu0 %673
      %675 = vrot.lane.b32.xlu0 %v665, 127
      %v676 = vpop.permute.xlu0 %675
      %677 = vrot.lane.b32.xlu0 %v666, 127
      %v678 = vpop.permute.xlu0 %677
      %vm679 = vcmask 1039360
      %v680 = vsel %vm679, %v672, %v674
      %v681 = vsel %vm679, %v674, %v676
      %v682 = vsel %vm679, %v676, %v678
      %686 = vst [vmem:[#allocation2 + $0x78] sm:$0xff] %v680
      %687 = vst [vmem:[#allocation2 + $0x80] sm:$0xff] %v681
      %688 = vst [vmem:[#allocation2 + $0x88] sm:$0xff] %v682
      %v689 = vld [vmem:[%s543 + $0x8] sm:$0xff]
      %v690 = vld [vmem:[%s543 + $0x10] sm:$0xff]
      %v691 = vld [vmem:[%s543 + $0x18] sm:$0xff]
      %v692 = vld [vmem:[%s543 + $0x20] sm:$0xff]
      %697 = vrot.lane.b32.xlu0 %v689, 111
      %v698 = vpop.permute.xlu0 %697
      %699 = vrot.lane.b32.xlu0 %v690, 111
      %v700 = vpop.permute.xlu0 %699
      %701 = vrot.lane.b32.xlu0 %v691, 111
      %v702 = vpop.permute.xlu0 %701
      %703 = vrot.lane.b32.xlu0 %v692, 111
      %v704 = vpop.permute.xlu0 %703
      %vm705 = vcmask 908288
      %v706 = vsel %vm705, %v698, %v700
      %v707 = vsel %vm705, %v700, %v702
      %v708 = vsel %vm705, %v702, %v704
      %712 = vst [vmem:[#allocation2 + $0x90] sm:$0xff] %v706
      %713 = vst [vmem:[#allocation2 + $0x98] sm:$0xff] %v707
      %714 = vst [vmem:[#allocation2 + $0xa0] sm:$0xff] %v708
      %v715 = vld [vmem:[%s543 + $0x8] sm:$0xff]
      %v716 = vld [vmem:[%s543 + $0x10] sm:$0xff]
      %v717 = vld [vmem:[%s543 + $0x18] sm:$0xff]
      %v718 = vld [vmem:[%s543 + $0x20] sm:$0xff]
      %723 = vrot.lane.b32.xlu0 %v715, 110
      %v724 = vpop.permute.xlu0 %723
      %725 = vrot.lane.b32.xlu0 %v716, 110
      %v726 = vpop.permute.xlu0 %725
      %727 = vrot.lane.b32.xlu0 %v717, 110
      %v728 = vpop.permute.xlu0 %727
      %729 = vrot.lane.b32.xlu0 %v718, 110
      %v730 = vpop.permute.xlu0 %729
      %vm731 = vcmask 900096
      %v732 = vsel %vm731, %v724, %v726
      %v733 = vsel %vm731, %v726, %v728
      %v734 = vsel %vm731, %v728, %v730
      %738 = vst [vmem:[#allocation2 + $0xa8] sm:$0xff] %v732
      %739 = vst [vmem:[#allocation2 + $0xb0] sm:$0xff] %v733
      %740 = vst [vmem:[#allocation2 + $0xb8] sm:$0xff] %v734
      %v741 = vld [vmem:[%s543 + $0x8] sm:$0xff]
      %v742 = vld [vmem:[%s543 + $0x10] sm:$0xff]
      %v743 = vld [vmem:[%s543 + $0x18] sm:$0xff]
      %v744 = vld [vmem:[%s543 + $0x20] sm:$0xff]
      %749 = vrot.lane.b32.xlu0 %v741, 109
      %v750 = vpop.permute.xlu0 %749
      %751 = vrot.lane.b32.xlu0 %v742, 109
      %v752 = vpop.permute.xlu0 %751
      %753 = vrot.lane.b32.xlu0 %v743, 109
      %v754 = vpop.permute.xlu0 %753
      %755 = vrot.lane.b32.xlu0 %v744, 109
      %v756 = vpop.permute.xlu0 %755
      %vm757 = vcmask 891904
      %v758 = vsel %vm757, %v750, %v752
      %v759 = vsel %vm757, %v752, %v754
      %v760 = vsel %vm757, %v754, %v756
      %764 = vst [vmem:[#allocation2 + $0xc0] sm:$0xff] %v758
      %765 = vst [vmem:[#allocation2 + $0xc8] sm:$0xff] %v759
      %766 = vst [vmem:[#allocation2 + $0xd0] sm:$0xff] %v760
      %v767 = vld [vmem:[%s1] sm:$0xff]
      %v768 = vld [vmem:[#allocation2] sm:$0xff]
      %v769 = vld [vmem:[#allocation2 + $0x8] sm:$0xff]
      %v770 = vld [vmem:[#allocation2 + $0x10] sm:$0xff]
      %v771 = vld [vmem:[#allocation2 + $0x18] sm:$0xff]
      %v772 = vld [vmem:[#allocation2 + $0x20] sm:$0xff]
      %v773 = vld [vmem:[#allocation2 + $0x28] sm:$0xff]
      %v774 = vld [vmem:[#allocation2 + $0x30] sm:$0xff]
      %v775 = vld [vmem:[#allocation2 + $0x38] sm:$0xff]
      %v776 = vld [vmem:[#allocation2 + $0x40] sm:$0xff]
      %v777 = vld [vmem:[#allocation2 + $0x48] sm:$0xff]
      %v778 = vld [vmem:[#allocation2 + $0x50] sm:$0xff]
      %v779 = vld [vmem:[#allocation2 + $0x58] sm:$0xff]
      %v780 = vld [vmem:[#allocation2 + $0x60] sm:$0xff]
      %v781 = vld [vmem:[#allocation2 + $0x68] sm:$0xff]
      %v782 = vld [vmem:[#allocation2 + $0x70] sm:$0xff]
      %v783 = vld [vmem:[#allocation2 + $0x78] sm:$0xff]
      %v784 = vld [vmem:[#allocation2 + $0x80] sm:$0xff]
      %v785 = vld [vmem:[#allocation2 + $0x88] sm:$0xff]
      %v786 = vld [vmem:[#allocation2 + $0x90] sm:$0xff]
      %v787 = vld [vmem:[#allocation2 + $0x98] sm:$0xff]
      %v788 = vld [vmem:[#allocation2 + $0xa0] sm:$0xff]
      %v789 = vld [vmem:[#allocation2 + $0xa8] sm:$0xff]
      %v790 = vld [vmem:[#allocation2 + $0xb0] sm:$0xff]
      %v791 = vld [vmem:[#allocation2 + $0xb8] sm:$0xff]
      %v792 = vld [vmem:[#allocation2 + $0xc0] sm:$0xff]
      %v793 = vld [vmem:[#allocation2 + $0xc8] sm:$0xff]
      %v794 = vld [vmem:[#allocation2 + $0xd0] sm:$0xff]
      %v795 = vld [vmem:[%s2] sm:$0xff]
      %797 = vset.pattern.permute.xlu0 0
      %798 = vperm.xlu0 %797, %v795
      %v799 = vpop.permute.xlu0 %798
      %vm801 = vcmask 588800
      %v803 = vsel %vm801, %v767, 0
      %805 = vmatprep.subr.mxu0 0.0
      %806 = vmatpush1.msra.mxu0 0.0
      %807 = vmatprep.subr.mxu0 0.0
      %808 = vmatpush1.msra.mxu0 0.0
      %809 = vmatprep.subr.mxu0 0.0
      %810 = vmatpush1.msra.mxu0 0.0
      %811 = vmatprep.subr.mxu0 0.0
      %812 = vmatpush1.msra.mxu0 0.0
      %813 = vmatprep.subr.mxu0 0.0
      %814 = vmatpush1.msra.mxu0 0.0
      %815 = vmatprep.subr.mxu0 0.0
      %816 = vmatpush1.msra.mxu0 0.0
      %817 = vmatprep.subr.mxu0 0.0
      %818 = vmatpush1.msra.mxu0 0.0
      %819 = vmatprep.subr.mxu0 %v793
      %820 = vmatpush1.msra.mxu0 %v792
      %821 = vmatprep.subr.mxu0 %v790
      %822 = vmatpush1.msra.mxu0 %v789
      %823 = vmatprep.subr.mxu0 %v787
      %824 = vmatpush1.msra.mxu0 %v786
      %825 = vmatprep.subr.mxu0 %v784
      %826 = vmatpush1.msra.mxu0 %v783
      %827 = vmatprep.subr.mxu0 %v781
      %828 = vmatpush1.msra.mxu0 %v780
      %829 = vmatprep.subr.mxu0 %v778
      %830 = vmatpush1.msra.mxu0 %v777
      %831 = vmatprep.subr.mxu0 %v775
      %832 = vmatpush1.msra.mxu0 %v774
      %833 = vmatprep.subr.mxu0 %v772
      %834 = vmatpush1.msra.mxu0 %v771
      %835 = vmatprep.subr.mxu0 %v769
      %836 = vmatpush1.msra.mxu0 %v768
      %837 = vmatprep.subr.mxu0 0.0
      %838 = vmatpush2.msra.mxu0 0.0
      %839 = vmatprep.subr.mxu0 0.0
      %840 = vmatpush2.msra.mxu0 0.0
      %841 = vmatprep.subr.mxu0 0.0
      %842 = vmatpush2.msra.mxu0 0.0
      %843 = vmatprep.subr.mxu0 0.0
      %844 = vmatpush2.msra.mxu0 0.0
      %845 = vmatprep.subr.mxu0 0.0
      %846 = vmatpush2.msra.mxu0 0.0
      %847 = vmatprep.subr.mxu0 0.0
      %848 = vmatpush2.msra.mxu0 0.0
      %849 = vmatprep.subr.mxu0 0.0
      %850 = vmatpush2.msra.mxu0 0.0
      %851 = vmatprep.subr.mxu0 0.0
      %852 = vmatpush2.msra.mxu0 0.0
      %853 = vmatprep.subr.mxu0 0.0
      %854 = vmatpush2.msra.mxu0 0.0
      %855 = vmatprep.subr.mxu0 0.0
      %856 = vmatpush2.msra.mxu0 0.0
      %857 = vmatprep.subr.mxu0 0.0
      %858 = vmatpush2.msra.mxu0 0.0
      %859 = vmatprep.subr.mxu0 0.0
      %860 = vmatpush2.msra.mxu0 0.0
      %861 = vmatprep.subr.mxu0 0.0
      %862 = vmatpush2.msra.mxu0 0.0
      %863 = vmatprep.subr.mxu0 0.0
      %864 = vmatpush2.msra.mxu0 0.0
      %865 = vmatprep.subr.mxu0 0.0
      %866 = vmatpush2.msra.mxu0 0.0
      %867 = vmatprep.subr.mxu0 0.0
      %868 = vmatpush2.msra.mxu0 0.0
      %869 = vmatprep.mubr.f32.mxu0 0.0
      %870 = vmatmul.mubr.f32.gmra.mxu0 %v803
      %v871 = vpop.f32.mrf.mxu0
      %v872 = vadd.f32 %v799, %v871
      %v873 = vpop.f32.mrf.mxu0
      %v874 = vadd.f32 %v799, %v873
      %875 = vdwg.mxu0
      %876 = vmatprep.subr.mxu0 0.0
      %877 = vmatpush1.msra.mxu0 0.0
      %878 = vmatprep.subr.mxu0 0.0
      %879 = vmatpush1.msra.mxu0 0.0
      %880 = vmatprep.subr.mxu0 0.0
      %881 = vmatpush1.msra.mxu0 0.0
      %882 = vmatprep.subr.mxu0 0.0
      %883 = vmatpush1.msra.mxu0 0.0
      %884 = vmatprep.subr.mxu0 0.0
      %885 = vmatpush1.msra.mxu0 0.0
      %886 = vmatprep.subr.mxu0 0.0
      %887 = vmatpush1.msra.mxu0 0.0
      %888 = vmatprep.subr.mxu0 0.0
      %889 = vmatpush1.msra.mxu0 0.0
      %890 = vmatprep.subr.mxu0 0.0
      %891 = vmatpush1.msra.mxu0 %v794
      %892 = vmatprep.subr.mxu0 0.0
      %893 = vmatpush1.msra.mxu0 %v791
      %894 = vmatprep.subr.mxu0 0.0
      %895 = vmatpush1.msra.mxu0 %v788
      %896 = vmatprep.subr.mxu0 0.0
      %897 = vmatpush1.msra.mxu0 %v785
      %898 = vmatprep.subr.mxu0 0.0
      %899 = vmatpush1.msra.mxu0 %v782
      %900 = vmatprep.subr.mxu0 0.0
      %901 = vmatpush1.msra.mxu0 %v779
      %902 = vmatprep.subr.mxu0 0.0
      %903 = vmatpush1.msra.mxu0 %v776
      %904 = vmatprep.subr.mxu0 0.0
      %905 = vmatpush1.msra.mxu0 %v773
      %906 = vmatprep.subr.mxu0 0.0
      %907 = vmatpush1.msra.mxu0 %v770
      %908 = vmatprep.subr.mxu0 0.0
      %909 = vmatpush2.msra.mxu0 0.0
      %910 = vmatprep.subr.mxu0 0.0
      %911 = vmatpush2.msra.mxu0 0.0
      %912 = vmatprep.subr.mxu0 0.0
      %913 = vmatpush2.msra.mxu0 0.0
      %914 = vmatprep.subr.mxu0 0.0
      %915 = vmatpush2.msra.mxu0 0.0
      %916 = vmatprep.subr.mxu0 0.0
      %917 = vmatpush2.msra.mxu0 0.0
      %918 = vmatprep.subr.mxu0 0.0
      %919 = vmatpush2.msra.mxu0 0.0
      %920 = vmatprep.subr.mxu0 0.0
      %921 = vmatpush2.msra.mxu0 0.0
      %922 = vmatprep.subr.mxu0 0.0
      %923 = vmatpush2.msra.mxu0 0.0
      %924 = vmatprep.subr.mxu0 0.0
      %925 = vmatpush2.msra.mxu0 0.0
      %926 = vmatprep.subr.mxu0 0.0
      %927 = vmatpush2.msra.mxu0 0.0
      %928 = vmatprep.subr.mxu0 0.0
      %929 = vmatpush2.msra.mxu0 0.0
      %930 = vmatprep.subr.mxu0 0.0
      %931 = vmatpush2.msra.mxu0 0.0
      %932 = vmatprep.subr.mxu0 0.0
      %933 = vmatpush2.msra.mxu0 0.0
      %934 = vmatprep.subr.mxu0 0.0
      %935 = vmatpush2.msra.mxu0 0.0
      %936 = vmatprep.subr.mxu0 0.0
      %937 = vmatpush2.msra.mxu0 0.0
      %938 = vmatprep.subr.mxu0 0.0
      %939 = vmatpush2.msra.mxu0 0.0
      %940 = vmatprep.mubr.f32.mxu0 0.0
      %941 = vmatmul.mubr.f32.gmra.mxu0 %v803
      %v942 = vpop.f32.mrf.mxu0
      %v943 = vadd.f32 %v799, %v942
      %v944 = vpop.f32.mrf.mxu0
      %945 = vdwg.mxu0
      %v946 = vmax.f32 %v872, 0.0
      %v947 = vmax.f32 %v874, 0.0
      %v948 = vmax.f32 %v943, 0.0
      %v949 = vsel %vm550, 1, 0
      %v950 = vlaneseq
      %v951 = vshrl.u32 %v950, 7
      %v952 = vsub.s32 0, %v951
      %v953 = vrot.slane %v949, %v952
      %v954 = vlaneseq
      %v955 = vshrl.u32 %v954, 7
      %v956 = vsub.s32 1, %v955
      %v957 = vrot.slane %v949, %v956
      %v958 = vlaneseq
      %v959 = vshrl.u32 %v958, 7
      %v960 = vsub.s32 2, %v959
      %v961 = vrot.slane %v949, %v960
      %vm962 = vcmp.eq.s32.totalorder %v953, 1
      %vm963 = vcmp.eq.s32.totalorder %v957, 1
      %vm964 = vcmp.eq.s32.totalorder %v961, 1
      %v965 = vsel %vm962, %v946, 0.0
      %v966 = vsel %vm963, %v947, 0.0
      %v967 = vsel %vm964, %v948, 0.0
      %968 = vst [vmem:[#allocation3 + $0x8] sm:$0xff] %v965
      %969 = vst [vmem:[#allocation3 + $0x10] sm:$0xff] %v966
      %970 = vst [vmem:[#allocation3 + $0x18] sm:$0xff] %v967
      %v971 = vld [vmem:[#allocation3] sm:$0xff]
      %v972 = vld [vmem:[#allocation3 + $0x8] sm:$0xff]
      %v973 = vld [vmem:[#allocation3 + $0x10] sm:$0xff]
      %v974 = vld [vmem:[#allocation3 + $0x18] sm:$0xff]
      %979 = vrot.lane.b32.xlu0 %v971, 19
      %v980 = vpop.permute.xlu0 %979
      %981 = vrot.lane.b32.xlu0 %v972, 19
      %v982 = vpop.permute.xlu0 %981
      %983 = vrot.lane.b32.xlu0 %v973, 19
      %v984 = vpop.permute.xlu0 %983
      %985 = vrot.lane.b32.xlu0 %v974, 19
      %v986 = vpop.permute.xlu0 %985
      %v987 = vsel %vm569, %v980, %v982
      %v988 = vsel %vm569, %v982, %v984
      %v989 = vsel %vm569, %v984, %v986
      %993 = vst [vmem:[#allocation2] sm:$0xff] %v987
      %994 = vst [vmem:[#allocation2 + $0x8] sm:$0xff] %v988
      %995 = vst [vmem:[#allocation2 + $0x10] sm:$0xff] %v989
      %v996 = vld [vmem:[#allocation3] sm:$0xff]
      %v997 = vld [vmem:[#allocation3 + $0x8] sm:$0xff]
      %v998 = vld [vmem:[#allocation3 + $0x10] sm:$0xff]
      %v999 = vld [vmem:[#allocation3 + $0x18] sm:$0xff]
      %1004 = vrot.lane.b32.xlu0 %v996, 18
      %v1005 = vpop.permute.xlu0 %1004
      %1006 = vrot.lane.b32.xlu0 %v997, 18
      %v1007 = vpop.permute.xlu0 %1006
      %1008 = vrot.lane.b32.xlu0 %v998, 18
      %v1009 = vpop.permute.xlu0 %1008
      %1010 = vrot.lane.b32.xlu0 %v999, 18
      %v1011 = vpop.permute.xlu0 %1010
      %v1012 = vsel %vm595, %v1005, %v1007
      %v1013 = vsel %vm595, %v1007, %v1009
      %v1014 = vsel %vm595, %v1009, %v1011
      %1018 = vst [vmem:[#allocation2 + $0x18] sm:$0xff] %v1012
      %1019 = vst [vmem:[#allocation2 + $0x20] sm:$0xff] %v1013
      %1020 = vst [vmem:[#allocation2 + $0x28] sm:$0xff] %v1014
      %v1021 = vld [vmem:[#allocation3] sm:$0xff]
      %v1022 = vld [vmem:[#allocation3 + $0x8] sm:$0xff]
      %v1023 = vld [vmem:[#allocation3 + $0x10] sm:$0xff]
      %v1024 = vld [vmem:[#allocation3 + $0x18] sm:$0xff]
      %1029 = vrot.lane.b32.xlu0 %v1021, 17
      %v1030 = vpop.permute.xlu0 %1029
      %1031 = vrot.lane.b32.xlu0 %v1022, 17
      %v1032 = vpop.permute.xlu0 %1031
      %1033 = vrot.lane.b32.xlu0 %v1023, 17
      %v1034 = vpop.permute.xlu0 %1033
      %1035 = vrot.lane.b32.xlu0 %v1024, 17
      %v1036 = vpop.permute.xlu0 %1035
      %v1037 = vsel %vm621, %v1030, %v1032
      %v1038 = vsel %vm621, %v1032, %v1034
      %v1039 = vsel %vm621, %v1034, %v1036
      %1043 = vst [vmem:[#allocation2 + $0x30] sm:$0xff] %v1037
      %1044 = vst [vmem:[#allocation2 + $0x38] sm:$0xff] %v1038
      %1045 = vst [vmem:[#allocation2 + $0x40] sm:$0xff] %v1039
      %v1046 = vld [vmem:[#allocation3] sm:$0xff]
      %v1047 = vld [vmem:[#allocation3 + $0x8] sm:$0xff]
      %v1048 = vld [vmem:[#allocation3 + $0x10] sm:$0xff]
      %v1049 = vld [vmem:[#allocation3 + $0x18] sm:$0xff]
      %1054 = vrot.lane.b32.xlu0 %v1046, 1
      %v1055 = vpop.permute.xlu0 %1054
      %1056 = vrot.lane.b32.xlu0 %v1047, 1
      %v1057 = vpop.permute.xlu0 %1056
      %1058 = vrot.lane.b32.xlu0 %v1048, 1
      %v1059 = vpop.permute.xlu0 %1058
      %1060 = vrot.lane.b32.xlu0 %v1049, 1
      %v1061 = vpop.permute.xlu0 %1060
      %v1062 = vsel %vm647, %v1055, %v1057
      %v1063 = vsel %vm647, %v1057, %v1059
      %v1064 = vsel %vm647, %v1059, %v1061
      %1068 = vst [vmem:[#allocation2 + $0x48] sm:$0xff] %v1062
      %1069 = vst [vmem:[#allocation2 + $0x50] sm:$0xff] %v1063
      %1070 = vst [vmem:[#allocation2 + $0x58] sm:$0xff] %v1064
      %v1071 = vld [vmem:[#allocation3 + $0x8] sm:$0xff]
      %v1072 = vld [vmem:[#allocation3 + $0x10] sm:$0xff]
      %v1073 = vld [vmem:[#allocation3 + $0x18] sm:$0xff]
      %1074 = vst [vmem:[#allocation2 + $0x60] sm:$0xff] %v1071
      %1075 = vst [vmem:[#allocation2 + $0x68] sm:$0xff] %v1072
      %1076 = vst [vmem:[#allocation2 + $0x70] sm:$0xff] %v1073
      %v1077 = vld [vmem:[#allocation3 + $0x8] sm:$0xff]
      %v1078 = vld [vmem:[#allocation3 + $0x10] sm:$0xff]
      %v1079 = vld [vmem:[#allocation3 + $0x18] sm:$0xff]
      %v1080 = vld [vmem:[#allocation3 + $0x20] sm:$0xff]
      %1085 = vrot.lane.b32.xlu0 %v1077, 127
      %v1086 = vpop.permute.xlu0 %1085
      %1087 = vrot.lane.b32.xlu0 %v1078, 127
      %v1088 = vpop.permute.xlu0 %1087
      %1089 = vrot.lane.b32.xlu0 %v1079, 127
      %v1090 = vpop.permute.xlu0 %1089
      %1091 = vrot.lane.b32.xlu0 %v1080, 127
      %v1092 = vpop.permute.xlu0 %1091
      %v1093 = vsel %vm679, %v1086, %v1088
      %v1094 = vsel %vm679, %v1088, %v1090
      %v1095 = vsel %vm679, %v1090, %v1092
      %1099 = vst [vmem:[#allocation2 + $0x78] sm:$0xff] %v1093
      %1100 = vst [vmem:[#allocation2 + $0x80] sm:$0xff] %v1094
      %1101 = vst [vmem:[#allocation2 + $0x88] sm:$0xff] %v1095
      %v1102 = vld [vmem:[#allocation3 + $0x8] sm:$0xff]
      %v1103 = vld [vmem:[#allocation3 + $0x10] sm:$0xff]
      %v1104 = vld [vmem:[#allocation3 + $0x18] sm:$0xff]
      %v1105 = vld [vmem:[#allocation3 + $0x20] sm:$0xff]
      %1110 = vrot.lane.b32.xlu0 %v1102, 111
      %v1111 = vpop.permute.xlu0 %1110
      %1112 = vrot.lane.b32.xlu0 %v1103, 111
      %v1113 = vpop.permute.xlu0 %1112
      %1114 = vrot.lane.b32.xlu0 %v1104, 111
      %v1115 = vpop.permute.xlu0 %1114
      %1116 = vrot.lane.b32.xlu0 %v1105, 111
      %v1117 = vpop.permute.xlu0 %1116
      %v1118 = vsel %vm705, %v1111, %v1113
      %v1119 = vsel %vm705, %v1113, %v1115
      %v1120 = vsel %vm705, %v1115, %v1117
      %1124 = vst [vmem:[#allocation2 + $0x90] sm:$0xff] %v1118
      %1125 = vst [vmem:[#allocation2 + $0x98] sm:$0xff] %v1119
      %1126 = vst [vmem:[#allocation2 + $0xa0] sm:$0xff] %v1120
      %v1127 = vld [vmem:[#allocation3 + $0x8] sm:$0xff]
      %v1128 = vld [vmem:[#allocation3 + $0x10] sm:$0xff]
      %v1129 = vld [vmem:[#allocation3 + $0x18] sm:$0xff]
      %v1130 = vld [vmem:[#allocation3 + $0x20] sm:$0xff]
      %1135 = vrot.lane.b32.xlu0 %v1127, 110
      %v1136 = vpop.permute.xlu0 %1135
      %1137 = vrot.lane.b32.xlu0 %v1128, 110
      %v1138 = vpop.permute.xlu0 %1137
      %1139 = vrot.lane.b32.xlu0 %v1129, 110
      %v1140 = vpop.permute.xlu0 %1139
      %1141 = vrot.lane.b32.xlu0 %v1130, 110
      %v1142 = vpop.permute.xlu0 %1141
      %v1143 = vsel %vm731, %v1136, %v1138
      %v1144 = vsel %vm731, %v1138, %v1140
      %v1145 = vsel %vm731, %v1140, %v1142
      %1149 = vst [vmem:[#allocation2 + $0xa8] sm:$0xff] %v1143
      %1150 = vst [vmem:[#allocation2 + $0xb0] sm:$0xff] %v1144
      %1151 = vst [vmem:[#allocation2 + $0xb8] sm:$0xff] %v1145
      %v1152 = vld [vmem:[#allocation3 + $0x8] sm:$0xff]
      %v1153 = vld [vmem:[#allocation3 + $0x10] sm:$0xff]
      %v1154 = vld [vmem:[#allocation3 + $0x18] sm:$0xff]
      %v1155 = vld [vmem:[#allocation3 + $0x20] sm:$0xff]
      %1160 = vrot.lane.b32.xlu0 %v1152, 109
      %v1161 = vpop.permute.xlu0 %1160
      %1162 = vrot.lane.b32.xlu0 %v1153, 109
      %v1163 = vpop.permute.xlu0 %1162
      %1164 = vrot.lane.b32.xlu0 %v1154, 109
      %v1165 = vpop.permute.xlu0 %1164
      %1166 = vrot.lane.b32.xlu0 %v1155, 109
      %v1167 = vpop.permute.xlu0 %1166
      %v1168 = vsel %vm757, %v1161, %v1163
      %v1169 = vsel %vm757, %v1163, %v1165
      %v1170 = vsel %vm757, %v1165, %v1167
      %1174 = vst [vmem:[#allocation2 + $0xc0] sm:$0xff] %v1168
      %1175 = vst [vmem:[#allocation2 + $0xc8] sm:$0xff] %v1169
      %1176 = vst [vmem:[#allocation2 + $0xd0] sm:$0xff] %v1170
      %v1177 = vld [vmem:[%s3] sm:$0xff]
      %v1178 = vld [vmem:[#allocation2] sm:$0xff]
      %v1179 = vld [vmem:[#allocation2 + $0x8] sm:$0xff]
      %v1180 = vld [vmem:[#allocation2 + $0x10] sm:$0xff]
      %v1181 = vld [vmem:[#allocation2 + $0x18] sm:$0xff]
      %v1182 = vld [vmem:[#allocation2 + $0x20] sm:$0xff]
      %v1183 = vld [vmem:[#allocation2 + $0x28] sm:$0xff]
      %v1184 = vld [vmem:[#allocation2 + $0x30] sm:$0xff]
      %v1185 = vld [vmem:[#allocation2 + $0x38] sm:$0xff]
      %v1186 = vld [vmem:[#allocation2 + $0x40] sm:$0xff]
      %v1187 = vld [vmem:[#allocation2 + $0x48] sm:$0xff]
      %v1188 = vld [vmem:[#allocation2 + $0x50] sm:$0xff]
      %v1189 = vld [vmem:[#allocation2 + $0x58] sm:$0xff]
      %v1190 = vld [vmem:[#allocation2 + $0x60] sm:$0xff]
      %v1191 = vld [vmem:[#allocation2 + $0x68] sm:$0xff]
      %v1192 = vld [vmem:[#allocation2 + $0x70] sm:$0xff]
      %v1193 = vld [vmem:[#allocation2 + $0x78] sm:$0xff]
      %v1194 = vld [vmem:[#allocation2 + $0x80] sm:$0xff]
      %v1195 = vld [vmem:[#allocation2 + $0x88] sm:$0xff]
      %v1196 = vld [vmem:[#allocation2 + $0x90] sm:$0xff]
      %v1197 = vld [vmem:[#allocation2 + $0x98] sm:$0xff]
      %v1198 = vld [vmem:[#allocation2 + $0xa0] sm:$0xff]
      %v1199 = vld [vmem:[#allocation2 + $0xa8] sm:$0xff]
      %v1200 = vld [vmem:[#allocation2 + $0xb0] sm:$0xff]
      %v1201 = vld [vmem:[#allocation2 + $0xb8] sm:$0xff]
      %v1202 = vld [vmem:[#allocation2 + $0xc0] sm:$0xff]
      %v1203 = vld [vmem:[#allocation2 + $0xc8] sm:$0xff]
      %v1204 = vld [vmem:[#allocation2 + $0xd0] sm:$0xff]
      %v1205 = vld [vmem:[%s4] sm:$0xff]
      %1207 = vset.pattern.permute.xlu0 0
      %1208 = vperm.xlu0 %1207, %v1205
      %v1209 = vpop.permute.xlu0 %1208
      %v1212 = vsel %vm801, %v1177, 0
      %1214 = vmatprep.subr.mxu0 0.0
      %1215 = vmatpush1.msra.mxu0 0.0
      %1216 = vmatprep.subr.mxu0 0.0
      %1217 = vmatpush1.msra.mxu0 0.0
      %1218 = vmatprep.subr.mxu0 0.0
      %1219 = vmatpush1.msra.mxu0 0.0
      %1220 = vmatprep.subr.mxu0 0.0
      %1221 = vmatpush1.msra.mxu0 0.0
      %1222 = vmatprep.subr.mxu0 0.0
      %1223 = vmatpush1.msra.mxu0 0.0
      %1224 = vmatprep.subr.mxu0 0.0
      %1225 = vmatpush1.msra.mxu0 0.0
      %1226 = vmatprep.subr.mxu0 0.0
      %1227 = vmatpush1.msra.mxu0 0.0
      %1228 = vmatprep.subr.mxu0 %v1203
      %1229 = vmatpush1.msra.mxu0 %v1202
      %1230 = vmatprep.subr.mxu0 %v1200
      %1231 = vmatpush1.msra.mxu0 %v1199
      %1232 = vmatprep.subr.mxu0 %v1197
      %1233 = vmatpush1.msra.mxu0 %v1196
      %1234 = vmatprep.subr.mxu0 %v1194
      %1235 = vmatpush1.msra.mxu0 %v1193
      %1236 = vmatprep.subr.mxu0 %v1191
      %1237 = vmatpush1.msra.mxu0 %v1190
      %1238 = vmatprep.subr.mxu0 %v1188
      %1239 = vmatpush1.msra.mxu0 %v1187
      %1240 = vmatprep.subr.mxu0 %v1185
      %1241 = vmatpush1.msra.mxu0 %v1184
      %1242 = vmatprep.subr.mxu0 %v1182
      %1243 = vmatpush1.msra.mxu0 %v1181
      %1244 = vmatprep.subr.mxu0 %v1179
      %1245 = vmatpush1.msra.mxu0 %v1178
      %1246 = vmatprep.subr.mxu0 0.0
      %1247 = vmatpush2.msra.mxu0 0.0
      %1248 = vmatprep.subr.mxu0 0.0
      %1249 = vmatpush2.msra.mxu0 0.0
      %1250 = vmatprep.subr.mxu0 0.0
      %1251 = vmatpush2.msra.mxu0 0.0
      %1252 = vmatprep.subr.mxu0 0.0
      %1253 = vmatpush2.msra.mxu0 0.0
      %1254 = vmatprep.subr.mxu0 0.0
      %1255 = vmatpush2.msra.mxu0 0.0
      %1256 = vmatprep.subr.mxu0 0.0
      %1257 = vmatpush2.msra.mxu0 0.0
      %1258 = vmatprep.subr.mxu0 0.0
      %1259 = vmatpush2.msra.mxu0 0.0
      %1260 = vmatprep.subr.mxu0 0.0
      %1261 = vmatpush2.msra.mxu0 0.0
      %1262 = vmatprep.subr.mxu0 0.0
      %1263 = vmatpush2.msra.mxu0 0.0
      %1264 = vmatprep.subr.mxu0 0.0
      %1265 = vmatpush2.msra.mxu0 0.0
      %1266 = vmatprep.subr.mxu0 0.0
      %1267 = vmatpush2.msra.mxu0 0.0
      %1268 = vmatprep.subr.mxu0 0.0
      %1269 = vmatpush2.msra.mxu0 0.0
      %1270 = vmatprep.subr.mxu0 0.0
      %1271 = vmatpush2.msra.mxu0 0.0
      %1272 = vmatprep.subr.mxu0 0.0
      %1273 = vmatpush2.msra.mxu0 0.0
      %1274 = vmatprep.subr.mxu0 0.0
      %1275 = vmatpush2.msra.mxu0 0.0
      %1276 = vmatprep.subr.mxu0 0.0
      %1277 = vmatpush2.msra.mxu0 0.0
      %1278 = vmatprep.mubr.f32.mxu0 0.0
      %1279 = vmatmul.mubr.f32.gmra.mxu0 %v1212
      %v1280 = vpop.f32.mrf.mxu0
      %v1281 = vadd.f32 %v1209, %v1280
      %v1282 = vpop.f32.mrf.mxu0
      %v1283 = vadd.f32 %v1209, %v1282
      %1284 = vdwg.mxu0
      %1285 = vmatprep.subr.mxu0 0.0
      %1286 = vmatpush1.msra.mxu0 0.0
      %1287 = vmatprep.subr.mxu0 0.0
      %1288 = vmatpush1.msra.mxu0 0.0
      %1289 = vmatprep.subr.mxu0 0.0
      %1290 = vmatpush1.msra.mxu0 0.0
      %1291 = vmatprep.subr.mxu0 0.0
      %1292 = vmatpush1.msra.mxu0 0.0
      %1293 = vmatprep.subr.mxu0 0.0
      %1294 = vmatpush1.msra.mxu0 0.0
      %1295 = vmatprep.subr.mxu0 0.0
      %1296 = vmatpush1.msra.mxu0 0.0
      %1297 = vmatprep.subr.mxu0 0.0
      %1298 = vmatpush1.msra.mxu0 0.0
      %1299 = vmatprep.subr.mxu0 0.0
      %1300 = vmatpush1.msra.mxu0 %v1204
      %1301 = vmatprep.subr.mxu0 0.0
      %1302 = vmatpush1.msra.mxu0 %v1201
      %1303 = vmatprep.subr.mxu0 0.0
      %1304 = vmatpush1.msra.mxu0 %v1198
      %1305 = vmatprep.subr.mxu0 0.0
      %1306 = vmatpush1.msra.mxu0 %v1195
      %1307 = vmatprep.subr.mxu0 0.0
      %1308 = vmatpush1.msra.mxu0 %v1192
      %1309 = vmatprep.subr.mxu0 0.0
      %1310 = vmatpush1.msra.mxu0 %v1189
      %1311 = vmatprep.subr.mxu0 0.0
      %1312 = vmatpush1.msra.mxu0 %v1186
      %1313 = vmatprep.subr.mxu0 0.0
      %1314 = vmatpush1.msra.mxu0 %v1183
      %1315 = vmatprep.subr.mxu0 0.0
      %1316 = vmatpush1.msra.mxu0 %v1180
      %1317 = vmatprep.subr.mxu0 0.0
      %1318 = vmatpush2.msra.mxu0 0.0
      %1319 = vmatprep.subr.mxu0 0.0
      %1320 = vmatpush2.msra.mxu0 0.0
      %1321 = vmatprep.subr.mxu0 0.0
      %1322 = vmatpush2.msra.mxu0 0.0
      %1323 = vmatprep.subr.mxu0 0.0
      %1324 = vmatpush2.msra.mxu0 0.0
      %1325 = vmatprep.subr.mxu0 0.0
      %1326 = vmatpush2.msra.mxu0 0.0
      %1327 = vmatprep.subr.mxu0 0.0
      %1328 = vmatpush2.msra.mxu0 0.0
      %1329 = vmatprep.subr.mxu0 0.0
      %1330 = vmatpush2.msra.mxu0 0.0
      %1331 = vmatprep.subr.mxu0 0.0
      %1332 = vmatpush2.msra.mxu0 0.0
      %1333 = vmatprep.subr.mxu0 0.0
      %1334 = vmatpush2.msra.mxu0 0.0
      %1335 = vmatprep.subr.mxu0 0.0
      %1336 = vmatpush2.msra.mxu0 0.0
      %1337 = vmatprep.subr.mxu0 0.0
      %1338 = vmatpush2.msra.mxu0 0.0
      %1339 = vmatprep.subr.mxu0 0.0
      %1340 = vmatpush2.msra.mxu0 0.0
      %1341 = vmatprep.subr.mxu0 0.0
      %1342 = vmatpush2.msra.mxu0 0.0
      %1343 = vmatprep.subr.mxu0 0.0
      %1344 = vmatpush2.msra.mxu0 0.0
      %1345 = vmatprep.subr.mxu0 0.0
      %1346 = vmatpush2.msra.mxu0 0.0
      %1347 = vmatprep.subr.mxu0 0.0
      %1348 = vmatpush2.msra.mxu0 0.0
      %1349 = vmatprep.mubr.f32.mxu0 0.0
      %1350 = vmatmul.mubr.f32.gmra.mxu0 %v1212
      %v1351 = vpop.f32.mrf.mxu0
      %v1352 = vadd.f32 %v1209, %v1351
      %v1353 = vpop.f32.mrf.mxu0
      %1354 = vdwg.mxu0
      %v1355 = vmax.f32 %v1281, 0.0
      %v1356 = vmax.f32 %v1283, 0.0
      %v1357 = vmax.f32 %v1352, 0.0
      %v1358 = vsel %vm962, %v1355, 0.0
      %v1359 = vsel %vm963, %v1356, 0.0
      %v1360 = vsel %vm964, %v1357, 0.0
      %1361 = vst [vmem:[#allocation4 + $0x8] sm:$0xff] %v1358
      %1362 = vst [vmem:[#allocation4 + $0x10] sm:$0xff] %v1359
      %1363 = vst [vmem:[#allocation4 + $0x18] sm:$0xff] %v1360
      %v1364 = vld [vmem:[#allocation4 + $0x8] sm:$0xff]
      %v1365 = vld [vmem:[#allocation4 + $0x10] sm:$0xff]
      %v1366 = vld [vmem:[#allocation4 + $0x18] sm:$0xff]
      %v1367 = vld [vmem:[#allocation4 + $0x8] sm:$0xff]
      %v1368 = vld [vmem:[#allocation4 + $0x10] sm:$0xff]
      %v1369 = vld [vmem:[#allocation4 + $0x18] sm:$0xff]
      %v1370 = vld [vmem:[#allocation4 + $0x20] sm:$0xff]
      %1375 = vrot.lane.b32.xlu0 %v1367, 127
      %v1376 = vpop.permute.xlu0 %1375
      %1377 = vrot.lane.b32.xlu0 %v1368, 127
      %v1378 = vpop.permute.xlu0 %1377
      %1379 = vrot.lane.b32.xlu0 %v1369, 127
      %v1380 = vpop.permute.xlu0 %1379
      %1381 = vrot.lane.b32.xlu0 %v1370, 127
      %v1382 = vpop.permute.xlu0 %1381
      %v1383 = vsel %vm679, %v1376, %v1378
      %v1384 = vsel %vm679, %v1378, %v1380
      %v1385 = vsel %vm679, %v1380, %v1382
      %v1389 = vmax.f32 %v1364, %v1383
      %v1390 = vmax.f32 %v1365, %v1384
      %v1391 = vmax.f32 %v1366, %v1385
      %v1393 = vmax.f32 %v1367, %v1383
      %v1394 = vmax.f32 %v1368, %v1384
      %v1395 = vmax.f32 %v1369, %v1385
      %v1396 = vmax.f32 %v1370, %v1382
      %1401 = vrot.lane.b32.xlu0 %v1393, 110
      %v1402 = vpop.permute.xlu0 %1401
      %1403 = vrot.lane.b32.xlu0 %v1394, 110
      %v1404 = vpop.permute.xlu0 %1403
      %1405 = vrot.lane.b32.xlu0 %v1395, 110
      %v1406 = vpop.permute.xlu0 %1405
      %1407 = vrot.lane.b32.xlu0 %v1396, 110
      %v1408 = vpop.permute.xlu0 %1407
      %v1409 = vsel %vm731, %v1402, %v1404
      %v1410 = vsel %vm731, %v1404, %v1406
      %v1411 = vsel %vm731, %v1406, %v1408
      %v1415 = vmax.f32 %v1389, %v1409
      %v1416 = vmax.f32 %v1390, %v1410
      %v1417 = vmax.f32 %v1391, %v1411
      %v1418 = vsel %vm962, %v1415, 0.0
      %v1419 = vsel %vm963, %v1416, 0.0
      %v1420 = vsel %vm964, %v1417, 0.0
      %v1421 = vld [vmem:[%s13] sm:$0xff]
      %v1422 = vld [vmem:[%s13 + $0x8] sm:$0xff]
      %v1423 = vld [vmem:[%s13 + $0x10] sm:$0xff]
      %v1424 = vld [vmem:[%s13 + $0x18] sm:$0xff]
      %v1425 = vld [vmem:[%s13 + $0x20] sm:$0xff]
      %v1426 = vld [vmem:[%s13 + $0x28] sm:$0xff]
      %v1427 = vld [vmem:[%s13 + $0x30] sm:$0xff]
      %v1428 = vld [vmem:[%s13 + $0x38] sm:$0xff]
      %v1429 = vld [vmem:[%s13 + $0x40] sm:$0xff]
      %v1430 = vld [vmem:[%s13 + $0x48] sm:$0xff]
      %v1431 = vld [vmem:[%s13 + $0x50] sm:$0xff]
      %v1432 = vld [vmem:[%s13 + $0x58] sm:$0xff]
      %v1433 = vld [vmem:[%s13 + $0x60] sm:$0xff]
      %v1434 = vld [vmem:[%s13 + $0x68] sm:$0xff]
      %v1435 = vld [vmem:[%s13 + $0x70] sm:$0xff]
      %v1436 = vld [vmem:[%s13 + $0x78] sm:$0xff]
      %v1437 = vld [vmem:[%s13 + $0x80] sm:$0xff]
      %v1438 = vld [vmem:[%s13 + $0x88] sm:$0xff]
      %v1439 = vld [vmem:[%s13 + $0x90] sm:$0xff]
      %v1440 = vld [vmem:[%s13 + $0x98] sm:$0xff]
      %v1441 = vld [vmem:[%s13 + $0xa0] sm:$0xff]
      %v1442 = vld [vmem:[%s13 + $0xa8] sm:$0xff]
      %v1443 = vld [vmem:[%s13 + $0xb0] sm:$0xff]
      %v1444 = vld [vmem:[%s13 + $0xb8] sm:$0xff]
      %v1445 = vld [vmem:[%s13 + $0xc0] sm:$0xff]
      %v1446 = vld [vmem:[%s13 + $0xc8] sm:$0xff]
      %v1447 = vld [vmem:[%s13 + $0xd0] sm:$0xff]
      %v1448 = vld [vmem:[%s13 + $0xd8] sm:$0xff]
      %v1449 = vld [vmem:[%s13 + $0xe0] sm:$0xff]
      %v1450 = vld [vmem:[%s13 + $0xe8] sm:$0xff]
      %v1451 = vld [vmem:[%s13 + $0xf0] sm:$0xff]
      %v1452 = vld [vmem:[%s13 + $0xf8] sm:$0xff]
      %v1453 = vld [vmem:[%s13 + $0x100] sm:$0xff]
      %v1454 = vld [vmem:[%s13 + $0x108] sm:$0xff]
      %v1455 = vld [vmem:[%s13 + $0x110] sm:$0xff]
      %v1456 = vld [vmem:[%s13 + $0x118] sm:$0xff]
      %v1457 = vld [vmem:[%s13 + $0x120] sm:$0xff]
      %v1458 = vld [vmem:[%s13 + $0x128] sm:$0xff]
      %v1459 = vld [vmem:[%s13 + $0x130] sm:$0xff]
      %v1460 = vld [vmem:[%s13 + $0x138] sm:$0xff]
      %v1461 = vld [vmem:[%s13 + $0x140] sm:$0xff]
      %v1462 = vld [vmem:[%s13 + $0x148] sm:$0xff]
      %v1463 = vld [vmem:[%s13 + $0x150] sm:$0xff]
      %v1464 = vld [vmem:[%s13 + $0x158] sm:$0xff]
      %v1465 = vld [vmem:[%s13 + $0x160] sm:$0xff]
      %v1466 = vld [vmem:[%s13 + $0x168] sm:$0xff]
      %v1467 = vld [vmem:[%s13 + $0x170] sm:$0xff]
      %v1468 = vld [vmem:[%s13 + $0x178] sm:$0xff]
      %1469 = vmatprep.subr.mxu0 0.0
      %1470 = vmatpush1.msra.mxu0 %v1436
      %1471 = vmatprep.subr.mxu0 0.0
      %1472 = vmatpush1.msra.mxu0 %v1435
      %1473 = vmatprep.subr.mxu0 0.0
      %1474 = vmatpush1.msra.mxu0 %v1434
      %1475 = vmatprep.subr.mxu0 0.0
      %1476 = vmatpush1.msra.mxu0 %v1433
      %1477 = vmatprep.subr.mxu0 0.0
      %1478 = vmatpush1.msra.mxu0 %v1432
      %1479 = vmatprep.subr.mxu0 0.0
      %1480 = vmatpush1.msra.mxu0 %v1431
      %1481 = vmatprep.subr.mxu0 0.0
      %1482 = vmatpush1.msra.mxu0 %v1430
      %1483 = vmatprep.subr.mxu0 0.0
      %1484 = vmatpush1.msra.mxu0 %v1429
      %1485 = vmatprep.subr.mxu0 0.0
      %1486 = vmatpush1.msra.mxu0 %v1428
      %1487 = vmatprep.subr.mxu0 0.0
      %1488 = vmatpush1.msra.mxu0 %v1427
      %1489 = vmatprep.subr.mxu0 0.0
      %1490 = vmatpush1.msra.mxu0 %v1426
      %1491 = vmatprep.subr.mxu0 0.0
      %1492 = vmatpush1.msra.mxu0 %v1425
      %1493 = vmatprep.subr.mxu0 0.0
      %1494 = vmatpush1.msra.mxu0 %v1424
      %1495 = vmatprep.subr.mxu0 0.0
      %1496 = vmatpush1.msra.mxu0 %v1423
      %1497 = vmatprep.subr.mxu0 0.0
      %1498 = vmatpush1.msra.mxu0 %v1422
      %1499 = vmatprep.subr.mxu0 0.0
      %1500 = vmatpush1.msra.mxu0 %v1421
      %1501 = vmatprep.subr.mxu0 0.0
      %1502 = vmatpush2.msra.mxu0 %v1452
      %1503 = vmatprep.subr.mxu0 0.0
      %1504 = vmatpush2.msra.mxu0 %v1451
      %1505 = vmatprep.subr.mxu0 0.0
      %1506 = vmatpush2.msra.mxu0 %v1450
      %1507 = vmatprep.subr.mxu0 0.0
      %1508 = vmatpush2.msra.mxu0 %v1449
      %1509 = vmatprep.subr.mxu0 0.0
      %1510 = vmatpush2.msra.mxu0 %v1448
      %1511 = vmatprep.subr.mxu0 0.0
      %1512 = vmatpush2.msra.mxu0 %v1447
      %1513 = vmatprep.subr.mxu0 0.0
      %1514 = vmatpush2.msra.mxu0 %v1446
      %1515 = vmatprep.subr.mxu0 0.0
      %1516 = vmatpush2.msra.mxu0 %v1445
      %1517 = vmatprep.subr.mxu0 0.0
      %1518 = vmatpush2.msra.mxu0 %v1444
      %1519 = vmatprep.subr.mxu0 0.0
      %1520 = vmatpush2.msra.mxu0 %v1443
      %1521 = vmatprep.subr.mxu0 0.0
      %1522 = vmatpush2.msra.mxu0 %v1442
      %1523 = vmatprep.subr.mxu0 0.0
      %1524 = vmatpush2.msra.mxu0 %v1441
      %1525 = vmatprep.subr.mxu0 0.0
      %1526 = vmatpush2.msra.mxu0 %v1440
      %1527 = vmatprep.subr.mxu0 0.0
      %1528 = vmatpush2.msra.mxu0 %v1439
      %1529 = vmatprep.subr.mxu0 0.0
      %1530 = vmatpush2.msra.mxu0 %v1438
      %1531 = vmatprep.subr.mxu0 0.0
      %1532 = vmatpush2.msra.mxu0 %v1437
      %1533 = vmatprep.mubr.f32.mxu0 %v1419
      %1534 = vmatmul.mubr.f32.gmra.mxu0 %v1418
      %v1535 = vpop.f32.mrf.mxu0
      %v1536 = vadd.f32 0.0, %v1535
      %v1537 = vpop.f32.mrf.mxu0
      %1538 = vdwg.mxu0
      %1539 = vmatprep.subr.mxu0 0.0
      %1540 = vmatpush1.msra.mxu0 %v1468
      %1541 = vmatprep.subr.mxu0 0.0
      %1542 = vmatpush1.msra.mxu0 %v1467
      %1543 = vmatprep.subr.mxu0 0.0
      %1544 = vmatpush1.msra.mxu0 %v1466
      %1545 = vmatprep.subr.mxu0 0.0
      %1546 = vmatpush1.msra.mxu0 %v1465
      %1547 = vmatprep.subr.mxu0 0.0
      %1548 = vmatpush1.msra.mxu0 %v1464
      %1549 = vmatprep.subr.mxu0 0.0
      %1550 = vmatpush1.msra.mxu0 %v1463
      %1551 = vmatprep.subr.mxu0 0.0
      %1552 = vmatpush1.msra.mxu0 %v1462
      %1553 = vmatprep.subr.mxu0 0.0
      %1554 = vmatpush1.msra.mxu0 %v1461
      %1555 = vmatprep.subr.mxu0 0.0
      %1556 = vmatpush1.msra.mxu0 %v1460
      %1557 = vmatprep.subr.mxu0 0.0
      %1558 = vmatpush1.msra.mxu0 %v1459
      %1559 = vmatprep.subr.mxu0 0.0
      %1560 = vmatpush1.msra.mxu0 %v1458
      %1561 = vmatprep.subr.mxu0 0.0
      %1562 = vmatpush1.msra.mxu0 %v1457
      %1563 = vmatprep.subr.mxu0 0.0
      %1564 = vmatpush1.msra.mxu0 %v1456
      %1565 = vmatprep.subr.mxu0 0.0
      %1566 = vmatpush1.msra.mxu0 %v1455
      %1567 = vmatprep.subr.mxu0 0.0
      %1568 = vmatpush1.msra.mxu0 %v1454
      %1569 = vmatprep.subr.mxu0 0.0
      %1570 = vmatpush1.msra.mxu0 %v1453
      %1571 = vmatprep.subr.mxu0 0.0
      %1572 = vmatpush2.msra.mxu0 0.0
      %1573 = vmatprep.subr.mxu0 0.0
      %1574 = vmatpush2.msra.mxu0 0.0
      %1575 = vmatprep.subr.mxu0 0.0
      %1576 = vmatpush2.msra.mxu0 0.0
      %1577 = vmatprep.subr.mxu0 0.0
      %1578 = vmatpush2.msra.mxu0 0.0
      %1579 = vmatprep.subr.mxu0 0.0
      %1580 = vmatpush2.msra.mxu0 0.0
      %1581 = vmatprep.subr.mxu0 0.0
      %1582 = vmatpush2.msra.mxu0 0.0
      %1583 = vmatprep.subr.mxu0 0.0
      %1584 = vmatpush2.msra.mxu0 0.0
      %1585 = vmatprep.subr.mxu0 0.0
      %1586 = vmatpush2.msra.mxu0 0.0
      %1587 = vmatprep.subr.mxu0 0.0
      %1588 = vmatpush2.msra.mxu0 0.0
      %1589 = vmatprep.subr.mxu0 0.0
      %1590 = vmatpush2.msra.mxu0 0.0
      %1591 = vmatprep.subr.mxu0 0.0
      %1592 = vmatpush2.msra.mxu0 0.0
      %1593 = vmatprep.subr.mxu0 0.0
      %1594 = vmatpush2.msra.mxu0 0.0
      %1595 = vmatprep.subr.mxu0 0.0
      %1596 = vmatpush2.msra.mxu0 0.0
      %1597 = vmatprep.subr.mxu0 0.0
      %1598 = vmatpush2.msra.mxu0 0.0
      %1599 = vmatprep.subr.mxu0 0.0
      %1600 = vmatpush2.msra.mxu0 0.0
      %1601 = vmatprep.subr.mxu0 0.0
      %1602 = vmatpush2.msra.mxu0 0.0
      %1603 = vmatprep.mubr.f32.mxu0 0.0
      %1604 = vmatmul.mubr.f32.gmra.mxu0 %v1420
      %v1605 = vpop.f32.mrf.mxu0
      %v1606 = vadd.f32 %v1536, %v1605
      %v1607 = vpop.f32.mrf.mxu0
      %1608 = vdwg.mxu0
      %1609 = vst [vmem:[#allocation7 + $0x8] sm:$0xff] %v1606
      %v1610 = vld [vmem:[#allocation7] sm:$0xff]
      %v1611 = vld [vmem:[#allocation7 + $0x8] sm:$0xff]
      %1614 = vrot.lane.b32.xlu0 %v1610, 11
      %v1615 = vpop.permute.xlu0 %1614
      %1616 = vrot.lane.b32.xlu0 %v1611, 11
      %v1617 = vpop.permute.xlu0 %1616
      %vm1618 = vcmask 89088
      %v1619 = vsel %vm1618, %v1615, %v1617
      %1621 = vst [vmem:[#allocation2] sm:$0xff] %v1619
      %v1622 = vld [vmem:[#allocation7] sm:$0xff]
      %v1623 = vld [vmem:[#allocation7 + $0x8] sm:$0xff]
      %1626 = vrot.lane.b32.xlu0 %v1622, 10
      %v1627 = vpop.permute.xlu0 %1626
      %1628 = vrot.lane.b32.xlu0 %v1623, 10
      %v1629 = vpop.permute.xlu0 %1628
      %vm1630 = vcmask 80896
      %v1631 = vsel %vm1630, %v1627, %v1629
      %1633 = vst [vmem:[#allocation2 + $0x18] sm:$0xff] %v1631
      %v1634 = vld [vmem:[#allocation7] sm:$0xff]
      %v1635 = vld [vmem:[#allocation7 + $0x8] sm:$0xff]
      %1638 = vrot.lane.b32.xlu0 %v1634, 9
      %v1639 = vpop.permute.xlu0 %1638
      %1640 = vrot.lane.b32.xlu0 %v1635, 9
      %v1641 = vpop.permute.xlu0 %1640
      %vm1642 = vcmask 72704
      %v1643 = vsel %vm1642, %v1639, %v1641
      %1645 = vst [vmem:[#allocation2 + $0x30] sm:$0xff] %v1643
      %v1646 = vld [vmem:[#allocation7] sm:$0xff]
      %v1647 = vld [vmem:[#allocation7 + $0x8] sm:$0xff]
      %1650 = vrot.lane.b32.xlu0 %v1646, 1
      %v1651 = vpop.permute.xlu0 %1650
      %1652 = vrot.lane.b32.xlu0 %v1647, 1
      %v1653 = vpop.permute.xlu0 %1652
      %v1654 = vsel %vm647, %v1651, %v1653
      %1656 = vst [vmem:[#allocation2 + $0x48] sm:$0xff] %v1654
      %v1657 = vld [vmem:[#allocation7 + $0x8] sm:$0xff]
      %1658 = vst [vmem:[#allocation2 + $0x60] sm:$0xff] %v1657
      %v1659 = vld [vmem:[#allocation7 + $0x8] sm:$0xff]
      %v1660 = vld [vmem:[#allocation7 + $0x10] sm:$0xff]
      %1663 = vrot.lane.b32.xlu0 %v1659, 127
      %v1664 = vpop.permute.xlu0 %1663
      %1665 = vrot.lane.b32.xlu0 %v1660, 127
      %v1666 = vpop.permute.xlu0 %1665
      %v1667 = vsel %vm679, %v1664, %v1666
      %1669 = vst [vmem:[#allocation2 + $0x78] sm:$0xff] %v1667
      %v1670 = vld [vmem:[#allocation7 + $0x8] sm:$0xff]
      %v1671 = vld [vmem:[#allocation7 + $0x10] sm:$0xff]
      %1674 = vrot.lane.b32.xlu0 %v1670, 119
      %v1675 = vpop.permute.xlu0 %1674
      %1676 = vrot.lane.b32.xlu0 %v1671, 119
      %v1677 = vpop.permute.xlu0 %1676
      %vm1678 = vcmask 973824
      %v1679 = vsel %vm1678, %v1675, %v1677
      %1681 = vst [vmem:[#allocation2 + $0x90] sm:$0xff] %v1679
      %v1682 = vld [vmem:[#allocation7 + $0x8] sm:$0xff]
      %v1683 = vld [vmem:[#allocation7 + $0x10] sm:$0xff]
      %1686 = vrot.lane.b32.xlu0 %v1682, 118
      %v1687 = vpop.permute.xlu0 %1686
      %1688 = vrot.lane.b32.xlu0 %v1683, 118
      %v1689 = vpop.permute.xlu0 %1688
      %vm1690 = vcmask 965632
      %v1691 = vsel %vm1690, %v1687, %v1689
      %1693 = vst [vmem:[#allocation2 + $0xa8] sm:$0xff] %v1691
      %v1694 = vld [vmem:[#allocation7 + $0x8] sm:$0xff]
      %v1695 = vld [vmem:[#allocation7 + $0x10] sm:$0xff]
      %1698 = vrot.lane.b32.xlu0 %v1694, 117
      %v1699 = vpop.permute.xlu0 %1698
      %1700 = vrot.lane.b32.xlu0 %v1695, 117
      %v1701 = vpop.permute.xlu0 %1700
      %vm1702 = vcmask 957440
      %v1703 = vsel %vm1702, %v1699, %v1701
      %1705 = vst [vmem:[#allocation2 + $0xc0] sm:$0xff] %v1703
      %v1706 = vld [vmem:[%s5] sm:$0xff]
      %v1707 = vld [vmem:[%s5 + $0x8] sm:$0xff]
      %v1708 = vld [vmem:[#allocation2] sm:$0xff]
      %v1709 = vld [vmem:[#allocation2 + $0x18] sm:$0xff]
      %v1710 = vld [vmem:[#allocation2 + $0x30] sm:$0xff]
      %v1711 = vld [vmem:[#allocation2 + $0x48] sm:$0xff]
      %v1712 = vld [vmem:[#allocation2 + $0x60] sm:$0xff]
      %v1713 = vld [vmem:[#allocation2 + $0x78] sm:$0xff]
      %v1714 = vld [vmem:[#allocation2 + $0x90] sm:$0xff]
      %v1715 = vld [vmem:[#allocation2 + $0xa8] sm:$0xff]
      %v1716 = vld [vmem:[#allocation2 + $0xc0] sm:$0xff]
      %v1717 = vld [vmem:[%s6] sm:$0xff]
      %v1718 = vld [vmem:[%s6 + $0x8] sm:$0xff]
      %1720 = vset.pattern.permute.xlu0 0
      %1721 = vperm.xlu0 %1720, %v1717
      %v1722 = vpop.permute.xlu0 %1721
      %1725 = vset.pattern.permute.xlu0 0
      %1726 = vperm.xlu0 %1725, %v1718
      %v1727 = vpop.permute.xlu0 %1726
      %v1730 = vsel %vm801, %v1706, 0
      %v1733 = vsel %vm801, %v1707, 0
      %1735 = vmatprep.subr.mxu0 0.0
      %1736 = vmatpush1.msra.mxu0 0.0
      %1737 = vmatprep.subr.mxu0 0.0
      %1738 = vmatpush1.msra.mxu0 0.0
      %1739 = vmatprep.subr.mxu0 0.0
      %1740 = vmatpush1.msra.mxu0 0.0
      %1741 = vmatprep.subr.mxu0 0.0
      %1742 = vmatpush1.msra.mxu0 0.0
      %1743 = vmatprep.subr.mxu0 0.0
      %1744 = vmatpush1.msra.mxu0 0.0
      %1745 = vmatprep.subr.mxu0 0.0
      %1746 = vmatpush1.msra.mxu0 0.0
      %1747 = vmatprep.subr.mxu0 0.0
      %1748 = vmatpush1.msra.mxu0 0.0
      %1749 = vmatprep.subr.mxu0 0.0
      %1750 = vmatpush1.msra.mxu0 %v1716
      %1751 = vmatprep.subr.mxu0 0.0
      %1752 = vmatpush1.msra.mxu0 %v1715
      %1753 = vmatprep.subr.mxu0 0.0
      %1754 = vmatpush1.msra.mxu0 %v1714
      %1755 = vmatprep.subr.mxu0 0.0
      %1756 = vmatpush1.msra.mxu0 %v1713
      %1757 = vmatprep.subr.mxu0 0.0
      %1758 = vmatpush1.msra.mxu0 %v1712
      %1759 = vmatprep.subr.mxu0 0.0
      %1760 = vmatpush1.msra.mxu0 %v1711
      %1761 = vmatprep.subr.mxu0 0.0
      %1762 = vmatpush1.msra.mxu0 %v1710
      %1763 = vmatprep.subr.mxu0 0.0
      %1764 = vmatpush1.msra.mxu0 %v1709
      %1765 = vmatprep.subr.mxu0 0.0
      %1766 = vmatpush1.msra.mxu0 %v1708
      %1767 = vmatprep.subr.mxu0 0.0
      %1768 = vmatpush2.msra.mxu0 0.0
      %1769 = vmatprep.subr.mxu0 0.0
      %1770 = vmatpush2.msra.mxu0 0.0
      %1771 = vmatprep.subr.mxu0 0.0
      %1772 = vmatpush2.msra.mxu0 0.0
      %1773 = vmatprep.subr.mxu0 0.0
      %1774 = vmatpush2.msra.mxu0 0.0
      %1775 = vmatprep.subr.mxu0 0.0
      %1776 = vmatpush2.msra.mxu0 0.0
      %1777 = vmatprep.subr.mxu0 0.0
      %1778 = vmatpush2.msra.mxu0 0.0
      %1779 = vmatprep.subr.mxu0 0.0
      %1780 = vmatpush2.msra.mxu0 0.0
      %1781 = vmatprep.subr.mxu0 0.0
      %1782 = vmatpush2.msra.mxu0 0.0
      %1783 = vmatprep.subr.mxu0 0.0
      %1784 = vmatpush2.msra.mxu0 0.0
      %1785 = vmatprep.subr.mxu0 0.0
      %1786 = vmatpush2.msra.mxu0 0.0
      %1787 = vmatprep.subr.mxu0 0.0
      %1788 = vmatpush2.msra.mxu0 0.0
      %1789 = vmatprep.subr.mxu0 0.0
      %1790 = vmatpush2.msra.mxu0 0.0
      %1791 = vmatprep.subr.mxu0 0.0
      %1792 = vmatpush2.msra.mxu0 0.0
      %1793 = vmatprep.subr.mxu0 0.0
      %1794 = vmatpush2.msra.mxu0 0.0
      %1795 = vmatprep.subr.mxu0 0.0
      %1796 = vmatpush2.msra.mxu0 0.0
      %1797 = vmatprep.subr.mxu0 0.0
      %1798 = vmatpush2.msra.mxu0 0.0
      %1799 = vmatprep.mubr.f32.mxu0 0.0
      %1800 = vmatmul.mubr.f32.gmra.mxu0 %v1730
      %v1801 = vpop.f32.mrf.mxu0
      %v1802 = vadd.f32 %v1722, %v1801
      %v1803 = vpop.f32.mrf.mxu0
      %1804 = vmatprep.mubr.f32.mxu0 0.0
      %1805 = vmatmul.mubr.f32.gmra.mxu0 %v1733
      %v1806 = vpop.f32.mrf.mxu0
      %v1807 = vadd.f32 %v1727, %v1806
      %v1808 = vpop.f32.mrf.mxu0
      %1809 = vdwg.mxu0
      %v1810 = vmax.f32 %v1802, 0.0
      %v1811 = vmax.f32 %v1807, 0.0
      %v1812 = vsel %vm552, 1, 0
      %v1813 = vlaneseq
      %v1814 = vshrl.u32 %v1813, 7
      %v1815 = vsub.s32 0, %v1814
      %v1816 = vrot.slane %v1812, %v1815
      %vm1817 = vcmp.eq.s32.totalorder %v1816, 1
      %v1818 = vsel %vm1817, %v1810, 0.0
      %v1819 = vsel %vm1817, %v1811, 0.0
      %1820 = vst [vmem:[#allocation8 + $0x8] sm:$0xff] %v1818
      %1821 = vst [vmem:[#allocation8 + $0x20] sm:$0xff] %v1819
      %v1822 = vld [vmem:[#allocation8] sm:$0xff]
      %v1823 = vld [vmem:[#allocation8 + $0x8] sm:$0xff]
      %v1824 = vld [vmem:[#allocation8 + $0x18] sm:$0xff]
      %v1825 = vld [vmem:[#allocation8 + $0x20] sm:$0xff]
      %1830 = vrot.lane.b32.xlu0 %v1822, 11
      %v1831 = vpop.permute.xlu0 %1830
      %1832 = vrot.lane.b32.xlu0 %v1823, 11
      %v1833 = vpop.permute.xlu0 %1832
      %1834 = vrot.lane.b32.xlu0 %v1824, 11
      %v1835 = vpop.permute.xlu0 %1834
      %1836 = vrot.lane.b32.xlu0 %v1825, 11
      %v1837 = vpop.permute.xlu0 %1836
      %v1838 = vsel %vm1618, %v1831, %v1833
      %v1839 = vsel %vm1618, %v1835, %v1837
      %1842 = vst [vmem:[#allocation2] sm:$0xff] %v1838
      %1843 = vst [vmem:[#allocation2 + $0x18] sm:$0xff] %v1839
      %v1844 = vld [vmem:[#allocation8] sm:$0xff]
      %v1845 = vld [vmem:[#allocation8 + $0x8] sm:$0xff]
      %v1846 = vld [vmem:[#allocation8 + $0x18] sm:$0xff]
      %v1847 = vld [vmem:[#allocation8 + $0x20] sm:$0xff]
      %1852 = vrot.lane.b32.xlu0 %v1844, 10
      %v1853 = vpop.permute.xlu0 %1852
      %1854 = vrot.lane.b32.xlu0 %v1845, 10
      %v1855 = vpop.permute.xlu0 %1854
      %1856 = vrot.lane.b32.xlu0 %v1846, 10
      %v1857 = vpop.permute.xlu0 %1856
      %1858 = vrot.lane.b32.xlu0 %v1847, 10
      %v1859 = vpop.permute.xlu0 %1858
      %v1860 = vsel %vm1630, %v1853, %v1855
      %v1861 = vsel %vm1630, %v1857, %v1859
      %1864 = vst [vmem:[#allocation2 + $0x30] sm:$0xff] %v1860
      %1865 = vst [vmem:[#allocation2 + $0x48] sm:$0xff] %v1861
      %v1866 = vld [vmem:[#allocation8] sm:$0xff]
      %v1867 = vld [vmem:[#allocation8 + $0x8] sm:$0xff]
      %v1868 = vld [vmem:[#allocation8 + $0x18] sm:$0xff]
      %v1869 = vld [vmem:[#allocation8 + $0x20] sm:$0xff]
      %1874 = vrot.lane.b32.xlu0 %v1866, 9
      %v1875 = vpop.permute.xlu0 %1874
      %1876 = vrot.lane.b32.xlu0 %v1867, 9
      %v1877 = vpop.permute.xlu0 %1876
      %1878 = vrot.lane.b32.xlu0 %v1868, 9
      %v1879 = vpop.permute.xlu0 %1878
      %1880 = vrot.lane.b32.xlu0 %v1869, 9
      %v1881 = vpop.permute.xlu0 %1880
      %v1882 = vsel %vm1642, %v1875, %v1877
      %v1883 = vsel %vm1642, %v1879, %v1881
      %1886 = vst [vmem:[#allocation2 + $0x60] sm:$0xff] %v1882
      %1887 = vst [vmem:[#allocation2 + $0x78] sm:$0xff] %v1883
      %v1888 = vld [vmem:[#allocation8] sm:$0xff]
      %v1889 = vld [vmem:[#allocation8 + $0x8] sm:$0xff]
      %v1890 = vld [vmem:[#allocation8 + $0x18] sm:$0xff]
      %v1891 = vld [vmem:[#allocation8 + $0x20] sm:$0xff]
      %1896 = vrot.lane.b32.xlu0 %v1888, 1
      %v1897 = vpop.permute.xlu0 %1896
      %1898 = vrot.lane.b32.xlu0 %v1889, 1
      %v1899 = vpop.permute.xlu0 %1898
      %1900 = vrot.lane.b32.xlu0 %v1890, 1
      %v1901 = vpop.permute.xlu0 %1900
      %1902 = vrot.lane.b32.xlu0 %v1891, 1
      %v1903 = vpop.permute.xlu0 %1902
      %v1904 = vsel %vm647, %v1897, %v1899
      %v1905 = vsel %vm647, %v1901, %v1903
      %1908 = vst [vmem:[#allocation2 + $0x90] sm:$0xff] %v1904
      %1909 = vst [vmem:[#allocation2 + $0xa8] sm:$0xff] %v1905
      %v1910 = vld [vmem:[#allocation8 + $0x8] sm:$0xff]
      %v1911 = vld [vmem:[#allocation8 + $0x20] sm:$0xff]
      %1912 = vst [vmem:[#allocation2 + $0xc0] sm:$0xff] %v1910
      %1913 = vst [vmem:[#allocation2 + $0xd8] sm:$0xff] %v1911
      %v1914 = vld [vmem:[#allocation8 + $0x8] sm:$0xff]
      %v1915 = vld [vmem:[#allocation8 + $0x10] sm:$0xff]
      %v1916 = vld [vmem:[#allocation8 + $0x20] sm:$0xff]
      %v1917 = vld [vmem:[#allocation8 + $0x28] sm:$0xff]
      %1922 = vrot.lane.b32.xlu0 %v1914, 127
      %v1923 = vpop.permute.xlu0 %1922
      %1924 = vrot.lane.b32.xlu0 %v1915, 127
      %v1925 = vpop.permute.xlu0 %1924
      %1926 = vrot.lane.b32.xlu0 %v1916, 127
      %v1927 = vpop.permute.xlu0 %1926
      %1928 = vrot.lane.b32.xlu0 %v1917, 127
      %v1929 = vpop.permute.xlu0 %1928
      %v1930 = vsel %vm679, %v1923, %v1925
      %v1931 = vsel %vm679, %v1927, %v1929
      %1934 = vst [vmem:[#allocation2 + $0xf0] sm:$0xff] %v1930
      %1935 = vst [vmem:[#allocation2 + $0x108] sm:$0xff] %v1931
      %v1936 = vld [vmem:[#allocation8 + $0x8] sm:$0xff]
      %v1937 = vld [vmem:[#allocation8 + $0x10] sm:$0xff]
      %v1938 = vld [vmem:[#allocation8 + $0x20] sm:$0xff]
      %v1939 = vld [vmem:[#allocation8 + $0x28] sm:$0xff]
      %1944 = vrot.lane.b32.xlu0 %v1936, 119
      %v1945 = vpop.permute.xlu0 %1944
      %1946 = vrot.lane.b32.xlu0 %v1937, 119
      %v1947 = vpop.permute.xlu0 %1946
      %1948 = vrot.lane.b32.xlu0 %v1938, 119
      %v1949 = vpop.permute.xlu0 %1948
      %1950 = vrot.lane.b32.xlu0 %v1939, 119
      %v1951 = vpop.permute.xlu0 %1950
      %v1952 = vsel %vm1678, %v1945, %v1947
      %v1953 = vsel %vm1678, %v1949, %v1951
      %1956 = vst [vmem:[#allocation2 + $0x120] sm:$0xff] %v1952
      %1957 = vst [vmem:[#allocation2 + $0x138] sm:$0xff] %v1953
      %v1958 = vld [vmem:[#allocation8 + $0x8] sm:$0xff]
      %v1959 = vld [vmem:[#allocation8 + $0x10] sm:$0xff]
      %v1960 = vld [vmem:[#allocation8 + $0x20] sm:$0xff]
      %v1961 = vld [vmem:[#allocation8 + $0x28] sm:$0xff]
      %1966 = vrot.lane.b32.xlu0 %v1958, 118
      %v1967 = vpop.permute.xlu0 %1966
      %1968 = vrot.lane.b32.xlu0 %v1959, 118
      %v1969 = vpop.permute.xlu0 %1968
      %1970 = vrot.lane.b32.xlu0 %v1960, 118
      %v1971 = vpop.permute.xlu0 %1970
      %1972 = vrot.lane.b32.xlu0 %v1961, 118
      %v1973 = vpop.permute.xlu0 %1972
      %v1974 = vsel %vm1690, %v1967, %v1969
      %v1975 = vsel %vm1690, %v1971, %v1973
      %1978 = vst [vmem:[#allocation2 + $0x150] sm:$0xff] %v1974
      %1979 = vst [vmem:[#allocation2 + $0x168] sm:$0xff] %v1975
      %v1980 = vld [vmem:[#allocation8 + $0x8] sm:$0xff]
      %v1981 = vld [vmem:[#allocation8 + $0x10] sm:$0xff]
      %v1982 = vld [vmem:[#allocation8 + $0x20] sm:$0xff]
      %v1983 = vld [vmem:[#allocation8 + $0x28] sm:$0xff]
      %1988 = vrot.lane.b32.xlu0 %v1980, 117
      %v1989 = vpop.permute.xlu0 %1988
      %1990 = vrot.lane.b32.xlu0 %v1981, 117
      %v1991 = vpop.permute.xlu0 %1990
      %1992 = vrot.lane.b32.xlu0 %v1982, 117
      %v1993 = vpop.permute.xlu0 %1992
      %1994 = vrot.lane.b32.xlu0 %v1983, 117
      %v1995 = vpop.permute.xlu0 %1994
      %v1996 = vsel %vm1702, %v1989, %v1991
      %v1997 = vsel %vm1702, %v1993, %v1995
      %2000 = vst [vmem:[#allocation2 + $0x180] sm:$0xff] %v1996
      %2001 = vst [vmem:[#allocation2 + $0x198] sm:$0xff] %v1997
      %v2002 = vld [vmem:[%s7] sm:$0xff]
      %v2003 = vld [vmem:[%s7 + $0x8] sm:$0xff]
      %v2004 = vld [vmem:[%s7 + $0x10] sm:$0xff]
      %v2005 = vld [vmem:[%s7 + $0x18] sm:$0xff]
      %v2006 = vld [vmem:[#allocation2] sm:$0xff]
      %v2007 = vld [vmem:[#allocation2 + $0x18] sm:$0xff]
      %v2008 = vld [vmem:[#allocation2 + $0x30] sm:$0xff]
      %v2009 = vld [vmem:[#allocation2 + $0x48] sm:$0xff]
      %v2010 = vld [vmem:[#allocation2 + $0x60] sm:$0xff]
      %v2011 = vld [vmem:[#allocation2 + $0x78] sm:$0xff]
      %v2012 = vld [vmem:[#allocation2 + $0x90] sm:$0xff]
      %v2013 = vld [vmem:[#allocation2 + $0xa8] sm:$0xff]
      %v2014 = vld [vmem:[#allocation2 + $0xc0] sm:$0xff]
      %v2015 = vld [vmem:[#allocation2 + $0xd8] sm:$0xff]
      %v2016 = vld [vmem:[#allocation2 + $0xf0] sm:$0xff]
      %v2017 = vld [vmem:[#allocation2 + $0x108] sm:$0xff]
      %v2018 = vld [vmem:[#allocation2 + $0x120] sm:$0xff]
      %v2019 = vld [vmem:[#allocation2 + $0x138] sm:$0xff]
      %v2020 = vld [vmem:[#allocation2 + $0x150] sm:$0xff]
      %v2021 = vld [vmem:[#allocation2 + $0x168] sm:$0xff]
      %v2022 = vld [vmem:[#allocation2 + $0x180] sm:$0xff]
      %v2023 = vld [vmem:[#allocation2 + $0x198] sm:$0xff]
      %v2024 = vld [vmem:[%s8] sm:$0xff]
      %v2025 = vld [vmem:[%s8 + $0x8] sm:$0xff]
      %2027 = vset.pattern.permute.xlu0 0
      %2028 = vperm.xlu0 %2027, %v2024
      %v2029 = vpop.permute.xlu0 %2028
      %2032 = vset.pattern.permute.xlu0 0
      %2033 = vperm.xlu0 %2032, %v2025
      %v2034 = vpop.permute.xlu0 %2033
      %vm2036 = vcmask 130048
      %v2038 = vsel %vm2036, %v2003, 0
      %v2041 = vsel %vm2036, %v2005, 0
      %2043 = vmatprep.subr.mxu0 0.0
      %2044 = vmatpush1.msra.mxu0 %v2021
      %2045 = vmatprep.subr.mxu0 0.0
      %2046 = vmatpush1.msra.mxu0 %v2020
      %2047 = vmatprep.subr.mxu0 0.0
      %2048 = vmatpush1.msra.mxu0 %v2019
      %2049 = vmatprep.subr.mxu0 0.0
      %2050 = vmatpush1.msra.mxu0 %v2018
      %2051 = vmatprep.subr.mxu0 0.0
      %2052 = vmatpush1.msra.mxu0 %v2017
      %2053 = vmatprep.subr.mxu0 0.0
      %2054 = vmatpush1.msra.mxu0 %v2016
      %2055 = vmatprep.subr.mxu0 0.0
      %2056 = vmatpush1.msra.mxu0 %v2015
      %2057 = vmatprep.subr.mxu0 0.0
      %2058 = vmatpush1.msra.mxu0 %v2014
      %2059 = vmatprep.subr.mxu0 0.0
      %2060 = vmatpush1.msra.mxu0 %v2013
      %2061 = vmatprep.subr.mxu0 0.0
      %2062 = vmatpush1.msra.mxu0 %v2012
      %2063 = vmatprep.subr.mxu0 0.0
      %2064 = vmatpush1.msra.mxu0 %v2011
      %2065 = vmatprep.subr.mxu0 0.0
      %2066 = vmatpush1.msra.mxu0 %v2010
      %2067 = vmatprep.subr.mxu0 0.0
      %2068 = vmatpush1.msra.mxu0 %v2009
      %2069 = vmatprep.subr.mxu0 0.0
      %2070 = vmatpush1.msra.mxu0 %v2008
      %2071 = vmatprep.subr.mxu0 0.0
      %2072 = vmatpush1.msra.mxu0 %v2007
      %2073 = vmatprep.subr.mxu0 0.0
      %2074 = vmatpush1.msra.mxu0 %v2006
      %2075 = vmatprep.subr.mxu0 0.0
      %2076 = vmatpush2.msra.mxu0 0.0
      %2077 = vmatprep.subr.mxu0 0.0
      %2078 = vmatpush2.msra.mxu0 0.0
      %2079 = vmatprep.subr.mxu0 0.0
      %2080 = vmatpush2.msra.mxu0 0.0
      %2081 = vmatprep.subr.mxu0 0.0
      %2082 = vmatpush2.msra.mxu0 0.0
      %2083 = vmatprep.subr.mxu0 0.0
      %2084 = vmatpush2.msra.mxu0 0.0
      %2085 = vmatprep.subr.mxu0 0.0
      %2086 = vmatpush2.msra.mxu0 0.0
      %2087 = vmatprep.subr.mxu0 0.0
      %2088 = vmatpush2.msra.mxu0 0.0
      %2089 = vmatprep.subr.mxu0 0.0
      %2090 = vmatpush2.msra.mxu0 0.0
      %2091 = vmatprep.subr.mxu0 0.0
      %2092 = vmatpush2.msra.mxu0 0.0
      %2093 = vmatprep.subr.mxu0 0.0
      %2094 = vmatpush2.msra.mxu0 0.0
      %2095 = vmatprep.subr.mxu0 0.0
      %2096 = vmatpush2.msra.mxu0 0.0
      %2097 = vmatprep.subr.mxu0 0.0
      %2098 = vmatpush2.msra.mxu0 0.0
      %2099 = vmatprep.subr.mxu0 0.0
      %2100 = vmatpush2.msra.mxu0 0.0
      %2101 = vmatprep.subr.mxu0 0.0
      %2102 = vmatpush2.msra.mxu0 0.0
      %2103 = vmatprep.subr.mxu0 0.0
      %2104 = vmatpush2.msra.mxu0 %v2023
      %2105 = vmatprep.subr.mxu0 0.0
      %2106 = vmatpush2.msra.mxu0 %v2022
      %2107 = vmatprep.mubr.f32.mxu0 %v2038
      %2108 = vmatmul.mubr.f32.gmra.mxu0 %v2002
      %v2109 = vpop.f32.mrf.mxu0
      %v2110 = vadd.f32 %v2029, %v2109
      %v2111 = vpop.f32.mrf.mxu0
      %2112 = vmatprep.mubr.f32.mxu0 %v2041
      %2113 = vmatmul.mubr.f32.gmra.mxu0 %v2004
      %v2114 = vpop.f32.mrf.mxu0
      %v2115 = vadd.f32 %v2034, %v2114
      %v2116 = vpop.f32.mrf.mxu0
      %2117 = vdwg.mxu0
      %v2118 = vmax.f32 %v2110, 0.0
      %v2119 = vmax.f32 %v2115, 0.0
      %v2120 = vsel %vm1817, %v2118, 0.0
      %v2121 = vsel %vm1817, %v2119, 0.0
      %2122 = vst [vmem:[#allocation9 + $0x8] sm:$0xff] %v2120
      %2123 = vst [vmem:[#allocation9 + $0x20] sm:$0xff] %v2121
      %v2124 = vld [vmem:[#allocation9 + $0x8] sm:$0xff]
      %v2125 = vld [vmem:[#allocation9 + $0x20] sm:$0xff]
      %v2126 = vld [vmem:[%s14] sm:$0xff]
      %v2127 = vld [vmem:[%s14 + $0x8] sm:$0xff]
      %v2128 = vld [vmem:[%s14 + $0x10] sm:$0xff]
      %v2129 = vld [vmem:[%s14 + $0x18] sm:$0xff]
      %v2130 = vld [vmem:[%s14 + $0x20] sm:$0xff]
      %v2131 = vld [vmem:[%s14 + $0x28] sm:$0xff]
      %v2132 = vld [vmem:[%s14 + $0x30] sm:$0xff]
      %v2133 = vld [vmem:[%s14 + $0x38] sm:$0xff]
      %v2134 = vld [vmem:[%s14 + $0x40] sm:$0xff]
      %v2135 = vld [vmem:[%s14 + $0x48] sm:$0xff]
      %v2136 = vld [vmem:[%s14 + $0x50] sm:$0xff]
      %v2137 = vld [vmem:[%s14 + $0x58] sm:$0xff]
      %v2138 = vld [vmem:[%s14 + $0x60] sm:$0xff]
      %v2139 = vld [vmem:[%s14 + $0x68] sm:$0xff]
      %v2140 = vld [vmem:[%s14 + $0x70] sm:$0xff]
      %v2141 = vld [vmem:[%s14 + $0x78] sm:$0xff]
      %v2142 = vld [vmem:[%s14 + $0x80] sm:$0xff]
      %v2143 = vld [vmem:[%s14 + $0x88] sm:$0xff]
      %v2144 = vld [vmem:[%s14 + $0x90] sm:$0xff]
      %v2145 = vld [vmem:[%s14 + $0x98] sm:$0xff]
      %v2146 = vld [vmem:[%s14 + $0xa0] sm:$0xff]
      %v2147 = vld [vmem:[%s14 + $0xa8] sm:$0xff]
      %v2148 = vld [vmem:[%s14 + $0xb0] sm:$0xff]
      %v2149 = vld [vmem:[%s14 + $0xb8] sm:$0xff]
      %v2150 = vld [vmem:[%s14 + $0xc0] sm:$0xff]
      %v2151 = vld [vmem:[%s14 + $0xc8] sm:$0xff]
      %v2152 = vld [vmem:[%s14 + $0xd0] sm:$0xff]
      %v2153 = vld [vmem:[%s14 + $0xd8] sm:$0xff]
      %v2154 = vld [vmem:[%s14 + $0xe0] sm:$0xff]
      %v2155 = vld [vmem:[%s14 + $0xe8] sm:$0xff]
      %v2156 = vld [vmem:[%s14 + $0xf0] sm:$0xff]
      %v2157 = vld [vmem:[%s14 + $0xf8] sm:$0xff]
      %v2158 = vld [vmem:[%s14 + $0x100] sm:$0xff]
      %v2159 = vld [vmem:[%s14 + $0x108] sm:$0xff]
      %v2160 = vld [vmem:[%s14 + $0x110] sm:$0xff]
      %v2161 = vld [vmem:[%s14 + $0x118] sm:$0xff]
      %v2162 = vld [vmem:[%s14 + $0x120] sm:$0xff]
      %v2163 = vld [vmem:[%s14 + $0x128] sm:$0xff]
      %v2164 = vld [vmem:[%s14 + $0x130] sm:$0xff]
      %v2165 = vld [vmem:[%s14 + $0x138] sm:$0xff]
      %v2166 = vld [vmem:[%s14 + $0x140] sm:$0xff]
      %v2167 = vld [vmem:[%s14 + $0x148] sm:$0xff]
      %v2168 = vld [vmem:[%s14 + $0x150] sm:$0xff]
      %v2169 = vld [vmem:[%s14 + $0x158] sm:$0xff]
      %v2170 = vld [vmem:[%s14 + $0x160] sm:$0xff]
      %v2171 = vld [vmem:[%s14 + $0x168] sm:$0xff]
      %v2172 = vld [vmem:[%s14 + $0x170] sm:$0xff]
      %v2173 = vld [vmem:[%s14 + $0x178] sm:$0xff]
      %2174 = vmatprep.subr.mxu0 %v2172
      %2175 = vmatpush1.msra.mxu0 %v2171
      %2176 = vmatprep.subr.mxu0 %v2169
      %2177 = vmatpush1.msra.mxu0 %v2168
      %2178 = vmatprep.subr.mxu0 %v2166
      %2179 = vmatpush1.msra.mxu0 %v2165
      %2180 = vmatprep.subr.mxu0 %v2163
      %2181 = vmatpush1.msra.mxu0 %v2162
      %2182 = vmatprep.subr.mxu0 %v2160
      %2183 = vmatpush1.msra.mxu0 %v2159
      %2184 = vmatprep.subr.mxu0 %v2157
      %2185 = vmatpush1.msra.mxu0 %v2156
      %2186 = vmatprep.subr.mxu0 %v2154
      %2187 = vmatpush1.msra.mxu0 %v2153
      %2188 = vmatprep.subr.mxu0 %v2151
      %2189 = vmatpush1.msra.mxu0 %v2150
      %2190 = vmatprep.subr.mxu0 %v2148
      %2191 = vmatpush1.msra.mxu0 %v2147
      %2192 = vmatprep.subr.mxu0 %v2145
      %2193 = vmatpush1.msra.mxu0 %v2144
      %2194 = vmatprep.subr.mxu0 %v2142
      %2195 = vmatpush1.msra.mxu0 %v2141
      %2196 = vmatprep.subr.mxu0 %v2139
      %2197 = vmatpush1.msra.mxu0 %v2138
      %2198 = vmatprep.subr.mxu0 %v2136
      %2199 = vmatpush1.msra.mxu0 %v2135
      %2200 = vmatprep.subr.mxu0 %v2133
      %2201 = vmatpush1.msra.mxu0 %v2132
      %2202 = vmatprep.subr.mxu0 %v2130
      %2203 = vmatpush1.msra.mxu0 %v2129
      %2204 = vmatprep.subr.mxu0 %v2127
      %2205 = vmatpush1.msra.mxu0 %v2126
      %2206 = vmatprep.subr.mxu0 0.0
      %2207 = vmatpush2.msra.mxu0 0.0
      %2208 = vmatprep.subr.mxu0 0.0
      %2209 = vmatpush2.msra.mxu0 0.0
      %2210 = vmatprep.subr.mxu0 0.0
      %2211 = vmatpush2.msra.mxu0 0.0
      %2212 = vmatprep.subr.mxu0 0.0
      %2213 = vmatpush2.msra.mxu0 0.0
      %2214 = vmatprep.subr.mxu0 0.0
      %2215 = vmatpush2.msra.mxu0 0.0
      %2216 = vmatprep.subr.mxu0 0.0
      %2217 = vmatpush2.msra.mxu0 0.0
      %2218 = vmatprep.subr.mxu0 0.0
      %2219 = vmatpush2.msra.mxu0 0.0
      %2220 = vmatprep.subr.mxu0 0.0
      %2221 = vmatpush2.msra.mxu0 0.0
      %2222 = vmatprep.subr.mxu0 0.0
      %2223 = vmatpush2.msra.mxu0 0.0
      %2224 = vmatprep.subr.mxu0 0.0
      %2225 = vmatpush2.msra.mxu0 0.0
      %2226 = vmatprep.subr.mxu0 0.0
      %2227 = vmatpush2.msra.mxu0 0.0
      %2228 = vmatprep.subr.mxu0 0.0
      %2229 = vmatpush2.msra.mxu0 0.0
      %2230 = vmatprep.subr.mxu0 0.0
      %2231 = vmatpush2.msra.mxu0 0.0
      %2232 = vmatprep.subr.mxu0 0.0
      %2233 = vmatpush2.msra.mxu0 0.0
      %2234 = vmatprep.subr.mxu0 0.0
      %2235 = vmatpush2.msra.mxu0 0.0
      %2236 = vmatprep.subr.mxu0 0.0
      %2237 = vmatpush2.msra.mxu0 0.0
      %2238 = vmatprep.mubr.f32.mxu0 0.0
      %2239 = vmatmul.mubr.f32.gmra.mxu0 %v2124
      %v2240 = vpop.f32.mrf.mxu0
      %v2241 = vadd.f32 0.0, %v2240
      %v2242 = vpop.f32.mrf.mxu0
      %v2243 = vadd.f32 0.0, %v2242
      %2244 = vmatprep.mubr.f32.mxu0 0.0
      %2245 = vmatmul.mubr.f32.gmra.mxu0 %v2125
      %v2246 = vpop.f32.mrf.mxu0
      %v2247 = vadd.f32 0.0, %v2246
      %v2248 = vpop.f32.mrf.mxu0
      %v2249 = vadd.f32 0.0, %v2248
      %2250 = vdwg.mxu0
      %2251 = vmatprep.subr.mxu0 0.0
      %2252 = vmatpush1.msra.mxu0 %v2173
      %2253 = vmatprep.subr.mxu0 0.0
      %2254 = vmatpush1.msra.mxu0 %v2170
      %2255 = vmatprep.subr.mxu0 0.0
      %2256 = vmatpush1.msra.mxu0 %v2167
      %2257 = vmatprep.subr.mxu0 0.0
      %2258 = vmatpush1.msra.mxu0 %v2164
      %2259 = vmatprep.subr.mxu0 0.0
      %2260 = vmatpush1.msra.mxu0 %v2161
      %2261 = vmatprep.subr.mxu0 0.0
      %2262 = vmatpush1.msra.mxu0 %v2158
      %2263 = vmatprep.subr.mxu0 0.0
      %2264 = vmatpush1.msra.mxu0 %v2155
      %2265 = vmatprep.subr.mxu0 0.0
      %2266 = vmatpush1.msra.mxu0 %v2152
      %2267 = vmatprep.subr.mxu0 0.0
      %2268 = vmatpush1.msra.mxu0 %v2149
      %2269 = vmatprep.subr.mxu0 0.0
      %2270 = vmatpush1.msra.mxu0 %v2146
      %2271 = vmatprep.subr.mxu0 0.0
      %2272 = vmatpush1.msra.mxu0 %v2143
      %2273 = vmatprep.subr.mxu0 0.0
      %2274 = vmatpush1.msra.mxu0 %v2140
      %2275 = vmatprep.subr.mxu0 0.0
      %2276 = vmatpush1.msra.mxu0 %v2137
      %2277 = vmatprep.subr.mxu0 0.0
      %2278 = vmatpush1.msra.mxu0 %v2134
      %2279 = vmatprep.subr.mxu0 0.0
      %2280 = vmatpush1.msra.mxu0 %v2131
      %2281 = vmatprep.subr.mxu0 0.0
      %2282 = vmatpush1.msra.mxu0 %v2128
      %2283 = vmatprep.subr.mxu0 0.0
      %2284 = vmatpush2.msra.mxu0 0.0
      %2285 = vmatprep.subr.mxu0 0.0
      %2286 = vmatpush2.msra.mxu0 0.0
      %2287 = vmatprep.subr.mxu0 0.0
      %2288 = vmatpush2.msra.mxu0 0.0
      %2289 = vmatprep.subr.mxu0 0.0
      %2290 = vmatpush2.msra.mxu0 0.0
      %2291 = vmatprep.subr.mxu0 0.0
      %2292 = vmatpush2.msra.mxu0 0.0
      %2293 = vmatprep.subr.mxu0 0.0
      %2294 = vmatpush2.msra.mxu0 0.0
      %2295 = vmatprep.subr.mxu0 0.0
      %2296 = vmatpush2.msra.mxu0 0.0
      %2297 = vmatprep.subr.mxu0 0.0
      %2298 = vmatpush2.msra.mxu0 0.0
      %2299 = vmatprep.subr.mxu0 0.0
      %2300 = vmatpush2.msra.mxu0 0.0
      %2301 = vmatprep.subr.mxu0 0.0
      %2302 = vmatpush2.msra.mxu0 0.0
      %2303 = vmatprep.subr.mxu0 0.0
      %2304 = vmatpush2.msra.mxu0 0.0
      %2305 = vmatprep.subr.mxu0 0.0
      %2306 = vmatpush2.msra.mxu0 0.0
      %2307 = vmatprep.subr.mxu0 0.0
      %2308 = vmatpush2.msra.mxu0 0.0
      %2309 = vmatprep.subr.mxu0 0.0
      %2310 = vmatpush2.msra.mxu0 0.0
      %2311 = vmatprep.subr.mxu0 0.0
      %2312 = vmatpush2.msra.mxu0 0.0
      %2313 = vmatprep.subr.mxu0 0.0
      %2314 = vmatpush2.msra.mxu0 0.0
      %2315 = vmatprep.mubr.f32.mxu0 0.0
      %2316 = vmatmul.mubr.f32.gmra.mxu0 %v2124
      %v2317 = vpop.f32.mrf.mxu0
      %v2318 = vadd.f32 0.0, %v2317
      %v2319 = vpop.f32.mrf.mxu0
      %2320 = vmatprep.mubr.f32.mxu0 0.0
      %2321 = vmatmul.mubr.f32.gmra.mxu0 %v2125
      %v2322 = vpop.f32.mrf.mxu0
      %v2323 = vadd.f32 0.0, %v2322
      %v2324 = vpop.f32.mrf.mxu0
      %2325 = vdwg.mxu0
      %2326 = vst [vmem:[#allocation5 + $0x8] sm:$0xff] %v2241
      %2327 = vst [vmem:[#allocation5 + $0x10] sm:$0xff] %v2243
      %2328 = vst [vmem:[#allocation5 + $0x18] sm:$0xff] %v2318
      %2329 = vst [vmem:[#allocation5 + $0x30] sm:$0xff] %v2247
      %2330 = vst [vmem:[#allocation5 + $0x38] sm:$0xff] %v2249
      %2331 = vst [vmem:[#allocation5 + $0x40] sm:$0xff] %v2323
      %v2332 = vld [vmem:[#allocation5] sm:$0xff]
      %v2333 = vld [vmem:[#allocation5 + $0x8] sm:$0xff]
      %v2334 = vld [vmem:[#allocation5 + $0x10] sm:$0xff]
      %v2335 = vld [vmem:[#allocation5 + $0x18] sm:$0xff]
      %v2336 = vld [vmem:[#allocation5 + $0x28] sm:$0xff]
      %v2337 = vld [vmem:[#allocation5 + $0x30] sm:$0xff]
      %v2338 = vld [vmem:[#allocation5 + $0x38] sm:$0xff]
      %v2339 = vld [vmem:[#allocation5 + $0x40] sm:$0xff]
      %2348 = vrot.lane.b32.xlu0 %v2332, 19
      %v2349 = vpop.permute.xlu0 %2348
      %2350 = vrot.lane.b32.xlu0 %v2333, 19
      %v2351 = vpop.permute.xlu0 %2350
      %2352 = vrot.lane.b32.xlu0 %v2334, 19
      %v2353 = vpop.permute.xlu0 %2352
      %2354 = vrot.lane.b32.xlu0 %v2335, 19
      %v2355 = vpop.permute.xlu0 %2354
      %2356 = vrot.lane.b32.xlu0 %v2336, 19
      %v2357 = vpop.permute.xlu0 %2356
      %2358 = vrot.lane.b32.xlu0 %v2337, 19
      %v2359 = vpop.permute.xlu0 %2358
      %2360 = vrot.lane.b32.xlu0 %v2338, 19
      %v2361 = vpop.permute.xlu0 %2360
      %2362 = vrot.lane.b32.xlu0 %v2339, 19
      %v2363 = vpop.permute.xlu0 %2362
      %v2364 = vsel %vm569, %v2349, %v2351
      %v2365 = vsel %vm569, %v2351, %v2353
      %v2366 = vsel %vm569, %v2353, %v2355
      %v2367 = vsel %vm569, %v2357, %v2359
      %v2368 = vsel %vm569, %v2359, %v2361
      %v2369 = vsel %vm569, %v2361, %v2363
      %2376 = vst [vmem:[#allocation2] sm:$0xff] %v2364
      %2377 = vst [vmem:[#allocation2 + $0x8] sm:$0xff] %v2365
      %2378 = vst [vmem:[#allocation2 + $0x10] sm:$0xff] %v2366
      %2379 = vst [vmem:[#allocation2 + $0x18] sm:$0xff] %v2367
      %2380 = vst [vmem:[#allocation2 + $0x20] sm:$0xff] %v2368
      %2381 = vst [vmem:[#allocation2 + $0x28] sm:$0xff] %v2369
      %v2382 = vld [vmem:[#allocation5] sm:$0xff]
      %v2383 = vld [vmem:[#allocation5 + $0x8] sm:$0xff]
      %v2384 = vld [vmem:[#allocation5 + $0x10] sm:$0xff]
      %v2385 = vld [vmem:[#allocation5 + $0x18] sm:$0xff]
      %v2386 = vld [vmem:[#allocation5 + $0x28] sm:$0xff]
      %v2387 = vld [vmem:[#allocation5 + $0x30] sm:$0xff]
      %v2388 = vld [vmem:[#allocation5 + $0x38] sm:$0xff]
      %v2389 = vld [vmem:[#allocation5 + $0x40] sm:$0xff]
      %2398 = vrot.lane.b32.xlu0 %v2382, 18
      %v2399 = vpop.permute.xlu0 %2398
      %2400 = vrot.lane.b32.xlu0 %v2383, 18
      %v2401 = vpop.permute.xlu0 %2400
      %2402 = vrot.lane.b32.xlu0 %v2384, 18
      %v2403 = vpop.permute.xlu0 %2402
      %2404 = vrot.lane.b32.xlu0 %v2385, 18
      %v2405 = vpop.permute.xlu0 %2404
      %2406 = vrot.lane.b32.xlu0 %v2386, 18
      %v2407 = vpop.permute.xlu0 %2406
      %2408 = vrot.lane.b32.xlu0 %v2387, 18
      %v2409 = vpop.permute.xlu0 %2408
      %2410 = vrot.lane.b32.xlu0 %v2388, 18
      %v2411 = vpop.permute.xlu0 %2410
      %2412 = vrot.lane.b32.xlu0 %v2389, 18
      %v2413 = vpop.permute.xlu0 %2412
      %v2414 = vsel %vm595, %v2399, %v2401
      %v2415 = vsel %vm595, %v2401, %v2403
      %v2416 = vsel %vm595, %v2403, %v2405
      %v2417 = vsel %vm595, %v2407, %v2409
      %v2418 = vsel %vm595, %v2409, %v2411
      %v2419 = vsel %vm595, %v2411, %v2413
      %2426 = vst [vmem:[#allocation2 + $0x30] sm:$0xff] %v2414
      %2427 = vst [vmem:[#allocation2 + $0x38] sm:$0xff] %v2415
      %2428 = vst [vmem:[#allocation2 + $0x40] sm:$0xff] %v2416
      %2429 = vst [vmem:[#allocation2 + $0x48] sm:$0xff] %v2417
      %2430 = vst [vmem:[#allocation2 + $0x50] sm:$0xff] %v2418
      %2431 = vst [vmem:[#allocation2 + $0x58] sm:$0xff] %v2419
      %v2432 = vld [vmem:[#allocation5] sm:$0xff]
      %v2433 = vld [vmem:[#allocation5 + $0x8] sm:$0xff]
      %v2434 = vld [vmem:[#allocation5 + $0x10] sm:$0xff]
      %v2435 = vld [vmem:[#allocation5 + $0x18] sm:$0xff]
      %v2436 = vld [vmem:[#allocation5 + $0x28] sm:$0xff]
      %v2437 = vld [vmem:[#allocation5 + $0x30] sm:$0xff]
      %v2438 = vld [vmem:[#allocation5 + $0x38] sm:$0xff]
      %v2439 = vld [vmem:[#allocation5 + $0x40] sm:$0xff]
      %2448 = vrot.lane.b32.xlu0 %v2432, 17
      %v2449 = vpop.permute.xlu0 %2448
      %2450 = vrot.lane.b32.xlu0 %v2433, 17
      %v2451 = vpop.permute.xlu0 %2450
      %2452 = vrot.lane.b32.xlu0 %v2434, 17
      %v2453 = vpop.permute.xlu0 %2452
      %2454 = vrot.lane.b32.xlu0 %v2435, 17
      %v2455 = vpop.permute.xlu0 %2454
      %2456 = vrot.lane.b32.xlu0 %v2436, 17
      %v2457 = vpop.permute.xlu0 %2456
      %2458 = vrot.lane.b32.xlu0 %v2437, 17
      %v2459 = vpop.permute.xlu0 %2458
      %2460 = vrot.lane.b32.xlu0 %v2438, 17
      %v2461 = vpop.permute.xlu0 %2460
      %2462 = vrot.lane.b32.xlu0 %v2439, 17
      %v2463 = vpop.permute.xlu0 %2462
      %v2464 = vsel %vm621, %v2449, %v2451
      %v2465 = vsel %vm621, %v2451, %v2453
      %v2466 = vsel %vm621, %v2453, %v2455
      %v2467 = vsel %vm621, %v2457, %v2459
      %v2468 = vsel %vm621, %v2459, %v2461
      %v2469 = vsel %vm621, %v2461, %v2463
      %2476 = vst [vmem:[#allocation2 + $0x60] sm:$0xff] %v2464
      %2477 = vst [vmem:[#allocation2 + $0x68] sm:$0xff] %v2465
      %2478 = vst [vmem:[#allocation2 + $0x70] sm:$0xff] %v2466
      %2479 = vst [vmem:[#allocation2 + $0x78] sm:$0xff] %v2467
      %2480 = vst [vmem:[#allocation2 + $0x80] sm:$0xff] %v2468
      %2481 = vst [vmem:[#allocation2 + $0x88] sm:$0xff] %v2469
      %v2482 = vld [vmem:[#allocation5] sm:$0xff]
      %v2483 = vld [vmem:[#allocation5 + $0x8] sm:$0xff]
      %v2484 = vld [vmem:[#allocation5 + $0x10] sm:$0xff]
      %v2485 = vld [vmem:[#allocation5 + $0x18] sm:$0xff]
      %v2486 = vld [vmem:[#allocation5 + $0x28] sm:$0xff]
      %v2487 = vld [vmem:[#allocation5 + $0x30] sm:$0xff]
      %v2488 = vld [vmem:[#allocation5 + $0x38] sm:$0xff]
      %v2489 = vld [vmem:[#allocation5 + $0x40] sm:$0xff]
      %2498 = vrot.lane.b32.xlu0 %v2482, 1
      %v2499 = vpop.permute.xlu0 %2498
      %2500 = vrot.lane.b32.xlu0 %v2483, 1
      %v2501 = vpop.permute.xlu0 %2500
      %2502 = vrot.lane.b32.xlu0 %v2484, 1
      %v2503 = vpop.permute.xlu0 %2502
      %2504 = vrot.lane.b32.xlu0 %v2485, 1
      %v2505 = vpop.permute.xlu0 %2504
      %2506 = vrot.lane.b32.xlu0 %v2486, 1
      %v2507 = vpop.permute.xlu0 %2506
      %2508 = vrot.lane.b32.xlu0 %v2487, 1
      %v2509 = vpop.permute.xlu0 %2508
      %2510 = vrot.lane.b32.xlu0 %v2488, 1
      %v2511 = vpop.permute.xlu0 %2510
      %2512 = vrot.lane.b32.xlu0 %v2489, 1
      %v2513 = vpop.permute.xlu0 %2512
      %v2514 = vsel %vm647, %v2499, %v2501
      %v2515 = vsel %vm647, %v2501, %v2503
      %v2516 = vsel %vm647, %v2503, %v2505
      %v2517 = vsel %vm647, %v2507, %v2509
      %v2518 = vsel %vm647, %v2509, %v2511
      %v2519 = vsel %vm647, %v2511, %v2513
      %2526 = vst [vmem:[#allocation2 + $0x90] sm:$0xff] %v2514
      %2527 = vst [vmem:[#allocation2 + $0x98] sm:$0xff] %v2515
      %2528 = vst [vmem:[#allocation2 + $0xa0] sm:$0xff] %v2516
      %2529 = vst [vmem:[#allocation2 + $0xa8] sm:$0xff] %v2517
      %2530 = vst [vmem:[#allocation2 + $0xb0] sm:$0xff] %v2518
      %2531 = vst [vmem:[#allocation2 + $0xb8] sm:$0xff] %v2519
      %v2532 = vld [vmem:[#allocation5 + $0x8] sm:$0xff]
      %v2533 = vld [vmem:[#allocation5 + $0x10] sm:$0xff]
      %v2534 = vld [vmem:[#allocation5 + $0x18] sm:$0xff]
      %v2535 = vld [vmem:[#allocation5 + $0x30] sm:$0xff]
      %v2536 = vld [vmem:[#allocation5 + $0x38] sm:$0xff]
      %v2537 = vld [vmem:[#allocation5 + $0x40] sm:$0xff]
      %2538 = vst [vmem:[#allocation2 + $0xc0] sm:$0xff] %v2532
      %2539 = vst [vmem:[#allocation2 + $0xc8] sm:$0xff] %v2533
      %2540 = vst [vmem:[#allocation2 + $0xd0] sm:$0xff] %v2534
      %2541 = vst [vmem:[#allocation2 + $0xd8] sm:$0xff] %v2535
      %2542 = vst [vmem:[#allocation2 + $0xe0] sm:$0xff] %v2536
      %2543 = vst [vmem:[#allocation2 + $0xe8] sm:$0xff] %v2537
      %v2544 = vld [vmem:[#allocation5 + $0x8] sm:$0xff]
      %v2545 = vld [vmem:[#allocation5 + $0x10] sm:$0xff]
      %v2546 = vld [vmem:[#allocation5 + $0x18] sm:$0xff]
      %v2547 = vld [vmem:[#allocation5 + $0x20] sm:$0xff]
      %v2548 = vld [vmem:[#allocation5 + $0x30] sm:$0xff]
      %v2549 = vld [vmem:[#allocation5 + $0x38] sm:$0xff]
      %v2550 = vld [vmem:[#allocation5 + $0x40] sm:$0xff]
      %v2551 = vld [vmem:[#allocation5 + $0x48] sm:$0xff]
      %2560 = vrot.lane.b32.xlu0 %v2544, 127
      %v2561 = vpop.permute.xlu0 %2560
      %2562 = vrot.lane.b32.xlu0 %v2545, 127
      %v2563 = vpop.permute.xlu0 %2562
      %2564 = vrot.lane.b32.xlu0 %v2546, 127
      %v2565 = vpop.permute.xlu0 %2564
      %2566 = vrot.lane.b32.xlu0 %v2547, 127
      %v2567 = vpop.permute.xlu0 %2566
      %2568 = vrot.lane.b32.xlu0 %v2548, 127
      %v2569 = vpop.permute.xlu0 %2568
      %2570 = vrot.lane.b32.xlu0 %v2549, 127
      %v2571 = vpop.permute.xlu0 %2570
      %2572 = vrot.lane.b32.xlu0 %v2550, 127
      %v2573 = vpop.permute.xlu0 %2572
      %2574 = vrot.lane.b32.xlu0 %v2551, 127
      %v2575 = vpop.permute.xlu0 %2574
      %v2576 = vsel %vm679, %v2561, %v2563
      %v2577 = vsel %vm679, %v2563, %v2565
      %v2578 = vsel %vm679, %v2565, %v2567
      %v2579 = vsel %vm679, %v2569, %v2571
      %v2580 = vsel %vm679, %v2571, %v2573
      %v2581 = vsel %vm679, %v2573, %v2575
      %2588 = vst [vmem:[#allocation2 + $0xf0] sm:$0xff] %v2576
      %2589 = vst [vmem:[#allocation2 + $0xf8] sm:$0xff] %v2577
      %2590 = vst [vmem:[#allocation2 + $0x100] sm:$0xff] %v2578
      %2591 = vst [vmem:[#allocation2 + $0x108] sm:$0xff] %v2579
      %2592 = vst [vmem:[#allocation2 + $0x110] sm:$0xff] %v2580
      %2593 = vst [vmem:[#allocation2 + $0x118] sm:$0xff] %v2581
      %v2594 = vld [vmem:[#allocation5 + $0x8] sm:$0xff]
      %v2595 = vld [vmem:[#allocation5 + $0x10] sm:$0xff]
      %v2596 = vld [vmem:[#allocation5 + $0x18] sm:$0xff]
      %v2597 = vld [vmem:[#allocation5 + $0x20] sm:$0xff]
      %v2598 = vld [vmem:[#allocation5 + $0x30] sm:$0xff]
      %v2599 = vld [vmem:[#allocation5 + $0x38] sm:$0xff]
      %v2600 = vld [vmem:[#allocation5 + $0x40] sm:$0xff]
      %v2601 = vld [vmem:[#allocation5 + $0x48] sm:$0xff]
      %2610 = vrot.lane.b32.xlu0 %v2594, 111
      %v2611 = vpop.permute.xlu0 %2610
      %2612 = vrot.lane.b32.xlu0 %v2595, 111
      %v2613 = vpop.permute.xlu0 %2612
      %2614 = vrot.lane.b32.xlu0 %v2596, 111
      %v2615 = vpop.permute.xlu0 %2614
      %2616 = vrot.lane.b32.xlu0 %v2597, 111
      %v2617 = vpop.permute.xlu0 %2616
      %2618 = vrot.lane.b32.xlu0 %v2598, 111
      %v2619 = vpop.permute.xlu0 %2618
      %2620 = vrot.lane.b32.xlu0 %v2599, 111
      %v2621 = vpop.permute.xlu0 %2620
      %2622 = vrot.lane.b32.xlu0 %v2600, 111
      %v2623 = vpop.permute.xlu0 %2622
      %2624 = vrot.lane.b32.xlu0 %v2601, 111
      %v2625 = vpop.permute.xlu0 %2624
      %v2626 = vsel %vm705, %v2611, %v2613
      %v2627 = vsel %vm705, %v2613, %v2615
      %v2628 = vsel %vm705, %v2615, %v2617
      %v2629 = vsel %vm705, %v2619, %v2621
      %v2630 = vsel %vm705, %v2621, %v2623
      %v2631 = vsel %vm705, %v2623, %v2625
      %2638 = vst [vmem:[#allocation2 + $0x120] sm:$0xff] %v2626
      %2639 = vst [vmem:[#allocation2 + $0x128] sm:$0xff] %v2627
      %2640 = vst [vmem:[#allocation2 + $0x130] sm:$0xff] %v2628
      %2641 = vst [vmem:[#allocation2 + $0x138] sm:$0xff] %v2629
      %2642 = vst [vmem:[#allocation2 + $0x140] sm:$0xff] %v2630
      %2643 = vst [vmem:[#allocation2 + $0x148] sm:$0xff] %v2631
      %v2644 = vld [vmem:[#allocation5 + $0x8] sm:$0xff]
      %v2645 = vld [vmem:[#allocation5 + $0x10] sm:$0xff]
      %v2646 = vld [vmem:[#allocation5 + $0x18] sm:$0xff]
      %v2647 = vld [vmem:[#allocation5 + $0x20] sm:$0xff]
      %v2648 = vld [vmem:[#allocation5 + $0x30] sm:$0xff]
      %v2649 = vld [vmem:[#allocation5 + $0x38] sm:$0xff]
      %v2650 = vld [vmem:[#allocation5 + $0x40] sm:$0xff]
      %v2651 = vld [vmem:[#allocation5 + $0x48] sm:$0xff]
      %2660 = vrot.lane.b32.xlu0 %v2644, 110
      %v2661 = vpop.permute.xlu0 %2660
      %2662 = vrot.lane.b32.xlu0 %v2645, 110
      %v2663 = vpop.permute.xlu0 %2662
      %2664 = vrot.lane.b32.xlu0 %v2646, 110
      %v2665 = vpop.permute.xlu0 %2664
      %2666 = vrot.lane.b32.xlu0 %v2647, 110
      %v2667 = vpop.permute.xlu0 %2666
      %2668 = vrot.lane.b32.xlu0 %v2648, 110
      %v2669 = vpop.permute.xlu0 %2668
      %2670 = vrot.lane.b32.xlu0 %v2649, 110
      %v2671 = vpop.permute.xlu0 %2670
      %2672 = vrot.lane.b32.xlu0 %v2650, 110
      %v2673 = vpop.permute.xlu0 %2672
      %2674 = vrot.lane.b32.xlu0 %v2651, 110
      %v2675 = vpop.permute.xlu0 %2674
      %v2676 = vsel %vm731, %v2661, %v2663
      %v2677 = vsel %vm731, %v2663, %v2665
      %v2678 = vsel %vm731, %v2665, %v2667
      %v2679 = vsel %vm731, %v2669, %v2671
      %v2680 = vsel %vm731, %v2671, %v2673
      %v2681 = vsel %vm731, %v2673, %v2675
      %2688 = vst [vmem:[#allocation2 + $0x150] sm:$0xff] %v2676
      %2689 = vst [vmem:[#allocation2 + $0x158] sm:$0xff] %v2677
      %2690 = vst [vmem:[#allocation2 + $0x160] sm:$0xff] %v2678
      %2691 = vst [vmem:[#allocation2 + $0x168] sm:$0xff] %v2679
      %2692 = vst [vmem:[#allocation2 + $0x170] sm:$0xff] %v2680
      %2693 = vst [vmem:[#allocation2 + $0x178] sm:$0xff] %v2681
      %v2694 = vld [vmem:[#allocation5 + $0x8] sm:$0xff]
      %v2695 = vld [vmem:[#allocation5 + $0x10] sm:$0xff]
      %v2696 = vld [vmem:[#allocation5 + $0x18] sm:$0xff]
      %v2697 = vld [vmem:[#allocation5 + $0x20] sm:$0xff]
      %v2698 = vld [vmem:[#allocation5 + $0x30] sm:$0xff]
      %v2699 = vld [vmem:[#allocation5 + $0x38] sm:$0xff]
      %v2700 = vld [vmem:[#allocation5 + $0x40] sm:$0xff]
      %v2701 = vld [vmem:[#allocation5 + $0x48] sm:$0xff]
      %2710 = vrot.lane.b32.xlu0 %v2694, 109
      %v2711 = vpop.permute.xlu0 %2710
      %2712 = vrot.lane.b32.xlu0 %v2695, 109
      %v2713 = vpop.permute.xlu0 %2712
      %2714 = vrot.lane.b32.xlu0 %v2696, 109
      %v2715 = vpop.permute.xlu0 %2714
      %2716 = vrot.lane.b32.xlu0 %v2697, 109
      %v2717 = vpop.permute.xlu0 %2716
      %2718 = vrot.lane.b32.xlu0 %v2698, 109
      %v2719 = vpop.permute.xlu0 %2718
      %2720 = vrot.lane.b32.xlu0 %v2699, 109
      %v2721 = vpop.permute.xlu0 %2720
      %2722 = vrot.lane.b32.xlu0 %v2700, 109
      %v2723 = vpop.permute.xlu0 %2722
      %2724 = vrot.lane.b32.xlu0 %v2701, 109
      %v2725 = vpop.permute.xlu0 %2724
      %v2726 = vsel %vm757, %v2711, %v2713
      %v2727 = vsel %vm757, %v2713, %v2715
      %v2728 = vsel %vm757, %v2715, %v2717
      %v2729 = vsel %vm757, %v2719, %v2721
      %v2730 = vsel %vm757, %v2721, %v2723
      %v2731 = vsel %vm757, %v2723, %v2725
      %2738 = vst [vmem:[#allocation2 + $0x180] sm:$0xff] %v2726
      %2739 = vst [vmem:[#allocation2 + $0x188] sm:$0xff] %v2727
      %2740 = vst [vmem:[#allocation2 + $0x190] sm:$0xff] %v2728
      %2741 = vst [vmem:[#allocation2 + $0x198] sm:$0xff] %v2729
      %2742 = vst [vmem:[#allocation2 + $0x1a0] sm:$0xff] %v2730
      %2743 = vst [vmem:[#allocation2 + $0x1a8] sm:$0xff] %v2731
      %v2744 = vld [vmem:[#allocation4] sm:$0xff]
      %v2745 = vld [vmem:[#allocation4 + $0x8] sm:$0xff]
      %v2746 = vld [vmem:[#allocation4 + $0x10] sm:$0xff]
      %v2747 = vld [vmem:[#allocation4 + $0x18] sm:$0xff]
      %2752 = vrot.lane.b32.xlu0 %v2744, 19
      %v2753 = vpop.permute.xlu0 %2752
      %2754 = vrot.lane.b32.xlu0 %v2745, 19
      %v2755 = vpop.permute.xlu0 %2754
      %2756 = vrot.lane.b32.xlu0 %v2746, 19
      %v2757 = vpop.permute.xlu0 %2756
      %2758 = vrot.lane.b32.xlu0 %v2747, 19
      %v2759 = vpop.permute.xlu0 %2758
      %v2760 = vsel %vm569, %v2753, %v2755
      %v2761 = vsel %vm569, %v2755, %v2757
      %v2762 = vsel %vm569, %v2757, %v2759
      %2766 = vst [vmem:[#allocation2 + $0x1b0] sm:$0xff] %v2760
      %2767 = vst [vmem:[#allocation2 + $0x1b8] sm:$0xff] %v2761
      %2768 = vst [vmem:[#allocation2 + $0x1c0] sm:$0xff] %v2762
      %v2769 = vld [vmem:[#allocation4] sm:$0xff]
      %v2770 = vld [vmem:[#allocation4 + $0x8] sm:$0xff]
      %v2771 = vld [vmem:[#allocation4 + $0x10] sm:$0xff]
      %v2772 = vld [vmem:[#allocation4 + $0x18] sm:$0xff]
      %2777 = vrot.lane.b32.xlu0 %v2769, 18
      %v2778 = vpop.permute.xlu0 %2777
      %2779 = vrot.lane.b32.xlu0 %v2770, 18
      %v2780 = vpop.permute.xlu0 %2779
      %2781 = vrot.lane.b32.xlu0 %v2771, 18
      %v2782 = vpop.permute.xlu0 %2781
      %2783 = vrot.lane.b32.xlu0 %v2772, 18
      %v2784 = vpop.permute.xlu0 %2783
      %v2785 = vsel %vm595, %v2778, %v2780
      %v2786 = vsel %vm595, %v2780, %v2782
      %v2787 = vsel %vm595, %v2782, %v2784
      %2791 = vst [vmem:[#allocation2 + $0x1c8] sm:$0xff] %v2785
      %2792 = vst [vmem:[#allocation2 + $0x1d0] sm:$0xff] %v2786
      %2793 = vst [vmem:[#allocation2 + $0x1d8] sm:$0xff] %v2787
      %v2794 = vld [vmem:[#allocation4] sm:$0xff]
      %v2795 = vld [vmem:[#allocation4 + $0x8] sm:$0xff]
      %v2796 = vld [vmem:[#allocation4 + $0x10] sm:$0xff]
      %v2797 = vld [vmem:[#allocation4 + $0x18] sm:$0xff]
      %2802 = vrot.lane.b32.xlu0 %v2794, 17
      %v2803 = vpop.permute.xlu0 %2802
      %2804 = vrot.lane.b32.xlu0 %v2795, 17
      %v2805 = vpop.permute.xlu0 %2804
      %2806 = vrot.lane.b32.xlu0 %v2796, 17
      %v2807 = vpop.permute.xlu0 %2806
      %2808 = vrot.lane.b32.xlu0 %v2797, 17
      %v2809 = vpop.permute.xlu0 %2808
      %v2810 = vsel %vm621, %v2803, %v2805
      %v2811 = vsel %vm621, %v2805, %v2807
      %v2812 = vsel %vm621, %v2807, %v2809
      %2816 = vst [vmem:[#allocation2 + $0x1e0] sm:$0xff] %v2810
      %2817 = vst [vmem:[#allocation2 + $0x1e8] sm:$0xff] %v2811
      %2818 = vst [vmem:[#allocation2 + $0x1f0] sm:$0xff] %v2812
      %v2819 = vld [vmem:[#allocation4] sm:$0xff]
      %v2820 = vld [vmem:[#allocation4 + $0x8] sm:$0xff]
      %v2821 = vld [vmem:[#allocation4 + $0x10] sm:$0xff]
      %v2822 = vld [vmem:[#allocation4 + $0x18] sm:$0xff]
      %2827 = vrot.lane.b32.xlu0 %v2819, 1
      %v2828 = vpop.permute.xlu0 %2827
      %2829 = vrot.lane.b32.xlu0 %v2820, 1
      %v2830 = vpop.permute.xlu0 %2829
      %2831 = vrot.lane.b32.xlu0 %v2821, 1
      %v2832 = vpop.permute.xlu0 %2831
      %2833 = vrot.lane.b32.xlu0 %v2822, 1
      %v2834 = vpop.permute.xlu0 %2833
      %v2835 = vsel %vm647, %v2828, %v2830
      %v2836 = vsel %vm647, %v2830, %v2832
      %v2837 = vsel %vm647, %v2832, %v2834
      %2841 = vst [vmem:[#allocation2 + $0x1f8] sm:$0xff] %v2835
      %2842 = vst [vmem:[#allocation2 + $0x200] sm:$0xff] %v2836
      %2843 = vst [vmem:[#allocation2 + $0x208] sm:$0xff] %v2837
      %v2844 = vld [vmem:[#allocation4 + $0x8] sm:$0xff]
      %v2845 = vld [vmem:[#allocation4 + $0x10] sm:$0xff]
      %v2846 = vld [vmem:[#allocation4 + $0x18] sm:$0xff]
      %2847 = vst [vmem:[#allocation2 + $0x210] sm:$0xff] %v2844
      %2848 = vst [vmem:[#allocation2 + $0x218] sm:$0xff] %v2845
      %2849 = vst [vmem:[#allocation2 + $0x220] sm:$0xff] %v2846
      %v2850 = vld [vmem:[#allocation4 + $0x8] sm:$0xff]
      %v2851 = vld [vmem:[#allocation4 + $0x10] sm:$0xff]
      %v2852 = vld [vmem:[#allocation4 + $0x18] sm:$0xff]
      %v2853 = vld [vmem:[#allocation4 + $0x20] sm:$0xff]
      %2858 = vrot.lane.b32.xlu0 %v2850, 127
      %v2859 = vpop.permute.xlu0 %2858
      %2860 = vrot.lane.b32.xlu0 %v2851, 127
      %v2861 = vpop.permute.xlu0 %2860
      %2862 = vrot.lane.b32.xlu0 %v2852, 127
      %v2863 = vpop.permute.xlu0 %2862
      %2864 = vrot.lane.b32.xlu0 %v2853, 127
      %v2865 = vpop.permute.xlu0 %2864
      %v2866 = vsel %vm679, %v2859, %v2861
      %v2867 = vsel %vm679, %v2861, %v2863
      %v2868 = vsel %vm679, %v2863, %v2865
      %2872 = vst [vmem:[#allocation2 + $0x228] sm:$0xff] %v2866
      %2873 = vst [vmem:[#allocation2 + $0x230] sm:$0xff] %v2867
      %2874 = vst [vmem:[#allocation2 + $0x238] sm:$0xff] %v2868
      %v2875 = vld [vmem:[#allocation4 + $0x8] sm:$0xff]
      %v2876 = vld [vmem:[#allocation4 + $0x10] sm:$0xff]
      %v2877 = vld [vmem:[#allocation4 + $0x18] sm:$0xff]
      %v2878 = vld [vmem:[#allocation4 + $0x20] sm:$0xff]
      %2883 = vrot.lane.b32.xlu0 %v2875, 111
      %v2884 = vpop.permute.xlu0 %2883
      %2885 = vrot.lane.b32.xlu0 %v2876, 111
      %v2886 = vpop.permute.xlu0 %2885
      %2887 = vrot.lane.b32.xlu0 %v2877, 111
      %v2888 = vpop.permute.xlu0 %2887
      %2889 = vrot.lane.b32.xlu0 %v2878, 111
      %v2890 = vpop.permute.xlu0 %2889
      %v2891 = vsel %vm705, %v2884, %v2886
      %v2892 = vsel %vm705, %v2886, %v2888
      %v2893 = vsel %vm705, %v2888, %v2890
      %2897 = vst [vmem:[#allocation2 + $0x240] sm:$0xff] %v2891
      %2898 = vst [vmem:[#allocation2 + $0x248] sm:$0xff] %v2892
      %2899 = vst [vmem:[#allocation2 + $0x250] sm:$0xff] %v2893
      %v2900 = vld [vmem:[#allocation4 + $0x8] sm:$0xff]
      %v2901 = vld [vmem:[#allocation4 + $0x10] sm:$0xff]
      %v2902 = vld [vmem:[#allocation4 + $0x18] sm:$0xff]
      %v2903 = vld [vmem:[#allocation4 + $0x20] sm:$0xff]
      %2908 = vrot.lane.b32.xlu0 %v2900, 110
      %v2909 = vpop.permute.xlu0 %2908
      %2910 = vrot.lane.b32.xlu0 %v2901, 110
      %v2911 = vpop.permute.xlu0 %2910
      %2912 = vrot.lane.b32.xlu0 %v2902, 110
      %v2913 = vpop.permute.xlu0 %2912
      %2914 = vrot.lane.b32.xlu0 %v2903, 110
      %v2915 = vpop.permute.xlu0 %2914
      %v2916 = vsel %vm731, %v2909, %v2911
      %v2917 = vsel %vm731, %v2911, %v2913
      %v2918 = vsel %vm731, %v2913, %v2915
      %2922 = vst [vmem:[#allocation2 + $0x258] sm:$0xff] %v2916
      %2923 = vst [vmem:[#allocation2 + $0x260] sm:$0xff] %v2917
      %2924 = vst [vmem:[#allocation2 + $0x268] sm:$0xff] %v2918
      %v2925 = vld [vmem:[#allocation4 + $0x8] sm:$0xff]
      %v2926 = vld [vmem:[#allocation4 + $0x10] sm:$0xff]
      %v2927 = vld [vmem:[#allocation4 + $0x18] sm:$0xff]
      %v2928 = vld [vmem:[#allocation4 + $0x20] sm:$0xff]
      %2933 = vrot.lane.b32.xlu0 %v2925, 109
      %v2934 = vpop.permute.xlu0 %2933
      %2935 = vrot.lane.b32.xlu0 %v2926, 109
      %v2936 = vpop.permute.xlu0 %2935
      %2937 = vrot.lane.b32.xlu0 %v2927, 109
      %v2938 = vpop.permute.xlu0 %2937
      %2939 = vrot.lane.b32.xlu0 %v2928, 109
      %v2940 = vpop.permute.xlu0 %2939
      %v2941 = vsel %vm757, %v2934, %v2936
      %v2942 = vsel %vm757, %v2936, %v2938
      %v2943 = vsel %vm757, %v2938, %v2940
      %2947 = vst [vmem:[#allocation2 + $0x270] sm:$0xff] %v2941
      %2948 = vst [vmem:[#allocation2 + $0x278] sm:$0xff] %v2942
      %2949 = vst [vmem:[#allocation2 + $0x280] sm:$0xff] %v2943
      %v2950 = vld [vmem:[%s9] sm:$0xff]
      %v2951 = vld [vmem:[%s9 + $0x8] sm:$0xff]
      %v2952 = vld [vmem:[#allocation2] sm:$0xff]
      %v2953 = vld [vmem:[#allocation2 + $0x8] sm:$0xff]
      %v2954 = vld [vmem:[#allocation2 + $0x10] sm:$0xff]
      %v2955 = vld [vmem:[#allocation2 + $0x18] sm:$0xff]
      %v2956 = vld [vmem:[#allocation2 + $0x20] sm:$0xff]
      %v2957 = vld [vmem:[#allocation2 + $0x28] sm:$0xff]
      %v2958 = vld [vmem:[#allocation2 + $0x30] sm:$0xff]
      %v2959 = vld [vmem:[#allocation2 + $0x38] sm:$0xff]
      %v2960 = vld [vmem:[#allocation2 + $0x40] sm:$0xff]
      %v2961 = vld [vmem:[#allocation2 + $0x48] sm:$0xff]
      %v2962 = vld [vmem:[#allocation2 + $0x50] sm:$0xff]
      %v2963 = vld [vmem:[#allocation2 + $0x58] sm:$0xff]
      %v2964 = vld [vmem:[#allocation2 + $0x60] sm:$0xff]
      %v2965 = vld [vmem:[#allocation2 + $0x68] sm:$0xff]
      %v2966 = vld [vmem:[#allocation2 + $0x70] sm:$0xff]
      %v2967 = vld [vmem:[#allocation2 + $0x78] sm:$0xff]
      %v2968 = vld [vmem:[#allocation2 + $0x80] sm:$0xff]
      %v2969 = vld [vmem:[#allocation2 + $0x88] sm:$0xff]
      %v2970 = vld [vmem:[#allocation2 + $0x90] sm:$0xff]
      %v2971 = vld [vmem:[#allocation2 + $0x98] sm:$0xff]
      %v2972 = vld [vmem:[#allocation2 + $0xa0] sm:$0xff]
      %v2973 = vld [vmem:[#allocation2 + $0xa8] sm:$0xff]
      %v2974 = vld [vmem:[#allocation2 + $0xb0] sm:$0xff]
      %v2975 = vld [vmem:[#allocation2 + $0xb8] sm:$0xff]
      %v2976 = vld [vmem:[#allocation2 + $0xc0] sm:$0xff]
      %v2977 = vld [vmem:[#allocation2 + $0xc8] sm:$0xff]
      %v2978 = vld [vmem:[#allocation2 + $0xd0] sm:$0xff]
      %v2979 = vld [vmem:[#allocation2 + $0xd8] sm:$0xff]
      %v2980 = vld [vmem:[#allocation2 + $0xe0] sm:$0xff]
      %v2981 = vld [vmem:[#allocation2 + $0xe8] sm:$0xff]
      %v2982 = vld [vmem:[#allocation2 + $0xf0] sm:$0xff]
      %v2983 = vld [vmem:[#allocation2 + $0xf8] sm:$0xff]
      %v2984 = vld [vmem:[#allocation2 + $0x100] sm:$0xff]
      %v2985 = vld [vmem:[#allocation2 + $0x108] sm:$0xff]
      %v2986 = vld [vmem:[#allocation2 + $0x110] sm:$0xff]
      %v2987 = vld [vmem:[#allocation2 + $0x118] sm:$0xff]
      %v2988 = vld [vmem:[#allocation2 + $0x120] sm:$0xff]
      %v2989 = vld [vmem:[#allocation2 + $0x128] sm:$0xff]
      %v2990 = vld [vmem:[#allocation2 + $0x130] sm:$0xff]
      %v2991 = vld [vmem:[#allocation2 + $0x138] sm:$0xff]
      %v2992 = vld [vmem:[#allocation2 + $0x140] sm:$0xff]
      %v2993 = vld [vmem:[#allocation2 + $0x148] sm:$0xff]
      %v2994 = vld [vmem:[#allocation2 + $0x150] sm:$0xff]
      %v2995 = vld [vmem:[#allocation2 + $0x158] sm:$0xff]
      %v2996 = vld [vmem:[#allocation2 + $0x160] sm:$0xff]
      %v2997 = vld [vmem:[#allocation2 + $0x168] sm:$0xff]
      %v2998 = vld [vmem:[#allocation2 + $0x170] sm:$0xff]
      %v2999 = vld [vmem:[#allocation2 + $0x178] sm:$0xff]
      %v3000 = vld [vmem:[#allocation2 + $0x180] sm:$0xff]
      %v3001 = vld [vmem:[#allocation2 + $0x188] sm:$0xff]
      %v3002 = vld [vmem:[#allocation2 + $0x190] sm:$0xff]
      %v3003 = vld [vmem:[#allocation2 + $0x198] sm:$0xff]
      %v3004 = vld [vmem:[#allocation2 + $0x1a0] sm:$0xff]
      %v3005 = vld [vmem:[#allocation2 + $0x1a8] sm:$0xff]
      %v3006 = vld [vmem:[#allocation2 + $0x1b0] sm:$0xff]
      %v3007 = vld [vmem:[#allocation2 + $0x1b8] sm:$0xff]
      %v3008 = vld [vmem:[#allocation2 + $0x1c0] sm:$0xff]
      %v3009 = vld [vmem:[#allocation2 + $0x1c8] sm:$0xff]
      %v3010 = vld [vmem:[#allocation2 + $0x1d0] sm:$0xff]
      %v3011 = vld [vmem:[#allocation2 + $0x1d8] sm:$0xff]
      %v3012 = vld [vmem:[#allocation2 + $0x1e0] sm:$0xff]
      %v3013 = vld [vmem:[#allocation2 + $0x1e8] sm:$0xff]
      %v3014 = vld [vmem:[#allocation2 + $0x1f0] sm:$0xff]
      %v3015 = vld [vmem:[#allocation2 + $0x1f8] sm:$0xff]
      %v3016 = vld [vmem:[#allocation2 + $0x200] sm:$0xff]
      %v3017 = vld [vmem:[#allocation2 + $0x208] sm:$0xff]
      %v3018 = vld [vmem:[#allocation2 + $0x210] sm:$0xff]
      %v3019 = vld [vmem:[#allocation2 + $0x218] sm:$0xff]
      %v3020 = vld [vmem:[#allocation2 + $0x220] sm:$0xff]
      %v3021 = vld [vmem:[#allocation2 + $0x228] sm:$0xff]
      %v3022 = vld [vmem:[#allocation2 + $0x230] sm:$0xff]
      %v3023 = vld [vmem:[#allocation2 + $0x238] sm:$0xff]
      %v3024 = vld [vmem:[#allocation2 + $0x240] sm:$0xff]
      %v3025 = vld [vmem:[#allocation2 + $0x248] sm:$0xff]
      %v3026 = vld [vmem:[#allocation2 + $0x250] sm:$0xff]
      %v3027 = vld [vmem:[#allocation2 + $0x258] sm:$0xff]
      %v3028 = vld [vmem:[#allocation2 + $0x260] sm:$0xff]
      %v3029 = vld [vmem:[#allocation2 + $0x268] sm:$0xff]
      %v3030 = vld [vmem:[#allocation2 + $0x270] sm:$0xff]
      %v3031 = vld [vmem:[#allocation2 + $0x278] sm:$0xff]
      %v3032 = vld [vmem:[#allocation2 + $0x280] sm:$0xff]
      %v3033 = vld [vmem:[%s10] sm:$0xff]
      %3035 = vset.pattern.permute.xlu0 0
      %3036 = vperm.xlu0 %3035, %v3033
      %v3037 = vpop.permute.xlu0 %3036
      %vm3039 = vcmask 719872
      %v3041 = vsel %vm3039, %v2951, 0
      %3043 = vmatprep.subr.mxu0 %v2998
      %3044 = vmatpush1.msra.mxu0 %v2997
      %3045 = vmatprep.subr.mxu0 %v2995
      %3046 = vmatpush1.msra.mxu0 %v2994
      %3047 = vmatprep.subr.mxu0 %v2992
      %3048 = vmatpush1.msra.mxu0 %v2991
      %3049 = vmatprep.subr.mxu0 %v2989
      %3050 = vmatpush1.msra.mxu0 %v2988
      %3051 = vmatprep.subr.mxu0 %v2986
      %3052 = vmatpush1.msra.mxu0 %v2985
      %3053 = vmatprep.subr.mxu0 %v2983
      %3054 = vmatpush1.msra.mxu0 %v2982
      %3055 = vmatprep.subr.mxu0 %v2980
      %3056 = vmatpush1.msra.mxu0 %v2979
      %3057 = vmatprep.subr.mxu0 %v2977
      %3058 = vmatpush1.msra.mxu0 %v2976
      %3059 = vmatprep.subr.mxu0 %v2974
      %3060 = vmatpush1.msra.mxu0 %v2973
      %3061 = vmatprep.subr.mxu0 %v2971
      %3062 = vmatpush1.msra.mxu0 %v2970
      %3063 = vmatprep.subr.mxu0 %v2968
      %3064 = vmatpush1.msra.mxu0 %v2967
      %3065 = vmatprep.subr.mxu0 %v2965
      %3066 = vmatpush1.msra.mxu0 %v2964
      %3067 = vmatprep.subr.mxu0 %v2962
      %3068 = vmatpush1.msra.mxu0 %v2961
      %3069 = vmatprep.subr.mxu0 %v2959
      %3070 = vmatpush1.msra.mxu0 %v2958
      %3071 = vmatprep.subr.mxu0 %v2956
      %3072 = vmatpush1.msra.mxu0 %v2955
      %3073 = vmatprep.subr.mxu0 %v2953
      %3074 = vmatpush1.msra.mxu0 %v2952
      %3075 = vmatprep.subr.mxu0 0.0
      %3076 = vmatpush2.msra.mxu0 0.0
      %3077 = vmatprep.subr.mxu0 0.0
      %3078 = vmatpush2.msra.mxu0 0.0
      %3079 = vmatprep.subr.mxu0 0.0
      %3080 = vmatpush2.msra.mxu0 0.0
      %3081 = vmatprep.subr.mxu0 0.0
      %3082 = vmatpush2.msra.mxu0 0.0
      %3083 = vmatprep.subr.mxu0 0.0
      %3084 = vmatpush2.msra.mxu0 0.0
      %3085 = vmatprep.subr.mxu0 %v3031
      %3086 = vmatpush2.msra.mxu0 %v3030
      %3087 = vmatprep.subr.mxu0 %v3028
      %3088 = vmatpush2.msra.mxu0 %v3027
      %3089 = vmatprep.subr.mxu0 %v3025
      %3090 = vmatpush2.msra.mxu0 %v3024
      %3091 = vmatprep.subr.mxu0 %v3022
      %3092 = vmatpush2.msra.mxu0 %v3021
      %3093 = vmatprep.subr.mxu0 %v3019
      %3094 = vmatpush2.msra.mxu0 %v3018
      %3095 = vmatprep.subr.mxu0 %v3016
      %3096 = vmatpush2.msra.mxu0 %v3015
      %3097 = vmatprep.subr.mxu0 %v3013
      %3098 = vmatpush2.msra.mxu0 %v3012
      %3099 = vmatprep.subr.mxu0 %v3010
      %3100 = vmatpush2.msra.mxu0 %v3009
      %3101 = vmatprep.subr.mxu0 %v3007
      %3102 = vmatpush2.msra.mxu0 %v3006
      %3103 = vmatprep.subr.mxu0 %v3004
      %3104 = vmatpush2.msra.mxu0 %v3003
      %3105 = vmatprep.subr.mxu0 %v3001
      %3106 = vmatpush2.msra.mxu0 %v3000
      %3107 = vmatprep.mubr.f32.mxu0 %v3041
      %3108 = vmatmul.mubr.f32.gmra.mxu0 %v2950
      %v3109 = vpop.f32.mrf.mxu0
      %v3110 = vadd.f32 %v3037, %v3109
      %v3111 = vpop.f32.mrf.mxu0
      %v3112 = vadd.f32 %v3037, %v3111
      %3113 = vdwg.mxu0
      %3114 = vmatprep.subr.mxu0 0.0
      %3115 = vmatpush1.msra.mxu0 %v2999
      %3116 = vmatprep.subr.mxu0 0.0
      %3117 = vmatpush1.msra.mxu0 %v2996
      %3118 = vmatprep.subr.mxu0 0.0
      %3119 = vmatpush1.msra.mxu0 %v2993
      %3120 = vmatprep.subr.mxu0 0.0
      %3121 = vmatpush1.msra.mxu0 %v2990
      %3122 = vmatprep.subr.mxu0 0.0
      %3123 = vmatpush1.msra.mxu0 %v2987
      %3124 = vmatprep.subr.mxu0 0.0
      %3125 = vmatpush1.msra.mxu0 %v2984
      %3126 = vmatprep.subr.mxu0 0.0
      %3127 = vmatpush1.msra.mxu0 %v2981
      %3128 = vmatprep.subr.mxu0 0.0
      %3129 = vmatpush1.msra.mxu0 %v2978
      %3130 = vmatprep.subr.mxu0 0.0
      %3131 = vmatpush1.msra.mxu0 %v2975
      %3132 = vmatprep.subr.mxu0 0.0
      %3133 = vmatpush1.msra.mxu0 %v2972
      %3134 = vmatprep.subr.mxu0 0.0
      %3135 = vmatpush1.msra.mxu0 %v2969
      %3136 = vmatprep.subr.mxu0 0.0
      %3137 = vmatpush1.msra.mxu0 %v2966
      %3138 = vmatprep.subr.mxu0 0.0
      %3139 = vmatpush1.msra.mxu0 %v2963
      %3140 = vmatprep.subr.mxu0 0.0
      %3141 = vmatpush1.msra.mxu0 %v2960
      %3142 = vmatprep.subr.mxu0 0.0
      %3143 = vmatpush1.msra.mxu0 %v2957
      %3144 = vmatprep.subr.mxu0 0.0
      %3145 = vmatpush1.msra.mxu0 %v2954
      %3146 = vmatprep.subr.mxu0 0.0
      %3147 = vmatpush2.msra.mxu0 0.0
      %3148 = vmatprep.subr.mxu0 0.0
      %3149 = vmatpush2.msra.mxu0 0.0
      %3150 = vmatprep.subr.mxu0 0.0
      %3151 = vmatpush2.msra.mxu0 0.0
      %3152 = vmatprep.subr.mxu0 0.0
      %3153 = vmatpush2.msra.mxu0 0.0
      %3154 = vmatprep.subr.mxu0 0.0
      %3155 = vmatpush2.msra.mxu0 0.0
      %3156 = vmatprep.subr.mxu0 0.0
      %3157 = vmatpush2.msra.mxu0 %v3032
      %3158 = vmatprep.subr.mxu0 0.0
      %3159 = vmatpush2.msra.mxu0 %v3029
      %3160 = vmatprep.subr.mxu0 0.0
      %3161 = vmatpush2.msra.mxu0 %v3026
      %3162 = vmatprep.subr.mxu0 0.0
      %3163 = vmatpush2.msra.mxu0 %v3023
      %3164 = vmatprep.subr.mxu0 0.0
      %3165 = vmatpush2.msra.mxu0 %v3020
      %3166 = vmatprep.subr.mxu0 0.0
      %3167 = vmatpush2.msra.mxu0 %v3017
      %3168 = vmatprep.subr.mxu0 0.0
      %3169 = vmatpush2.msra.mxu0 %v3014
      %3170 = vmatprep.subr.mxu0 0.0
      %3171 = vmatpush2.msra.mxu0 %v3011
      %3172 = vmatprep.subr.mxu0 0.0
      %3173 = vmatpush2.msra.mxu0 %v3008
      %3174 = vmatprep.subr.mxu0 0.0
      %3175 = vmatpush2.msra.mxu0 %v3005
      %3176 = vmatprep.subr.mxu0 0.0
      %3177 = vmatpush2.msra.mxu0 %v3002
      %3178 = vmatprep.mubr.f32.mxu0 %v3041
      %3179 = vmatmul.mubr.f32.gmra.mxu0 %v2950
      %v3180 = vpop.f32.mrf.mxu0
      %v3181 = vadd.f32 %v3037, %v3180
      %v3182 = vpop.f32.mrf.mxu0
      %3183 = vdwg.mxu0
      %v3184 = vmax.f32 %v3110, 0.0
      %v3185 = vmax.f32 %v3112, 0.0
      %v3186 = vmax.f32 %v3181, 0.0
      %v3187 = vsel %vm962, %v3184, 0.0
      %v3188 = vsel %vm963, %v3185, 0.0
      %v3189 = vsel %vm964, %v3186, 0.0
      %3190 = vst [vmem:[#allocation6 + $0x8] sm:$0xff] %v3187
      %3191 = vst [vmem:[#allocation6 + $0x10] sm:$0xff] %v3188
      %3192 = vst [vmem:[#allocation6 + $0x18] sm:$0xff] %v3189
      %v3193 = vld [vmem:[#allocation6] sm:$0xff]
      %v3194 = vld [vmem:[#allocation6 + $0x8] sm:$0xff]
      %v3195 = vld [vmem:[#allocation6 + $0x10] sm:$0xff]
      %v3196 = vld [vmem:[#allocation6 + $0x18] sm:$0xff]
      %3201 = vrot.lane.b32.xlu0 %v3193, 19
      %v3202 = vpop.permute.xlu0 %3201
      %3203 = vrot.lane.b32.xlu0 %v3194, 19
      %v3204 = vpop.permute.xlu0 %3203
      %3205 = vrot.lane.b32.xlu0 %v3195, 19
      %v3206 = vpop.permute.xlu0 %3205
      %3207 = vrot.lane.b32.xlu0 %v3196, 19
      %v3208 = vpop.permute.xlu0 %3207
      %v3209 = vsel %vm569, %v3202, %v3204
      %v3210 = vsel %vm569, %v3204, %v3206
      %v3211 = vsel %vm569, %v3206, %v3208
      %3215 = vst [vmem:[#allocation2] sm:$0xff] %v3209
      %3216 = vst [vmem:[#allocation2 + $0x8] sm:$0xff] %v3210
      %3217 = vst [vmem:[#allocation2 + $0x10] sm:$0xff] %v3211
      %v3218 = vld [vmem:[#allocation6] sm:$0xff]
      %v3219 = vld [vmem:[#allocation6 + $0x8] sm:$0xff]
      %v3220 = vld [vmem:[#allocation6 + $0x10] sm:$0xff]
      %v3221 = vld [vmem:[#allocation6 + $0x18] sm:$0xff]
      %3226 = vrot.lane.b32.xlu0 %v3218, 18
      %v3227 = vpop.permute.xlu0 %3226
      %3228 = vrot.lane.b32.xlu0 %v3219, 18
      %v3229 = vpop.permute.xlu0 %3228
      %3230 = vrot.lane.b32.xlu0 %v3220, 18
      %v3231 = vpop.permute.xlu0 %3230
      %3232 = vrot.lane.b32.xlu0 %v3221, 18
      %v3233 = vpop.permute.xlu0 %3232
      %v3234 = vsel %vm595, %v3227, %v3229
      %v3235 = vsel %vm595, %v3229, %v3231
      %v3236 = vsel %vm595, %v3231, %v3233
      %3240 = vst [vmem:[#allocation2 + $0x18] sm:$0xff] %v3234
      %3241 = vst [vmem:[#allocation2 + $0x20] sm:$0xff] %v3235
      %3242 = vst [vmem:[#allocation2 + $0x28] sm:$0xff] %v3236
      %v3243 = vld [vmem:[#allocation6] sm:$0xff]
      %v3244 = vld [vmem:[#allocation6 + $0x8] sm:$0xff]
      %v3245 = vld [vmem:[#allocation6 + $0x10] sm:$0xff]
      %v3246 = vld [vmem:[#allocation6 + $0x18] sm:$0xff]
      %3251 = vrot.lane.b32.xlu0 %v3243, 17
      %v3252 = vpop.permute.xlu0 %3251
      %3253 = vrot.lane.b32.xlu0 %v3244, 17
      %v3254 = vpop.permute.xlu0 %3253
      %3255 = vrot.lane.b32.xlu0 %v3245, 17
      %v3256 = vpop.permute.xlu0 %3255
      %3257 = vrot.lane.b32.xlu0 %v3246, 17
      %v3258 = vpop.permute.xlu0 %3257
      %v3259 = vsel %vm621, %v3252, %v3254
      %v3260 = vsel %vm621, %v3254, %v3256
      %v3261 = vsel %vm621, %v3256, %v3258
      %3265 = vst [vmem:[#allocation2 + $0x30] sm:$0xff] %v3259
      %3266 = vst [vmem:[#allocation2 + $0x38] sm:$0xff] %v3260
      %3267 = vst [vmem:[#allocation2 + $0x40] sm:$0xff] %v3261
      %v3268 = vld [vmem:[#allocation6] sm:$0xff]
      %v3269 = vld [vmem:[#allocation6 + $0x8] sm:$0xff]
      %v3270 = vld [vmem:[#allocation6 + $0x10] sm:$0xff]
      %v3271 = vld [vmem:[#allocation6 + $0x18] sm:$0xff]
      %3276 = vrot.lane.b32.xlu0 %v3268, 1
      %v3277 = vpop.permute.xlu0 %3276
      %3278 = vrot.lane.b32.xlu0 %v3269, 1
      %v3279 = vpop.permute.xlu0 %3278
      %3280 = vrot.lane.b32.xlu0 %v3270, 1
      %v3281 = vpop.permute.xlu0 %3280
      %3282 = vrot.lane.b32.xlu0 %v3271, 1
      %v3283 = vpop.permute.xlu0 %3282
      %v3284 = vsel %vm647, %v3277, %v3279
      %v3285 = vsel %vm647, %v3279, %v3281
      %v3286 = vsel %vm647, %v3281, %v3283
      %3290 = vst [vmem:[#allocation2 + $0x48] sm:$0xff] %v3284
      %3291 = vst [vmem:[#allocation2 + $0x50] sm:$0xff] %v3285
      %3292 = vst [vmem:[#allocation2 + $0x58] sm:$0xff] %v3286
      %v3293 = vld [vmem:[#allocation6 + $0x8] sm:$0xff]
      %v3294 = vld [vmem:[#allocation6 + $0x10] sm:$0xff]
      %v3295 = vld [vmem:[#allocation6 + $0x18] sm:$0xff]
      %3296 = vst [vmem:[#allocation2 + $0x60] sm:$0xff] %v3293
      %3297 = vst [vmem:[#allocation2 + $0x68] sm:$0xff] %v3294
      %3298 = vst [vmem:[#allocation2 + $0x70] sm:$0xff] %v3295
      %v3299 = vld [vmem:[#allocation6 + $0x8] sm:$0xff]
      %v3300 = vld [vmem:[#allocation6 + $0x10] sm:$0xff]
      %v3301 = vld [vmem:[#allocation6 + $0x18] sm:$0xff]
      %v3302 = vld [vmem:[#allocation6 + $0x20] sm:$0xff]
      %3307 = vrot.lane.b32.xlu0 %v3299, 127
      %v3308 = vpop.permute.xlu0 %3307
      %3309 = vrot.lane.b32.xlu0 %v3300, 127
      %v3310 = vpop.permute.xlu0 %3309
      %3311 = vrot.lane.b32.xlu0 %v3301, 127
      %v3312 = vpop.permute.xlu0 %3311
      %3313 = vrot.lane.b32.xlu0 %v3302, 127
      %v3314 = vpop.permute.xlu0 %3313
      %v3315 = vsel %vm679, %v3308, %v3310
      %v3316 = vsel %vm679, %v3310, %v3312
      %v3317 = vsel %vm679, %v3312, %v3314
      %3321 = vst [vmem:[#allocation2 + $0x78] sm:$0xff] %v3315
      %3322 = vst [vmem:[#allocation2 + $0x80] sm:$0xff] %v3316
      %3323 = vst [vmem:[#allocation2 + $0x88] sm:$0xff] %v3317
      %v3324 = vld [vmem:[#allocation6 + $0x8] sm:$0xff]
      %v3325 = vld [vmem:[#allocation6 + $0x10] sm:$0xff]
      %v3326 = vld [vmem:[#allocation6 + $0x18] sm:$0xff]
      %v3327 = vld [vmem:[#allocation6 + $0x20] sm:$0xff]
      %3332 = vrot.lane.b32.xlu0 %v3324, 111
      %v3333 = vpop.permute.xlu0 %3332
      %3334 = vrot.lane.b32.xlu0 %v3325, 111
      %v3335 = vpop.permute.xlu0 %3334
      %3336 = vrot.lane.b32.xlu0 %v3326, 111
      %v3337 = vpop.permute.xlu0 %3336
      %3338 = vrot.lane.b32.xlu0 %v3327, 111
      %v3339 = vpop.permute.xlu0 %3338
      %v3340 = vsel %vm705, %v3333, %v3335
      %v3341 = vsel %vm705, %v3335, %v3337
      %v3342 = vsel %vm705, %v3337, %v3339
      %3346 = vst [vmem:[#allocation2 + $0x90] sm:$0xff] %v3340
      %3347 = vst [vmem:[#allocation2 + $0x98] sm:$0xff] %v3341
      %3348 = vst [vmem:[#allocation2 + $0xa0] sm:$0xff] %v3342
      %v3349 = vld [vmem:[#allocation6 + $0x8] sm:$0xff]
      %v3350 = vld [vmem:[#allocation6 + $0x10] sm:$0xff]
      %v3351 = vld [vmem:[#allocation6 + $0x18] sm:$0xff]
      %v3352 = vld [vmem:[#allocation6 + $0x20] sm:$0xff]
      %3357 = vrot.lane.b32.xlu0 %v3349, 110
      %v3358 = vpop.permute.xlu0 %3357
      %3359 = vrot.lane.b32.xlu0 %v3350, 110
      %v3360 = vpop.permute.xlu0 %3359
      %3361 = vrot.lane.b32.xlu0 %v3351, 110
      %v3362 = vpop.permute.xlu0 %3361
      %3363 = vrot.lane.b32.xlu0 %v3352, 110
      %v3364 = vpop.permute.xlu0 %3363
      %v3365 = vsel %vm731, %v3358, %v3360
      %v3366 = vsel %vm731, %v3360, %v3362
      %v3367 = vsel %vm731, %v3362, %v3364
      %3371 = vst [vmem:[#allocation2 + $0xa8] sm:$0xff] %v3365
      %3372 = vst [vmem:[#allocation2 + $0xb0] sm:$0xff] %v3366
      %3373 = vst [vmem:[#allocation2 + $0xb8] sm:$0xff] %v3367
      %v3374 = vld [vmem:[#allocation6 + $0x8] sm:$0xff]
      %v3375 = vld [vmem:[#allocation6 + $0x10] sm:$0xff]
      %v3376 = vld [vmem:[#allocation6 + $0x18] sm:$0xff]
      %v3377 = vld [vmem:[#allocation6 + $0x20] sm:$0xff]
      %3382 = vrot.lane.b32.xlu0 %v3374, 109
      %v3383 = vpop.permute.xlu0 %3382
      %3384 = vrot.lane.b32.xlu0 %v3375, 109
      %v3385 = vpop.permute.xlu0 %3384
      %3386 = vrot.lane.b32.xlu0 %v3376, 109
      %v3387 = vpop.permute.xlu0 %3386
      %3388 = vrot.lane.b32.xlu0 %v3377, 109
      %v3389 = vpop.permute.xlu0 %3388
      %v3390 = vsel %vm757, %v3383, %v3385
      %v3391 = vsel %vm757, %v3385, %v3387
      %v3392 = vsel %vm757, %v3387, %v3389
      %3396 = vst [vmem:[#allocation2 + $0xc0] sm:$0xff] %v3390
      %3397 = vst [vmem:[#allocation2 + $0xc8] sm:$0xff] %v3391
      %3398 = vst [vmem:[#allocation2 + $0xd0] sm:$0xff] %v3392
      %v3399 = vld [vmem:[%s11] sm:$0xf]
      %v3400 = vld [vmem:[#allocation2] sm:$0xff]
      %v3401 = vld [vmem:[#allocation2 + $0x8] sm:$0xff]
      %v3402 = vld [vmem:[#allocation2 + $0x10] sm:$0xff]
      %v3403 = vld [vmem:[#allocation2 + $0x18] sm:$0xff]
      %v3404 = vld [vmem:[#allocation2 + $0x20] sm:$0xff]
      %v3405 = vld [vmem:[#allocation2 + $0x28] sm:$0xff]
      %v3406 = vld [vmem:[#allocation2 + $0x30] sm:$0xff]
      %v3407 = vld [vmem:[#allocation2 + $0x38] sm:$0xff]
      %v3408 = vld [vmem:[#allocation2 + $0x40] sm:$0xff]
      %v3409 = vld [vmem:[#allocation2 + $0x48] sm:$0xff]
      %v3410 = vld [vmem:[#allocation2 + $0x50] sm:$0xff]
      %v3411 = vld [vmem:[#allocation2 + $0x58] sm:$0xff]
      %v3412 = vld [vmem:[#allocation2 + $0x60] sm:$0xff]
      %v3413 = vld [vmem:[#allocation2 + $0x68] sm:$0xff]
      %v3414 = vld [vmem:[#allocation2 + $0x70] sm:$0xff]
      %v3415 = vld [vmem:[#allocation2 + $0x78] sm:$0xff]
      %v3416 = vld [vmem:[#allocation2 + $0x80] sm:$0xff]
      %v3417 = vld [vmem:[#allocation2 + $0x88] sm:$0xff]
      %v3418 = vld [vmem:[#allocation2 + $0x90] sm:$0xff]
      %v3419 = vld [vmem:[#allocation2 + $0x98] sm:$0xff]
      %v3420 = vld [vmem:[#allocation2 + $0xa0] sm:$0xff]
      %v3421 = vld [vmem:[#allocation2 + $0xa8] sm:$0xff]
      %v3422 = vld [vmem:[#allocation2 + $0xb0] sm:$0xff]
      %v3423 = vld [vmem:[#allocation2 + $0xb8] sm:$0xff]
      %v3424 = vld [vmem:[#allocation2 + $0xc0] sm:$0xff]
      %v3425 = vld [vmem:[#allocation2 + $0xc8] sm:$0xff]
      %v3426 = vld [vmem:[#allocation2 + $0xd0] sm:$0xff]
      %v3427 = vld [vmem:[%s12] sm:$0xf]
      %3429 = vset.pattern.permute.xlu0 0
      %3430 = vperm.xlu0 %3429, %v3427
      %v3431 = vpop.permute.xlu0 %3430
      %v3434 = vsel %vm801, %v3399, 0
      %3436 = vmatprep.subr.mxu0 0.0
      %3437 = vmatpush1.msra.mxu0 0.0
      %3438 = vmatprep.subr.mxu0 0.0
      %3439 = vmatpush1.msra.mxu0 0.0
      %3440 = vmatprep.subr.mxu0 0.0
      %3441 = vmatpush1.msra.mxu0 0.0
      %3442 = vmatprep.subr.mxu0 0.0
      %3443 = vmatpush1.msra.mxu0 0.0
      %3444 = vmatprep.subr.mxu0 0.0
      %3445 = vmatpush1.msra.mxu0 0.0
      %3446 = vmatprep.subr.mxu0 0.0
      %3447 = vmatpush1.msra.mxu0 0.0
      %3448 = vmatprep.subr.mxu0 0.0
      %3449 = vmatpush1.msra.mxu0 0.0
      %3450 = vmatprep.subr.mxu0 %v3425
      %3451 = vmatpush1.msra.mxu0 %v3424
      %3452 = vmatprep.subr.mxu0 %v3422
      %3453 = vmatpush1.msra.mxu0 %v3421
      %3454 = vmatprep.subr.mxu0 %v3419
      %3455 = vmatpush1.msra.mxu0 %v3418
      %3456 = vmatprep.subr.mxu0 %v3416
      %3457 = vmatpush1.msra.mxu0 %v3415
      %3458 = vmatprep.subr.mxu0 %v3413
      %3459 = vmatpush1.msra.mxu0 %v3412
      %3460 = vmatprep.subr.mxu0 %v3410
      %3461 = vmatpush1.msra.mxu0 %v3409
      %3462 = vmatprep.subr.mxu0 %v3407
      %3463 = vmatpush1.msra.mxu0 %v3406
      %3464 = vmatprep.subr.mxu0 %v3404
      %3465 = vmatpush1.msra.mxu0 %v3403
      %3466 = vmatprep.subr.mxu0 %v3401
      %3467 = vmatpush1.msra.mxu0 %v3400
      %3468 = vmatprep.subr.mxu0 0.0
      %3469 = vmatpush2.msra.mxu0 0.0
      %3470 = vmatprep.subr.mxu0 0.0
      %3471 = vmatpush2.msra.mxu0 0.0
      %3472 = vmatprep.subr.mxu0 0.0
      %3473 = vmatpush2.msra.mxu0 0.0
      %3474 = vmatprep.subr.mxu0 0.0
      %3475 = vmatpush2.msra.mxu0 0.0
      %3476 = vmatprep.subr.mxu0 0.0
      %3477 = vmatpush2.msra.mxu0 0.0
      %3478 = vmatprep.subr.mxu0 0.0
      %3479 = vmatpush2.msra.mxu0 0.0
      %3480 = vmatprep.subr.mxu0 0.0
      %3481 = vmatpush2.msra.mxu0 0.0
      %3482 = vmatprep.subr.mxu0 0.0
      %3483 = vmatpush2.msra.mxu0 0.0
      %3484 = vmatprep.subr.mxu0 0.0
      %3485 = vmatpush2.msra.mxu0 0.0
      %3486 = vmatprep.subr.mxu0 0.0
      %3487 = vmatpush2.msra.mxu0 0.0
      %3488 = vmatprep.subr.mxu0 0.0
      %3489 = vmatpush2.msra.mxu0 0.0
      %3490 = vmatprep.subr.mxu0 0.0
      %3491 = vmatpush2.msra.mxu0 0.0
      %3492 = vmatprep.subr.mxu0 0.0
      %3493 = vmatpush2.msra.mxu0 0.0
      %3494 = vmatprep.subr.mxu0 0.0
      %3495 = vmatpush2.msra.mxu0 0.0
      %3496 = vmatprep.subr.mxu0 0.0
      %3497 = vmatpush2.msra.mxu0 0.0
      %3498 = vmatprep.subr.mxu0 0.0
      %3499 = vmatpush2.msra.mxu0 0.0
      %3500 = vmatprep.mubr.f32.mxu0 0.0
      %3501 = vmatmul.mubr.f32.gmra.mxu0 %v3434
      %v3502 = vpop.f32.mrf.mxu0
      %v3503 = vadd.f32 %v3431, %v3502
      %v3504 = vpop.f32.mrf.mxu0
      %v3505 = vadd.f32 %v3431, %v3504
      %3506 = vdwg.mxu0
      %3507 = vmatprep.subr.mxu0 0.0
      %3508 = vmatpush1.msra.mxu0 0.0
      %3509 = vmatprep.subr.mxu0 0.0
      %3510 = vmatpush1.msra.mxu0 0.0
      %3511 = vmatprep.subr.mxu0 0.0
      %3512 = vmatpush1.msra.mxu0 0.0
      %3513 = vmatprep.subr.mxu0 0.0
      %3514 = vmatpush1.msra.mxu0 0.0
      %3515 = vmatprep.subr.mxu0 0.0
      %3516 = vmatpush1.msra.mxu0 0.0
      %3517 = vmatprep.subr.mxu0 0.0
      %3518 = vmatpush1.msra.mxu0 0.0
      %3519 = vmatprep.subr.mxu0 0.0
      %3520 = vmatpush1.msra.mxu0 0.0
      %3521 = vmatprep.subr.mxu0 0.0
      %3522 = vmatpush1.msra.mxu0 %v3426
      %3523 = vmatprep.subr.mxu0 0.0
      %3524 = vmatpush1.msra.mxu0 %v3423
      %3525 = vmatprep.subr.mxu0 0.0
      %3526 = vmatpush1.msra.mxu0 %v3420
      %3527 = vmatprep.subr.mxu0 0.0
      %3528 = vmatpush1.msra.mxu0 %v3417
      %3529 = vmatprep.subr.mxu0 0.0
      %3530 = vmatpush1.msra.mxu0 %v3414
      %3531 = vmatprep.subr.mxu0 0.0
      %3532 = vmatpush1.msra.mxu0 %v3411
      %3533 = vmatprep.subr.mxu0 0.0
      %3534 = vmatpush1.msra.mxu0 %v3408
      %3535 = vmatprep.subr.mxu0 0.0
      %3536 = vmatpush1.msra.mxu0 %v3405
      %3537 = vmatprep.subr.mxu0 0.0
      %3538 = vmatpush1.msra.mxu0 %v3402
      %3539 = vmatprep.subr.mxu0 0.0
      %3540 = vmatpush2.msra.mxu0 0.0
      %3541 = vmatprep.subr.mxu0 0.0
      %3542 = vmatpush2.msra.mxu0 0.0
      %3543 = vmatprep.subr.mxu0 0.0
      %3544 = vmatpush2.msra.mxu0 0.0
      %3545 = vmatprep.subr.mxu0 0.0
      %3546 = vmatpush2.msra.mxu0 0.0
      %3547 = vmatprep.subr.mxu0 0.0
      %3548 = vmatpush2.msra.mxu0 0.0
      %3549 = vmatprep.subr.mxu0 0.0
      %3550 = vmatpush2.msra.mxu0 0.0
      %3551 = vmatprep.subr.mxu0 0.0
      %3552 = vmatpush2.msra.mxu0 0.0
      %3553 = vmatprep.subr.mxu0 0.0
      %3554 = vmatpush2.msra.mxu0 0.0
      %3555 = vmatprep.subr.mxu0 0.0
      %3556 = vmatpush2.msra.mxu0 0.0
      %3557 = vmatprep.subr.mxu0 0.0
      %3558 = vmatpush2.msra.mxu0 0.0
      %3559 = vmatprep.subr.mxu0 0.0
      %3560 = vmatpush2.msra.mxu0 0.0
      %3561 = vmatprep.subr.mxu0 0.0
      %3562 = vmatpush2.msra.mxu0 0.0
      %3563 = vmatprep.subr.mxu0 0.0
      %3564 = vmatpush2.msra.mxu0 0.0
      %3565 = vmatprep.subr.mxu0 0.0
      %3566 = vmatpush2.msra.mxu0 0.0
      %3567 = vmatprep.subr.mxu0 0.0
      %3568 = vmatpush2.msra.mxu0 0.0
      %3569 = vmatprep.subr.mxu0 0.0
      %3570 = vmatpush2.msra.mxu0 0.0
      %3571 = vmatprep.mubr.f32.mxu0 0.0
      %3572 = vmatmul.mubr.f32.gmra.mxu0 %v3434
      %v3573 = vpop.f32.mrf.mxu0
      %v3574 = vadd.f32 %v3431, %v3573
      %v3575 = vpop.f32.mrf.mxu0
      %3576 = vdwg.mxu0
      %v3577 = vsel %vm962, %v3503, 0.0
      %v3578 = vsel %vm963, %v3505, 0.0
      %v3579 = vsel %vm964, %v3574, 0.0
      %v3580 = vld [vmem:[%s543 + $0x8] sm:$0xf]
      %v3581 = vld [vmem:[%s543 + $0x10] sm:$0xf]
      %v3582 = vld [vmem:[%s543 + $0x18] sm:$0xf]
      %v3583 = vadd.f32 %v3577, %v3580
      %v3584 = vadd.f32 %v3578, %v3581
      %v3585 = vadd.f32 %v3579, %v3582
      %v3588 = vcombine.low %v3583, %v3584
      %3590 = vst [vmem:[%s548] sm:$0xff] %v3588
      %3591 = vst [vmem:[%s548 + $0x8] sm:$0xf] %v3585
      %p3592 = scmp.lt.s32.totalorder %s28, 1
      %s3593 = scalar_select %p3592, %s28, 1
      %s3594 = smul.addr %s3593, 3
      %s3595 = smul.addr %s3594, 4
      %s3596 = scalar_lea.vmem %s17, %s3595
      // Predicated region
      $region89: #{_lambda_.1} parent=87 // pred_check
        %p3597 = pneg %p408
      $region90: #{_lambda_.1} parent=87 // pred_check_branch
        %3599 = sbr.rel (%p3597) target = $region92
      $region91: #{_lambda_.1} parent=87 // pred_region
        _
      $region92: #{_lambda_.1} parent=87 // pred_fallthru
        _
    $region88: #{_lambda_.1} parent=5 // pred_fallthru
      _
    %p3600 = scmp.le.s32.totalorder 2, %s23
    // Predicated region
    $region93: #{_lambda_.1} parent=5 // pred_check
      %p3601 = pneg %p3600
    $region94: #{_lambda_.1} parent=5 // pred_check_branch
      %3603 = sbr.rel (%p3601) target = $region96
    $region95: #{_lambda_.1} parent=5 // pred_region
      %s3604 = ssub.s32 %s23, 2
      // Predicated region
      $region97: #{_lambda_.1} parent=95 // pred_check
        %p3605 = pneg %p414
      $region98: #{_lambda_.1} parent=95 // pred_check_branch
        %3607 = sbr.rel (%p3605) target = $region100
      $region99: #{_lambda_.1} parent=95 // pred_region
        %p3608 = scmp.lt.s32.totalorder %s29, 1
        %s3609 = scalar_select %p3608, %s29, 1
        %s3610 = smul.addr %s3609, 3
        %s3611 = smul.addr %s3610, 4
        %s3612 = scalar_lea.vmem %s17, %s3611
      $region100: #{_lambda_.1} parent=95 // pred_fallthru
        _
    $region96: #{_lambda_.1} parent=5 // pred_fallthru
      _
  $region6: #{_lambda_.1} parent=0 // loop_footer
    %s27 = sadd.s32 1, %s23
  $region7: #{_lambda_.1} parent=0 // loop_footer_branch
    %22 = sbr.rel target = $region3
  $region8: #{_lambda_.1} parent=0 // loop_exit
    _

</llo_original>
